<compile_context>
chip_gen: v6e
topology: v6e:2x2x1
jax: 0.10.0
libtpu: 0.0.40
codegen_flags: <defaults>
</compile_context>

<pallas_src>
import jax
import jax.numpy as jnp
from jax.experimental import pallas as pl
from jax.experimental.pallas import tpu as pltpu

C_IN = 64
C_OUT = 64
KH = 3
KW = 3


def _round_up(x, m):
    return (x + m - 1) // m * m


def _vmem_bytes_per_row(Wp):
    """Rough per-padded-row (Wp positions) VMEM need, for tile-size selection."""
    return Wp * (
        2 * C_IN * 2        # x_hi input block, double-buffered, bf16
        + 2 * C_OUT * 2     # output block, double-buffered, bf16
        + KW * C_IN * 2     # xkw im2col scratch, bf16
        + KW * C_IN * 2     # transient shifted copies feeding the scratch stores
        + KH * C_OUT * 4    # fp32 matmul result p
        + C_OUT * 4         # fp32 combined rows before the ReLU/cast
    )


def _fixed_vmem_bytes(Wp):
    return (
        2 * (KW * C_IN) * (KH * C_OUT) * 2   # resident packed weights (2 bufs)
        + 2 * (2 * Wp) * C_IN * 2            # 2-row tail block, double-buffered
        + (1 << 20)                          # compiler scratch / misc headroom
    )


def _conv_relu_kernel(x_hi_ref, x_lo_ref, w_ref, o_ref, xkw_ref):
    """One (batch, H-strip) block of Conv2d(64->64, 3x3, pad 1) + ReLU.

    x_hi_ref: (1, TH*Wp, C)      padded rows [s*TH, s*TH+TH) of the window
    x_lo_ref: (1, 2*Wp,  C)      padded rows [s*TH+TH, s*TH+TH+2) (rest of it)
    w_ref   : (KW*C, KH*C)       packed weights, bf16, resident across the grid
    o_ref   : (1, TH*Wp, C)      output strip (row-flattened padded layout), bf16
    xkw_ref : ((TH+2)*Wp, KW*C)  scratch: kw-packed im2col of the window, bf16
    """
    C = x_hi_ref.shape[2]
    m = x_hi_ref.shape[1]                   # TH * Wp  (output rows this step)
    rows = m + x_lo_ref.shape[1]            # (TH + 2) * Wp
    Wp = x_lo_ref.shape[1] // 2

    # Full (TH+2)-row window of the padded input, row-flattened:
    # full[j*Wp + w] = padded input row (s*TH + j), padded column w.
    full = jnp.concatenate([x_hi_ref[0], x_lo_ref[0]], axis=0)            # (rows, C)
    fullz = jnp.concatenate(
        [full, jnp.zeros((KW - 1, C), full.dtype)], axis=0)               # (rows+2, C)

    # kw-packed im2col, built once per strip: column group kw holds the window
    # shifted down by kw flat rows (== kw W positions).  Each group is one
    # full-height, start-aligned store; the sublane shift of the source runs on
    # the XLU.  The zero tail rows (and the Wp >= W+2 column padding) only ever
    # feed output columns >= W, which the wrapper discards.
    for kw in range(KW):
        xkw_ref[:, kw * C:(kw + 1) * C] = fullz[kw:kw + rows]

    # ONE MXU matmul: (rows, 192) x (192, 192) -> fp32 (rows, 192).
    # N = KH*C_OUT = 192 output columns per pass instead of 64.
    p = jnp.dot(xkw_ref[...], w_ref[...], preferred_element_type=jnp.float32)

    # Combine the KH partial products: out[r] = sum_kh p[r + kh*Wp, kh*64:...].
    # Row offsets kh*Wp are sublane-aligned (Wp % 16 == 0); the adds + ReLU +
    # cast + store fuse into a single streaming pass (no accumulator loop).
    acc = p[0:m, 0:C_OUT]
    for kh in range(1, KH):
        acc = acc + p[kh * Wp:kh * Wp + m, kh * C_OUT:(kh + 1) * C_OUT]

    # ReLU in fp32, store bf16 (halves output HBM bytes / VMEM output block).
    o_ref[0] = jnp.maximum(acc, 0.0).astype(o_ref.dtype)
    # TODO(synk): lane-dense output (two W positions per 128-lane row, i.e.
    # (TH*Wp//2, 128)) would remove the masked 64-wide stores; deferred because
    # the (M,64)->(M//2,128) relayout is the risky piece and the store slot is
    # already under the HBM roofline once the output is bf16.


def conv_relu_block(x_nchw, weight, *, tile_h=None, out_dtype=jnp.bfloat16,
                    vmem_budget_bytes=32 * 1024 * 1024):
    """ReLU(Conv2d(64->64, 3x3, stride 1, pad 1, bias=False)).

    x_nchw: (N, 64, H, W) (PyTorch layout); weight: (64, 64, 3, 3) (OIHW).
    The math is bf16 on the MXU with fp32 accumulation; the kernel emits bf16
    (pass out_dtype=jnp.float32 for fp32 containers, cast outside the kernel).
    """
    N, C, H, W = x_nchw.shape
    assert C == C_IN, "Conv_ReLU_Block expects 64 input channels"

    # Padded row width (left conv zero column + right padding), multiple of 16
    # so in-kernel bf16 row windows at offsets kh*Wp stay sublane-aligned.
    Wp = _round_up(W + 2, 16)
    assert Wp >= W + 2

    # Strip height from a VMEM budget (v7x has only 64 MiB per TensorCore), not
    # a fixed constant; bigger budgets on 128 MiB parts give bigger matmul M.
    if tile_h is None:
        th = (vmem_budget_bytes - _fixed_vmem_bytes(Wp)) // _vmem_bytes_per_row(Wp) - 2
    else:
        th = int(tile_h)
    th = min(th, _round_up(H, 2))
    th = max(2, th - (th % 2))          # even, so the 2-row tail block is block-aligned

    Hp = _round_up(H, th)               # ragged H handled by padding, not th collapse
    n_strips = Hp // th                 # note: N * n_strips even keeps both v7x TCs busy

    # ---- layout glue (one-off; a full VDSR stack would keep activations in
    # this padded, row-flattened NHWC bf16 layout between its 18 layers) ------
    x = jnp.transpose(x_nchw, (0, 2, 3, 1)).astype(jnp.bfloat16)          # NHWC
    # Single pad: conv zero row above, conv zero row (+ ragged rows) below,
    # conv zero column left, padding columns up to Wp on the right.
    x = jnp.pad(x, ((0, 0), (1, Hp - H + 1), (1, Wp - W - 1), (0, 0)))
    x_flat = x.reshape(N, (Hp + 2) * Wp, C_IN)

    # Pack weights once: (Cout, Cin, kh, kw) -> (kw*Cin + ci, kh*Cout + co).
    w2 = jnp.transpose(weight, (3, 1, 2, 0)).reshape(KW * C_IN, KH * C_OUT)
    w2 = w2.astype(jnp.bfloat16)

    vmem_need = _vmem_bytes_per_row(Wp) * (th + 2) + _fixed_vmem_bytes(Wp)
    vmem_limit = int(min(max(vmem_need + (8 << 20), 16 << 20), 96 << 20))

    half_th = th // 2
    out_flat = pl.pallas_call(
        _conv_relu_kernel,
        out_shape=jax.ShapeDtypeStruct((N, Hp * Wp, C_OUT), jnp.bfloat16),
        grid=(N, n_strips),
        in_specs=[
            # The (th+2)-row window of each strip, fetched as two
            # non-overlapping blocks of the SAME padded array (no wrapper-built
            # halo arrays / gathers):
            pl.BlockSpec((1, th * Wp, C_IN), lambda b, s: (b, s, 0)),
            pl.BlockSpec((1, 2 * Wp, C_IN), lambda b, s: (b, (s + 1) * half_th, 0)),
            pl.BlockSpec((KW * C_IN, KH * C_OUT), lambda b, s: (0, 0)),
        ],
        out_specs=pl.BlockSpec((1, th * Wp, C_OUT), lambda b, s: (b, s, 0)),
        scratch_shapes=[pltpu.VMEM(((th + 2) * Wp, KW * C_IN), jnp.bfloat16)],
        compiler_params=pltpu.CompilerParams(
            dimension_semantics=("parallel", "parallel"),   # no cross-step state
            vmem_limit_bytes=vmem_limit),
    )(x_flat, x_flat, w2)

    # TODO(synk): for a full VDSR stack, keep this padded bf16 layout end-to-end,
    # fold several small images into one padded row / grid step (larger matmul M,
    # less Wp padding waste), and use a lane-dense (2 W positions per 128-lane
    # row) activation layout.
    out = out_flat.reshape(N, Hp, Wp, C_OUT)[:, :H, :W, :]
    out = jnp.transpose(out, (0, 3, 1, 2))
    return out.astype(out_dtype)


if __name__ == "__main__":
    key = jax.random.PRNGKey(0)
    kx, kw_key = jax.random.split(key)

    N, H, W = 2, 16, 16                 # the module fixes channels at 64
    x = jax.random.normal(kx, (N, C_IN, H, W), dtype=jnp.float32)

    # Deterministic VDSR-style init: N(0, sqrt(2 / (k*k*C_out))), no bias.
    std = (2.0 / (KH * KW * C_OUT)) ** 0.5
    weight = std * jax.random.normal(kw_key, (C_OUT, C_IN, KH, KW), dtype=jnp.float32)

    # Reference with the same bf16 rounding of inputs/weights (the kernel does
    # bf16 MXU matmuls with fp32 accumulation and emits bf16 outputs).
    xb = x.astype(jnp.bfloat16).astype(jnp.float32)
    wb = weight.astype(jnp.bfloat16).astype(jnp.float32)
    ref = jax.lax.conv_general_dilated(
        xb, wb, window_strides=(1, 1), padding=((1, 1), (1, 1)),
        dimension_numbers=("NCHW", "OIHW", "NCHW"))
    ref = jnp.maximum(ref, 0.0)

    # tile_h=None: budget-driven single strip (M = H*Wp rows per step).
    # tile_h=6  : three strips with inter-strip halos AND ragged-H padding
    #             (Hp = 18 > H = 16), exercising the window/discard paths.
    for th in (None, 6):
        out = conv_relu_block(x, weight, tile_h=th)
        out = jax.block_until_ready(out)
        assert out.shape == (N, C_OUT, H, W)
        out_f32 = out.astype(jnp.float32)
        max_err = float(jnp.max(jnp.abs(out_f32 - ref)))
        assert jnp.allclose(out_f32, ref, atol=2e-2, rtol=2e-2), (
            f"tile_h={th}: max abs err {max_err}")

    print("KERNEL_OK")
</pallas_src>

<mosaic_0001>
module attributes {stable_mosaic.version = 11 : i64} {
  func.func @_conv_relu_kernel(%arg0: i32, %arg1: i32, %arg2: memref<1x512x64xbf16, #tpu.memory_space<vmem>>, %arg3: memref<1x64x64xbf16, #tpu.memory_space<vmem>>, %arg4: memref<192x192xbf16, #tpu.memory_space<vmem>>, %arg5: memref<1x512x64xbf16, #tpu.memory_space<vmem>>, %arg6: memref<576x192xbf16, #tpu.memory_space<vmem>>) attributes {dimension_semantics = [#tpu.dimension_semantics<parallel>, #tpu.dimension_semantics<parallel>], iteration_bounds = array<i64: 2, 1>, scalar_prefetch = 0 : i64, scratch_operands = 1 : i64, tpu.core_type = #tpu.core_type<tc>, window_params = [{transform_indices = @transform_0, window_bounds = array<i64: 1, 512, 64>}, {transform_indices = @transform_1, window_bounds = array<i64: 1, 64, 64>}, {pipeline_mode = #tpu.pipeline_mode<synchronous>, transform_indices = @transform_2, window_bounds = array<i64: 192, 192>}, {transform_indices = @transform_3, window_bounds = array<i64: 1, 512, 64>}]} {
    %c0 = arith.constant 0 : index
    %c0_0 = arith.constant 0 : index
    %c0_1 = arith.constant 0 : index
    %0 = vector.load %arg2[%c0, %c0_0, %c0_1] : memref<1x512x64xbf16, #tpu.memory_space<vmem>>, vector<1x512x64xbf16>
    %1 = vector.shape_cast %0 : vector<1x512x64xbf16> to vector<512x64xbf16>
    %c0_2 = arith.constant 0 : index
    %c0_3 = arith.constant 0 : index
    %c0_4 = arith.constant 0 : index
    %2 = vector.load %arg3[%c0_2, %c0_3, %c0_4] : memref<1x64x64xbf16, #tpu.memory_space<vmem>>, vector<1x64x64xbf16>
    %3 = vector.shape_cast %2 : vector<1x64x64xbf16> to vector<64x64xbf16>
    %4 = tpu.concatenate %1, %3 in 0 : vector<512x64xbf16>, vector<64x64xbf16> -> vector<576x64xbf16>
    %cst = arith.constant 0.000000e+00 : bf16
    %5 = vector.broadcast %cst : bf16 to vector<2x64xbf16>
    %6 = tpu.concatenate %4, %5 in 0 : vector<576x64xbf16>, vector<2x64xbf16> -> vector<578x64xbf16>
    %7 = vector.extract_strided_slice %6 {offsets = [0, 0], sizes = [576, 64], strides = [1, 1]} : vector<578x64xbf16> to vector<576x64xbf16>
    %c0_5 = arith.constant 0 : index
    %c0_6 = arith.constant 0 : index
    %8 = vector.load %arg6[%c0_5, %c0_6] : memref<576x192xbf16, #tpu.memory_space<vmem>>, vector<576x64xbf16>
    tpu.vector_store %arg6[%c0_5, %c0_6], %7 {strides = array<i32>} : memref<576x192xbf16, #tpu.memory_space<vmem>>, vector<576x64xbf16>,
    %9 = vector.extract_strided_slice %6 {offsets = [1, 0], sizes = [576, 64], strides = [1, 1]} : vector<578x64xbf16> to vector<576x64xbf16>
    %c0_7 = arith.constant 0 : index
    %c64 = arith.constant 64 : index
    %10 = vector.load %arg6[%c0_7, %c64] : memref<576x192xbf16, #tpu.memory_space<vmem>>, vector<576x64xbf16>
    tpu.vector_store %arg6[%c0_7, %c64], %9 {strides = array<i32>} : memref<576x192xbf16, #tpu.memory_space<vmem>>, vector<576x64xbf16>,
    %11 = vector.extract_strided_slice %6 {offsets = [2, 0], sizes = [576, 64], strides = [1, 1]} : vector<578x64xbf16> to vector<576x64xbf16>
    %c0_8 = arith.constant 0 : index
    %c128 = arith.constant 128 : index
    %12 = vector.load %arg6[%c0_8, %c128] : memref<576x192xbf16, #tpu.memory_space<vmem>>, vector<576x64xbf16>
    tpu.vector_store %arg6[%c0_8, %c128], %11 {strides = array<i32>} : memref<576x192xbf16, #tpu.memory_space<vmem>>, vector<576x64xbf16>,
    %c0_9 = arith.constant 0 : index
    %c0_10 = arith.constant 0 : index
    %13 = vector.load %arg6[%c0_9, %c0_10] : memref<576x192xbf16, #tpu.memory_space<vmem>>, vector<576x192xbf16>
    %c0_11 = arith.constant 0 : index
    %c0_12 = arith.constant 0 : index
    %14 = vector.load %arg4[%c0_11, %c0_12] : memref<192x192xbf16, #tpu.memory_space<vmem>>, vector<192x192xbf16>
    %cst_13 = arith.constant dense<0.000000e+00> : vector<576x192xf32>
    %15 = tpu.matmul %13, %14, %cst_13 {dimension_numbers = #tpu.dot_dimension_numbers<[1], [0], [0], [1], [0, 0, 1, 1], [], []>} : vector<576x192xbf16>, vector<192x192xbf16>, vector<576x192xf32> -> vector<576x192xf32>
    %16 = vector.extract_strided_slice %15 {offsets = [0, 0], sizes = [512, 64], strides = [1, 1]} : vector<576x192xf32> to vector<512x64xf32>
    %17 = vector.extract_strided_slice %15 {offsets = [32, 64], sizes = [512, 64], strides = [1, 1]} : vector<576x192xf32> to vector<512x64xf32>
    %18 = arith.addf %16, %17 : vector<512x64xf32>
    %19 = vector.extract_strided_slice %15 {offsets = [64, 128], sizes = [512, 64], strides = [1, 1]} : vector<576x192xf32> to vector<512x64xf32>
    %20 = arith.addf %18, %19 : vector<512x64xf32>
    %cst_14 = arith.constant 0.000000e+00 : f32
    %21 = vector.broadcast %cst_14 : f32 to vector<512x64xf32>
    %22 = arith.maximumf %20, %21 : vector<512x64xf32>
    %23 = arith.truncf %22 : vector<512x64xf32> to vector<512x64xbf16>
    %c0_15 = arith.constant 0 : index
    %c0_16 = arith.constant 0 : index
    %c0_17 = arith.constant 0 : index
    %24 = vector.load %arg5[%c0_15, %c0_16, %c0_17] : memref<1x512x64xbf16, #tpu.memory_space<vmem>>, vector<1x512x64xbf16>
    %25 = vector.shape_cast %24 : vector<1x512x64xbf16> to vector<512x64xbf16>
    %26 = vector.shape_cast %23 : vector<512x64xbf16> to vector<1x512x64xbf16>
    tpu.vector_store %arg5[%c0_15, %c0_16, %c0_17], %26 {strides = array<i32>} : memref<1x512x64xbf16, #tpu.memory_space<vmem>>, vector<1x512x64xbf16>,
    return
  }
  func.func @transform_0(%arg0: i32, %arg1: i32) -> (i32, i32, i32) {
    %c0_i32 = arith.constant 0 : i32
    %c0_i32_0 = arith.constant 0 : i32
    return %arg0, %arg1, %c0_i32 : i32, i32, i32
  }
  func.func @transform_1(%arg0: i32, %arg1: i32) -> (i32, i32, i32) {
    %c1_i32 = arith.constant 1 : i32
    %0 = arith.addi %arg1, %c1_i32 : i32
    %c8_i32 = arith.constant 8 : i32
    %1 = arith.muli %0, %c8_i32 : i32
    %c0_i32 = arith.constant 0 : i32
    %c0_i32_0 = arith.constant 0 : i32
    return %arg0, %1, %c0_i32 : i32, i32, i32
  }
  func.func @transform_2(%arg0: i32, %arg1: i32) -> (i32, i32) {
    %c0_i32 = arith.constant 0 : i32
    %c0_i32_0 = arith.constant 0 : i32
    %c0_i32_1 = arith.constant 0 : i32
    return %c0_i32, %c0_i32_0 : i32, i32
  }
  func.func @transform_3(%arg0: i32, %arg1: i32) -> (i32, i32, i32) {
    %c0_i32 = arith.constant 0 : i32
    %c0_i32_0 = arith.constant 0 : i32
    return %arg0, %arg1, %c0_i32 : i32, i32, i32
  }
}

</mosaic_0001>

<llo_original>
// kernel: tpu_custom_call.1
$region0: #{tpu_custom_call.1}
  #allocation0 [shape = 'u32[]', space=smem, size = 0x4, offset = 0x4, fixed_abs, tag = 'smem constant byte address 0x4 - core index']
  #allocation1 [shape = 'u32[144,128]{1,0:T(1,128)}', space=vmem, size = 0x12000, scoped, tag = 'internal scratch']
  #allocation2 [shape = 'bf16[576,192]{1,0:T(8,128)(2,1)}', space=vmem, size = 0x48000, scoped, tag = 'scratch operand']
  %s0 = inlined_call_operand.vmem [shape: bf16[2,576,64], index: 0, kind: input, shape index: {}]
  %s1 = inlined_call_operand.vmem [shape: bf16[2,576,64], index: 1, kind: input, shape index: {}]
  %s2 = inlined_call_operand.vmem [shape: bf16[192,192], index: 2, kind: input, shape index: {}]
  %s3 = inlined_call_operand.vmem [shape: bf16[2,512,64], index: 3, kind: output, shape index: {}]
  %s4 = sld [smem:[#allocation0]]
  $region45: #{tpu_custom_call.1} parent=0
    _
  %s6 = ssub.s32 1, %s4
  %s7 = scalar_select 0, %s6, %s4
  loop: start=0, step=1, limit=4
  $region2: #{tpu_custom_call.1} parent=0 // loop_pre_header
    _
  $region3: #{tpu_custom_call.1} parent=0 // loop_header
    %s9 = sphi 0, %s13
    %p10 = scmp.ge.s32.totalorder %s9, 4
    %s16 = sphi 0, %s28
    %s17 = sphi 0, %s24
    %s18 = sphi 0, %s16
    %s19 = sphi 0, %s17
    %s20 = sphi 0, %s18
    %s21 = sphi 0, %s19
    %s33 = sphi 0, %s35
    %s36 = sphi 0, %s33
    %s37 = sphi 0, %s36
    %s53 = sphi 0, %s37
    %s65 = sphi 0, %s67
    %s68 = sphi 0, %s65
    %s69 = sphi 0, %s68
    %s85 = sphi 0, %s69
    %s89 = sphi 0, %s89
    %s91 = sphi 0, %s89
    %s92 = sphi 0, %s91
    %s106 = sphi 0, %s92
    %s114 = sphi 0, %s116
    %s117 = sphi 0, %s114
    %s118 = sphi 0, %s117
    %s134 = sphi 0, %s118
  $region4: #{tpu_custom_call.1} parent=0 // loop_header_branch
    %12 = sbr.rel (%p10) target = $region8
  $region5: #{tpu_custom_call.1} parent=0 // loop_body
    %s14 = ssub.s32 %s9, 1
    %s15 = ssub.s32 %s9, 2
    %s22 = sadd.s32 1, %s17
    %p23 = scmp.ge.s32.totalorder %s22, 1
    %s24 = scalar_select %p23, 0, %s22
    %s25 = sadd.s32 1, %s16
    %s26 = scalar_select %p23, %s25, %s16
    %p27 = scmp.ge.s32.totalorder %s26, 2
    %s28 = scalar_select %p27, 0, %s26
    %s29 = ssub.s32 %s16, %s28
    %s30 = ssub.s32 %s17, %s24
    %s31 = sor.u32 %s29, %s30
    %p32 = scmp.eq.s32.totalorder %s31, 0
    %s34 = sadd.s32 %s33, 1
    %s35 = scalar_select %p32, %s33, %s34
    %p38 = pneg %p32
    %p39 = scmp.eq.s32.totalorder %s9, 1
    %p40 = por %p38, %p39
    %p41 = scmp.ne.s32.totalorder %s33, %s36
    %p42 = scmp.eq.s32.totalorder %s9, 0
    %p43 = por %p41, %p42
    %p44 = scmp.ne.s32.totalorder %s33, %s36
    %p45 = scmp.eq.s32.totalorder %s14, 1
    %p46 = por %p44, %p45
    %p47 = scmp.ne.s32.totalorder %s36, %s37
    %p48 = scmp.eq.s32.totalorder %s14, 0
    %p49 = por %p47, %p48
    %p50 = scmp.ne.s32.totalorder %s36, %s37
    %p51 = scmp.eq.s32.totalorder %s15, 1
    %p52 = por %p50, %p51
    %p54 = scmp.ne.s32.totalorder %s37, %s53
    %p55 = scmp.eq.s32.totalorder %s15, 0
    %p56 = por %p54, %p55
    %s57 = sadd.s32 %s17, 1
    %s58 = smul.u32 %s57, 8
    %s59 = sadd.s32 %s24, 1
    %s60 = smul.u32 %s59, 8
    %s61 = ssub.s32 %s16, %s28
    %s62 = ssub.s32 %s58, %s60
    %s63 = sor.u32 %s61, %s62
    %p64 = scmp.eq.s32.totalorder %s63, 0
    %s66 = sadd.s32 %s65, 1
    %s67 = scalar_select %p64, %s65, %s66
    %p70 = pneg %p64
    %p71 = scmp.eq.s32.totalorder %s9, 1
    %p72 = por %p70, %p71
    %p73 = scmp.ne.s32.totalorder %s65, %s68
    %p74 = scmp.eq.s32.totalorder %s9, 0
    %p75 = por %p73, %p74
    %p76 = scmp.ne.s32.totalorder %s65, %s68
    %p77 = scmp.eq.s32.totalorder %s14, 1
    %p78 = por %p76, %p77
    %p79 = scmp.ne.s32.totalorder %s68, %s69
    %p80 = scmp.eq.s32.totalorder %s14, 0
    %p81 = por %p79, %p80
    %p82 = scmp.ne.s32.totalorder %s68, %s69
    %p83 = scmp.eq.s32.totalorder %s15, 1
    %p84 = por %p82, %p83
    %p86 = scmp.ne.s32.totalorder %s69, %s85
    %p87 = scmp.eq.s32.totalorder %s15, 0
    %p88 = por %p86, %p87
    %s90 = sadd.s32 %s89, 1
    %p93 = scmp.eq.s32.totalorder %s9, 1
    %p94 = scmp.ne.s32.totalorder %s89, %s91
    %p95 = scmp.eq.s32.totalorder %s9, 0
    %p96 = por %p94, %p95
    %p97 = scmp.ne.s32.totalorder %s89, %s91
    %p98 = scmp.eq.s32.totalorder %s14, 1
    %p99 = por %p97, %p98
    %p100 = scmp.ne.s32.totalorder %s91, %s92
    %p101 = scmp.eq.s32.totalorder %s14, 0
    %p102 = por %p100, %p101
    %p103 = scmp.ne.s32.totalorder %s91, %s92
    %p104 = scmp.eq.s32.totalorder %s15, 1
    %p105 = por %p103, %p104
    %p107 = scmp.ne.s32.totalorder %s92, %s106
    %p108 = scmp.eq.s32.totalorder %s15, 0
    %p109 = por %p107, %p108
    %s110 = ssub.s32 %s16, %s28
    %s111 = ssub.s32 %s17, %s24
    %s112 = sor.u32 %s110, %s111
    %p113 = scmp.eq.s32.totalorder %s112, 0
    %s115 = sadd.s32 %s114, 1
    %s116 = scalar_select %p113, %s114, %s115
    %p119 = pneg %p113
    %p120 = scmp.eq.s32.totalorder %s9, 1
    %p121 = por %p119, %p120
    %p122 = scmp.ne.s32.totalorder %s114, %s117
    %p123 = scmp.eq.s32.totalorder %s9, 0
    %p124 = por %p122, %p123
    %p125 = scmp.ne.s32.totalorder %s114, %s117
    %p126 = scmp.eq.s32.totalorder %s14, 1
    %p127 = por %p125, %p126
    %p128 = scmp.ne.s32.totalorder %s117, %s118
    %p129 = scmp.eq.s32.totalorder %s14, 0
    %p130 = por %p128, %p129
    %p131 = scmp.ne.s32.totalorder %s117, %s118
    %p132 = scmp.eq.s32.totalorder %s15, 1
    %p133 = por %p131, %p132
    %p135 = scmp.ne.s32.totalorder %s118, %s134
    %p136 = scmp.eq.s32.totalorder %s15, 0
    %p137 = por %p135, %p136
    %p138 = scmp.le.s32.totalorder 1, %s9
    %p139 = scmp.lt.s32.totalorder %s9, 3
    %p140 = pnand %p138, %p139
    %p141 = pneg %p140
    // Predicated region
    $region9: #{tpu_custom_call.1} parent=5 // pred_check
      _
    $region10: #{tpu_custom_call.1} parent=5 // pred_check_branch
      %143 = sbr.rel (%p140) target = $region12
    $region11: #{tpu_custom_call.1} parent=5 // pred_region
      %s144 = ssub.s32 %s9, 1
      // Predicated region
      $region13: #{tpu_custom_call.1} parent=11 // pred_check
        %p145 = pneg %p102
      $region14: #{tpu_custom_call.1} parent=11 // pred_check_branch
        %147 = sbr.rel (%p145) target = $region16
      $region15: #{tpu_custom_call.1} parent=11 // pred_region
        _
      $region16: #{tpu_custom_call.1} parent=11 // pred_fallthru
        _
    $region12: #{tpu_custom_call.1} parent=5 // pred_fallthru
      _
    %p148 = scmp.lt.s32.totalorder %s9, 2
    // Predicated region
    $region17: #{tpu_custom_call.1} parent=5 // pred_check
      %p149 = pneg %p148
    $region18: #{tpu_custom_call.1} parent=5 // pred_check_branch
      %151 = sbr.rel (%p149) target = $region20
    $region19: #{tpu_custom_call.1} parent=5 // pred_region
      // Predicated region
      $region21: #{tpu_custom_call.1} parent=19 // pred_check
        %p152 = pneg %p43
      $region22: #{tpu_custom_call.1} parent=19 // pred_check_branch
        %154 = sbr.rel (%p152) target = $region24
      $region23: #{tpu_custom_call.1} parent=19 // pred_region
        %s155 = smul.u32 64, %s17
        %s156 = ssub.s32 72, %s155
        %p157 = scmp.lt.s32.totalorder %s156, 64
        %s158 = scalar_select %p157, %s156, 64
        %s159 = smul.u32 64, %s158
        %p160 = scmp.lt.s32.totalorder %s16, 1
        %s161 = scalar_select %p160, %s16, 1
        %p162 = scmp.lt.s32.totalorder %s155, 71
        %s163 = scalar_select %p162, %s155, 71
        %s164 = smul.addr %s161, 72
        %s165 = sadd.s32 %s163, %s164
        %s166 = smul.addr %s165, 4
        %s167 = scalar_lea.vmem %s0, %s166
        %s168 = smul.u32 64, %s17
        %s169 = ssub.s32 72, %s168
        %p170 = scmp.lt.s32.totalorder %s169, 64
        %s171 = scalar_select %p170, %s169, 64
        %s172 = smul.u32 64, %s171
      $region24: #{tpu_custom_call.1} parent=19 // pred_fallthru
        _
      // Predicated region
      $region25: #{tpu_custom_call.1} parent=19 // pred_check
        %p173 = pneg %p75
      $region26: #{tpu_custom_call.1} parent=19 // pred_check_branch
        %175 = sbr.rel (%p173) target = $region28
      $region27: #{tpu_custom_call.1} parent=19 // pred_region
        %s176 = sadd.s32 %s17, 1
        %s177 = smul.u32 %s176, 8
        %s178 = smul.u32 8, %s177
        %p179 = scmp.lt.s32.totalorder %s16, 1
        %s180 = scalar_select %p179, %s16, 1
        %p181 = scmp.lt.s32.totalorder %s178, 71
        %s182 = scalar_select %p181, %s178, 71
        %s183 = smul.addr %s180, 72
        %s184 = sadd.s32 %s182, %s183
        %s185 = smul.addr %s184, 4
        %s186 = scalar_lea.vmem %s1, %s185
        %s187 = sadd.s32 %s17, 1
        %s188 = smul.u32 %s187, 8
        %s189 = smul.u32 8, %s188
      $region28: #{tpu_custom_call.1} parent=19 // pred_fallthru
        _
    $region20: #{tpu_custom_call.1} parent=5 // pred_fallthru
      _
    %p190 = scmp.le.s32.totalorder 1, %s9
    %p191 = scmp.lt.s32.totalorder %s9, 3
    %p192 = pnand %p190, %p191
    %p193 = pneg %p192
    // Predicated region
    $region29: #{tpu_custom_call.1} parent=5 // pred_check
      _
    $region30: #{tpu_custom_call.1} parent=5 // pred_check_branch
      %195 = sbr.rel (%p192) target = $region32
    $region31: #{tpu_custom_call.1} parent=5 // pred_region
      %s196 = ssub.s32 %s9, 1
      %s197 = smul.u32 64, %s19
      %s198 = ssub.s32 72, %s197
      %p199 = scmp.lt.s32.totalorder %s198, 64
      %s200 = scalar_select %p199, %s198, 64
      %s201 = smul.u32 64, %s200
      %p202 = scmp.lt.s32.totalorder %s18, 1
      %s203 = scalar_select %p202, %s18, 1
      %p204 = scmp.lt.s32.totalorder %s197, 71
      %s205 = scalar_select %p204, %s197, 71
      %s206 = smul.addr %s203, 72
      %s207 = sadd.s32 %s205, %s206
      %s208 = smul.addr %s207, 4
      %s209 = scalar_lea.vmem %s0, %s208
      %p210 = pneg %p49
      %p211 = pneg %p46
      %s212 = sadd.s32 %s19, 1
      %s213 = smul.u32 %s212, 8
      %s214 = smul.u32 8, %s213
      %p215 = scmp.lt.s32.totalorder %s18, 1
      %s216 = scalar_select %p215, %s18, 1
      %p217 = scmp.lt.s32.totalorder %s214, 71
      %s218 = scalar_select %p217, %s214, 71
      %s219 = smul.addr %s216, 72
      %s220 = sadd.s32 %s218, %s219
      %s221 = smul.addr %s220, 4
      %s222 = scalar_lea.vmem %s1, %s221
      %p223 = pneg %p81
      %p224 = pneg %p78
      %p225 = pneg %p102
      %p226 = pneg %p99
      %p227 = pneg %p130
      %p228 = pneg %p127
      %s229 = smul.u32 64, %s19
      %p230 = scmp.lt.s32.totalorder %s18, 1
      %s231 = scalar_select %p230, %s18, 1
      %p232 = scmp.lt.s32.totalorder %s229, 63
      %s233 = scalar_select %p232, %s229, 63
      %s234 = smul.addr %s231, 64
      %s235 = sadd.s32 %s233, %s234
      %s236 = smul.addr %s235, 4
      %s237 = scalar_lea.vmem %s3, %s236
      %s238 = smul.u32 64, %s19
      %s239 = ssub.s32 72, %s238
      %p240 = scmp.lt.s32.totalorder %s239, 64
      %s241 = scalar_select %p240, %s239, 64
      %s242 = smul.u32 64, %s241
      %p243 = scmp.lt.s32.totalorder %s18, 1
      %s244 = scalar_select %p243, %s18, 1
      %p245 = scmp.lt.s32.totalorder %s238, 71
      %s246 = scalar_select %p245, %s238, 71
      %s247 = smul.addr %s244, 72
      %s248 = sadd.s32 %s246, %s247
      %s249 = smul.addr %s248, 4
      %s250 = scalar_lea.vmem %s0, %s249
      %s251 = smul.u32 64, %s19
      %s252 = ssub.s32 72, %s251
      %p253 = scmp.lt.s32.totalorder %s252, 64
      %s254 = scalar_select %p253, %s252, 64
      %s255 = smul.u32 64, %s254
      %s256 = sadd.s32 %s19, 1
      %s257 = smul.u32 %s256, 8
      %s258 = smul.u32 8, %s257
      %p259 = scmp.lt.s32.totalorder %s18, 1
      %s260 = scalar_select %p259, %s18, 1
      %p261 = scmp.lt.s32.totalorder %s258, 71
      %s262 = scalar_select %p261, %s258, 71
      %s263 = smul.addr %s260, 72
      %s264 = sadd.s32 %s262, %s263
      %s265 = smul.addr %s264, 4
      %s266 = scalar_lea.vmem %s1, %s265
      %s267 = sadd.s32 %s19, 1
      %s268 = smul.u32 %s267, 8
      %s269 = smul.u32 8, %s268
      %s270 = smul.u32 64, %s19
      %p271 = scmp.lt.s32.totalorder %s18, 1
      %s272 = scalar_select %p271, %s18, 1
      %p273 = scmp.lt.s32.totalorder %s270, 63
      %s274 = scalar_select %p273, %s270, 63
      %s275 = smul.addr %s272, 64
      %s276 = sadd.s32 %s274, %s275
      %s277 = smul.addr %s276, 4
      %s278 = scalar_lea.vmem %s3, %s277
      %s279 = smul.u32 64, %s19
      %v281 = vld [vmem:[%s250] sm:$0xf]
      %v282 = vld [vmem:[%s250 + $0x4] sm:$0xf]
      %v283 = vld [vmem:[%s250 + $0x8] sm:$0xf]
      %v284 = vld [vmem:[%s250 + $0xc] sm:$0xf]
      %v285 = vld [vmem:[%s250 + $0x10] sm:$0xf]
      %v286 = vld [vmem:[%s250 + $0x14] sm:$0xf]
      %v287 = vld [vmem:[%s250 + $0x18] sm:$0xf]
      %v288 = vld [vmem:[%s250 + $0x1c] sm:$0xf]
      %v289 = vld [vmem:[%s250 + $0x20] sm:$0xf]
      %v290 = vld [vmem:[%s250 + $0x24] sm:$0xf]
      %v291 = vld [vmem:[%s250 + $0x28] sm:$0xf]
      %v292 = vld [vmem:[%s250 + $0x2c] sm:$0xf]
      %v293 = vld [vmem:[%s250 + $0x30] sm:$0xf]
      %v294 = vld [vmem:[%s250 + $0x34] sm:$0xf]
      %v295 = vld [vmem:[%s250 + $0x38] sm:$0xf]
      %v296 = vld [vmem:[%s250 + $0x3c] sm:$0xf]
      %v297 = vld [vmem:[%s250 + $0x40] sm:$0xf]
      %v298 = vld [vmem:[%s250 + $0x44] sm:$0xf]
      %v299 = vld [vmem:[%s250 + $0x48] sm:$0xf]
      %v300 = vld [vmem:[%s250 + $0x4c] sm:$0xf]
      %v301 = vld [vmem:[%s250 + $0x50] sm:$0xf]
      %v302 = vld [vmem:[%s250 + $0x54] sm:$0xf]
      %v303 = vld [vmem:[%s250 + $0x58] sm:$0xf]
      %v304 = vld [vmem:[%s250 + $0x5c] sm:$0xf]
      %v305 = vld [vmem:[%s250 + $0x60] sm:$0xf]
      %v306 = vld [vmem:[%s250 + $0x64] sm:$0xf]
      %v307 = vld [vmem:[%s250 + $0x68] sm:$0xf]
      %v308 = vld [vmem:[%s250 + $0x6c] sm:$0xf]
      %v309 = vld [vmem:[%s250 + $0x70] sm:$0xf]
      %v310 = vld [vmem:[%s250 + $0x74] sm:$0xf]
      %v311 = vld [vmem:[%s250 + $0x78] sm:$0xf]
      %v312 = vld [vmem:[%s250 + $0x7c] sm:$0xf]
      %v313 = vld [vmem:[%s250 + $0x80] sm:$0xf]
      %v314 = vld [vmem:[%s250 + $0x84] sm:$0xf]
      %v315 = vld [vmem:[%s250 + $0x88] sm:$0xf]
      %v316 = vld [vmem:[%s250 + $0x8c] sm:$0xf]
      %v317 = vld [vmem:[%s250 + $0x90] sm:$0xf]
      %v318 = vld [vmem:[%s250 + $0x94] sm:$0xf]
      %v319 = vld [vmem:[%s250 + $0x98] sm:$0xf]
      %v320 = vld [vmem:[%s250 + $0x9c] sm:$0xf]
      %v321 = vld [vmem:[%s250 + $0xa0] sm:$0xf]
      %v322 = vld [vmem:[%s250 + $0xa4] sm:$0xf]
      %v323 = vld [vmem:[%s250 + $0xa8] sm:$0xf]
      %v324 = vld [vmem:[%s250 + $0xac] sm:$0xf]
      %v325 = vld [vmem:[%s250 + $0xb0] sm:$0xf]
      %v326 = vld [vmem:[%s250 + $0xb4] sm:$0xf]
      %v327 = vld [vmem:[%s250 + $0xb8] sm:$0xf]
      %v328 = vld [vmem:[%s250 + $0xbc] sm:$0xf]
      %v329 = vld [vmem:[%s250 + $0xc0] sm:$0xf]
      %v330 = vld [vmem:[%s250 + $0xc4] sm:$0xf]
      %v331 = vld [vmem:[%s250 + $0xc8] sm:$0xf]
      %v332 = vld [vmem:[%s250 + $0xcc] sm:$0xf]
      %v333 = vld [vmem:[%s250 + $0xd0] sm:$0xf]
      %v334 = vld [vmem:[%s250 + $0xd4] sm:$0xf]
      %v335 = vld [vmem:[%s250 + $0xd8] sm:$0xf]
      %v336 = vld [vmem:[%s250 + $0xdc] sm:$0xf]
      %v337 = vld [vmem:[%s250 + $0xe0] sm:$0xf]
      %v338 = vld [vmem:[%s250 + $0xe4] sm:$0xf]
      %v339 = vld [vmem:[%s250 + $0xe8] sm:$0xf]
      %v340 = vld [vmem:[%s250 + $0xec] sm:$0xf]
      %v341 = vld [vmem:[%s250 + $0xf0] sm:$0xf]
      %v342 = vld [vmem:[%s250 + $0xf4] sm:$0xf]
      %v343 = vld [vmem:[%s250 + $0xf8] sm:$0xf]
      %v344 = vld [vmem:[%s250 + $0xfc] sm:$0xf]
      %v345 = vld [vmem:[%s266] sm:$0xf]
      %v346 = vld [vmem:[%s266 + $0x4] sm:$0xf]
      %v347 = vld [vmem:[%s266 + $0x8] sm:$0xf]
      %v348 = vld [vmem:[%s266 + $0xc] sm:$0xf]
      %v349 = vld [vmem:[%s266 + $0x10] sm:$0xf]
      %v350 = vld [vmem:[%s266 + $0x14] sm:$0xf]
      %v351 = vld [vmem:[%s266 + $0x18] sm:$0xf]
      %v352 = vld [vmem:[%s266 + $0x1c] sm:$0xf]
      %v417 = vunpack.c.l.b16 %v281
      %v418 = vunpack.c.l.b16 %v282
      %v419 = vunpack.c.l.b16 %v283
      %v420 = vunpack.c.l.b16 %v284
      %v421 = vunpack.c.l.b16 %v285
      %v422 = vunpack.c.l.b16 %v286
      %v423 = vunpack.c.l.b16 %v287
      %v424 = vunpack.c.l.b16 %v288
      %v425 = vunpack.c.l.b16 %v289
      %v426 = vunpack.c.l.b16 %v290
      %v427 = vunpack.c.l.b16 %v291
      %v428 = vunpack.c.l.b16 %v292
      %v429 = vunpack.c.l.b16 %v293
      %v430 = vunpack.c.l.b16 %v294
      %v431 = vunpack.c.l.b16 %v295
      %v432 = vunpack.c.l.b16 %v296
      %v433 = vunpack.c.l.b16 %v297
      %v434 = vunpack.c.l.b16 %v298
      %v435 = vunpack.c.l.b16 %v299
      %v436 = vunpack.c.l.b16 %v300
      %v437 = vunpack.c.l.b16 %v301
      %v438 = vunpack.c.l.b16 %v302
      %v439 = vunpack.c.l.b16 %v303
      %v440 = vunpack.c.l.b16 %v304
      %v441 = vunpack.c.l.b16 %v305
      %v442 = vunpack.c.l.b16 %v306
      %v443 = vunpack.c.l.b16 %v307
      %v444 = vunpack.c.l.b16 %v308
      %v445 = vunpack.c.l.b16 %v309
      %v446 = vunpack.c.l.b16 %v310
      %v447 = vunpack.c.l.b16 %v311
      %v448 = vunpack.c.l.b16 %v312
      %v449 = vunpack.c.l.b16 %v313
      %v450 = vunpack.c.l.b16 %v314
      %v451 = vunpack.c.l.b16 %v315
      %v452 = vunpack.c.l.b16 %v316
      %v453 = vunpack.c.l.b16 %v317
      %v454 = vunpack.c.l.b16 %v318
      %v455 = vunpack.c.l.b16 %v319
      %v456 = vunpack.c.l.b16 %v320
      %v457 = vunpack.c.l.b16 %v321
      %v458 = vunpack.c.l.b16 %v322
      %v459 = vunpack.c.l.b16 %v323
      %v460 = vunpack.c.l.b16 %v324
      %v461 = vunpack.c.l.b16 %v325
      %v462 = vunpack.c.l.b16 %v326
      %v463 = vunpack.c.l.b16 %v327
      %v464 = vunpack.c.l.b16 %v328
      %v465 = vunpack.c.l.b16 %v329
      %v466 = vunpack.c.l.b16 %v330
      %v467 = vunpack.c.l.b16 %v331
      %v468 = vunpack.c.l.b16 %v332
      %v469 = vunpack.c.l.b16 %v333
      %v470 = vunpack.c.l.b16 %v334
      %v471 = vunpack.c.l.b16 %v335
      %v472 = vunpack.c.l.b16 %v336
      %v473 = vunpack.c.l.b16 %v337
      %v474 = vunpack.c.l.b16 %v338
      %v475 = vunpack.c.l.b16 %v339
      %v476 = vunpack.c.l.b16 %v340
      %v477 = vunpack.c.l.b16 %v341
      %v478 = vunpack.c.l.b16 %v342
      %v479 = vunpack.c.l.b16 %v343
      %v480 = vunpack.c.l.b16 %v344
      %v489 = vunpack.c.l.b16 %v345
      %v490 = vunpack.c.l.b16 %v346
      %v491 = vunpack.c.l.b16 %v347
      %v492 = vunpack.c.l.b16 %v348
      %v493 = vunpack.c.l.b16 %v349
      %v494 = vunpack.c.l.b16 %v350
      %v495 = vunpack.c.l.b16 %v351
      %v496 = vunpack.c.l.b16 %v352
      %v497 = vpack.c.b16 %v417, %v417
      %v498 = vpack.c.b16 %v418, %v418
      %v499 = vpack.c.b16 %v419, %v419
      %v500 = vpack.c.b16 %v420, %v420
      %v501 = vpack.c.b16 %v421, %v421
      %v502 = vpack.c.b16 %v422, %v422
      %v503 = vpack.c.b16 %v423, %v423
      %v504 = vpack.c.b16 %v424, %v424
      %v505 = vpack.c.b16 %v425, %v425
      %v506 = vpack.c.b16 %v426, %v426
      %v507 = vpack.c.b16 %v427, %v427
      %v508 = vpack.c.b16 %v428, %v428
      %v509 = vpack.c.b16 %v429, %v429
      %v510 = vpack.c.b16 %v430, %v430
      %v511 = vpack.c.b16 %v431, %v431
      %v512 = vpack.c.b16 %v432, %v432
      %v513 = vpack.c.b16 %v433, %v433
      %v514 = vpack.c.b16 %v434, %v434
      %v515 = vpack.c.b16 %v435, %v435
      %v516 = vpack.c.b16 %v436, %v436
      %v517 = vpack.c.b16 %v437, %v437
      %v518 = vpack.c.b16 %v438, %v438
      %v519 = vpack.c.b16 %v439, %v439
      %v520 = vpack.c.b16 %v440, %v440
      %v521 = vpack.c.b16 %v441, %v441
      %v522 = vpack.c.b16 %v442, %v442
      %v523 = vpack.c.b16 %v443, %v443
      %v524 = vpack.c.b16 %v444, %v444
      %v525 = vpack.c.b16 %v445, %v445
      %v526 = vpack.c.b16 %v446, %v446
      %v527 = vpack.c.b16 %v447, %v447
      %v528 = vpack.c.b16 %v448, %v448
      %v529 = vpack.c.b16 %v449, %v449
      %v530 = vpack.c.b16 %v450, %v450
      %v531 = vpack.c.b16 %v451, %v451
      %v532 = vpack.c.b16 %v452, %v452
      %v533 = vpack.c.b16 %v453, %v453
      %v534 = vpack.c.b16 %v454, %v454
      %v535 = vpack.c.b16 %v455, %v455
      %v536 = vpack.c.b16 %v456, %v456
      %v537 = vpack.c.b16 %v457, %v457
      %v538 = vpack.c.b16 %v458, %v458
      %v539 = vpack.c.b16 %v459, %v459
      %v540 = vpack.c.b16 %v460, %v460
      %v541 = vpack.c.b16 %v461, %v461
      %v542 = vpack.c.b16 %v462, %v462
      %v543 = vpack.c.b16 %v463, %v463
      %v544 = vpack.c.b16 %v464, %v464
      %v545 = vpack.c.b16 %v465, %v465
      %v546 = vpack.c.b16 %v466, %v466
      %v547 = vpack.c.b16 %v467, %v467
      %v548 = vpack.c.b16 %v468, %v468
      %v549 = vpack.c.b16 %v469, %v469
      %v550 = vpack.c.b16 %v470, %v470
      %v551 = vpack.c.b16 %v471, %v471
      %v552 = vpack.c.b16 %v472, %v472
      %v553 = vpack.c.b16 %v473, %v473
      %v554 = vpack.c.b16 %v474, %v474
      %v555 = vpack.c.b16 %v475, %v475
      %v556 = vpack.c.b16 %v476, %v476
      %v557 = vpack.c.b16 %v477, %v477
      %v558 = vpack.c.b16 %v478, %v478
      %v559 = vpack.c.b16 %v479, %v479
      %v560 = vpack.c.b16 %v480, %v480
      %v561 = vpack.c.b16 %v489, %v489
      %v562 = vpack.c.b16 %v490, %v490
      %v563 = vpack.c.b16 %v491, %v491
      %v564 = vpack.c.b16 %v492, %v492
      %v565 = vpack.c.b16 %v493, %v493
      %v566 = vpack.c.b16 %v494, %v494
      %v567 = vpack.c.b16 %v495, %v495
      %v568 = vpack.c.b16 %v496, %v496
      %vm641 = vcmask 519168
      %642 = vst.msk [vmem:[#allocation2] sm:$0xf] %vm641, %v497
      %643 = vst.msk [vmem:[#allocation2 + $0x8] sm:$0xf] %vm641, %v498
      %644 = vst.msk [vmem:[#allocation2 + $0x10] sm:$0xf] %vm641, %v499
      %645 = vst.msk [vmem:[#allocation2 + $0x18] sm:$0xf] %vm641, %v500
      %646 = vst.msk [vmem:[#allocation2 + $0x20] sm:$0xf] %vm641, %v501
      %647 = vst.msk [vmem:[#allocation2 + $0x28] sm:$0xf] %vm641, %v502
      %648 = vst.msk [vmem:[#allocation2 + $0x30] sm:$0xf] %vm641, %v503
      %649 = vst.msk [vmem:[#allocation2 + $0x38] sm:$0xf] %vm641, %v504
      %650 = vst.msk [vmem:[#allocation2 + $0x40] sm:$0xf] %vm641, %v505
      %651 = vst.msk [vmem:[#allocation2 + $0x48] sm:$0xf] %vm641, %v506
      %652 = vst.msk [vmem:[#allocation2 + $0x50] sm:$0xf] %vm641, %v507
      %653 = vst.msk [vmem:[#allocation2 + $0x58] sm:$0xf] %vm641, %v508
      %654 = vst.msk [vmem:[#allocation2 + $0x60] sm:$0xf] %vm641, %v509
      %655 = vst.msk [vmem:[#allocation2 + $0x68] sm:$0xf] %vm641, %v510
      %656 = vst.msk [vmem:[#allocation2 + $0x70] sm:$0xf] %vm641, %v511
      %657 = vst.msk [vmem:[#allocation2 + $0x78] sm:$0xf] %vm641, %v512
      %658 = vst.msk [vmem:[#allocation2 + $0x80] sm:$0xf] %vm641, %v513
      %659 = vst.msk [vmem:[#allocation2 + $0x88] sm:$0xf] %vm641, %v514
      %660 = vst.msk [vmem:[#allocation2 + $0x90] sm:$0xf] %vm641, %v515
      %661 = vst.msk [vmem:[#allocation2 + $0x98] sm:$0xf] %vm641, %v516
      %662 = vst.msk [vmem:[#allocation2 + $0xa0] sm:$0xf] %vm641, %v517
      %663 = vst.msk [vmem:[#allocation2 + $0xa8] sm:$0xf] %vm641, %v518
      %664 = vst.msk [vmem:[#allocation2 + $0xb0] sm:$0xf] %vm641, %v519
      %665 = vst.msk [vmem:[#allocation2 + $0xb8] sm:$0xf] %vm641, %v520
      %666 = vst.msk [vmem:[#allocation2 + $0xc0] sm:$0xf] %vm641, %v521
      %667 = vst.msk [vmem:[#allocation2 + $0xc8] sm:$0xf] %vm641, %v522
      %668 = vst.msk [vmem:[#allocation2 + $0xd0] sm:$0xf] %vm641, %v523
      %669 = vst.msk [vmem:[#allocation2 + $0xd8] sm:$0xf] %vm641, %v524
      %670 = vst.msk [vmem:[#allocation2 + $0xe0] sm:$0xf] %vm641, %v525
      %671 = vst.msk [vmem:[#allocation2 + $0xe8] sm:$0xf] %vm641, %v526
      %672 = vst.msk [vmem:[#allocation2 + $0xf0] sm:$0xf] %vm641, %v527
      %673 = vst.msk [vmem:[#allocation2 + $0xf8] sm:$0xf] %vm641, %v528
      %674 = vst.msk [vmem:[#allocation2 + $0x100] sm:$0xf] %vm641, %v529
      %675 = vst.msk [vmem:[#allocation2 + $0x108] sm:$0xf] %vm641, %v530
      %676 = vst.msk [vmem:[#allocation2 + $0x110] sm:$0xf] %vm641, %v531
      %677 = vst.msk [vmem:[#allocation2 + $0x118] sm:$0xf] %vm641, %v532
      %678 = vst.msk [vmem:[#allocation2 + $0x120] sm:$0xf] %vm641, %v533
      %679 = vst.msk [vmem:[#allocation2 + $0x128] sm:$0xf] %vm641, %v534
      %680 = vst.msk [vmem:[#allocation2 + $0x130] sm:$0xf] %vm641, %v535
      %681 = vst.msk [vmem:[#allocation2 + $0x138] sm:$0xf] %vm641, %v536
      %682 = vst.msk [vmem:[#allocation2 + $0x140] sm:$0xf] %vm641, %v537
      %683 = vst.msk [vmem:[#allocation2 + $0x148] sm:$0xf] %vm641, %v538
      %684 = vst.msk [vmem:[#allocation2 + $0x150] sm:$0xf] %vm641, %v539
      %685 = vst.msk [vmem:[#allocation2 + $0x158] sm:$0xf] %vm641, %v540
      %686 = vst.msk [vmem:[#allocation2 + $0x160] sm:$0xf] %vm641, %v541
      %687 = vst.msk [vmem:[#allocation2 + $0x168] sm:$0xf] %vm641, %v542
      %688 = vst.msk [vmem:[#allocation2 + $0x170] sm:$0xf] %vm641, %v543
      %689 = vst.msk [vmem:[#allocation2 + $0x178] sm:$0xf] %vm641, %v544
      %690 = vst.msk [vmem:[#allocation2 + $0x180] sm:$0xf] %vm641, %v545
      %691 = vst.msk [vmem:[#allocation2 + $0x188] sm:$0xf] %vm641, %v546
      %692 = vst.msk [vmem:[#allocation2 + $0x190] sm:$0xf] %vm641, %v547
      %693 = vst.msk [vmem:[#allocation2 + $0x198] sm:$0xf] %vm641, %v548
      %694 = vst.msk [vmem:[#allocation2 + $0x1a0] sm:$0xf] %vm641, %v549
      %695 = vst.msk [vmem:[#allocation2 + $0x1a8] sm:$0xf] %vm641, %v550
      %696 = vst.msk [vmem:[#allocation2 + $0x1b0] sm:$0xf] %vm641, %v551
      %697 = vst.msk [vmem:[#allocation2 + $0x1b8] sm:$0xf] %vm641, %v552
      %698 = vst.msk [vmem:[#allocation2 + $0x1c0] sm:$0xf] %vm641, %v553
      %699 = vst.msk [vmem:[#allocation2 + $0x1c8] sm:$0xf] %vm641, %v554
      %700 = vst.msk [vmem:[#allocation2 + $0x1d0] sm:$0xf] %vm641, %v555
      %701 = vst.msk [vmem:[#allocation2 + $0x1d8] sm:$0xf] %vm641, %v556
      %702 = vst.msk [vmem:[#allocation2 + $0x1e0] sm:$0xf] %vm641, %v557
      %703 = vst.msk [vmem:[#allocation2 + $0x1e8] sm:$0xf] %vm641, %v558
      %704 = vst.msk [vmem:[#allocation2 + $0x1f0] sm:$0xf] %vm641, %v559
      %705 = vst.msk [vmem:[#allocation2 + $0x1f8] sm:$0xf] %vm641, %v560
      %706 = vst.msk [vmem:[#allocation2 + $0x200] sm:$0xf] %vm641, %v561
      %707 = vst.msk [vmem:[#allocation2 + $0x208] sm:$0xf] %vm641, %v562
      %708 = vst.msk [vmem:[#allocation2 + $0x210] sm:$0xf] %vm641, %v563
      %709 = vst.msk [vmem:[#allocation2 + $0x218] sm:$0xf] %vm641, %v564
      %710 = vst.msk [vmem:[#allocation2 + $0x220] sm:$0xf] %vm641, %v565
      %711 = vst.msk [vmem:[#allocation2 + $0x228] sm:$0xf] %vm641, %v566
      %712 = vst.msk [vmem:[#allocation2 + $0x230] sm:$0xf] %vm641, %v567
      %713 = vst.msk [vmem:[#allocation2 + $0x238] sm:$0xf] %vm641, %v568
      %v715 = vunpack.c.l.b16 0
      %v716 = vpack.c.b16 %v715, %v715
      %vm717 = vsmask.f32 3328
      %vm718 = vsmask.f32 7440
      %vm719 = vmor %vm717, %vm718
      %v721 = vshrl.u32 %v497, 16
      %v723 = vrot.slane %v721, 4
      %v724 = vshll.u32 %v497, 16
      %v726 = vrot.slane %v724, 5
      %v727 = vor.u32 %v723, %v726
      %v728 = vrot.slane %v727, 4
      %v730 = vshll.u32 %v498, 16
      %v732 = vrot.slane %v730, 5
      %v733 = vsel %vm719, %v728, %v732
      %v734 = vshrl.u32 %v498, 16
      %v736 = vrot.slane %v734, 4
      %v737 = vor.u32 %v736, %v732
      %v738 = vrot.slane %v737, 4
      %v740 = vshll.u32 %v499, 16
      %v742 = vrot.slane %v740, 5
      %v743 = vsel %vm719, %v738, %v742
      %v744 = vshrl.u32 %v499, 16
      %v746 = vrot.slane %v744, 4
      %v747 = vor.u32 %v746, %v742
      %v748 = vrot.slane %v747, 4
      %v750 = vshll.u32 %v500, 16
      %v752 = vrot.slane %v750, 5
      %v753 = vsel %vm719, %v748, %v752
      %v754 = vshrl.u32 %v500, 16
      %v756 = vrot.slane %v754, 4
      %v757 = vor.u32 %v756, %v752
      %v758 = vrot.slane %v757, 4
      %v760 = vshll.u32 %v501, 16
      %v762 = vrot.slane %v760, 5
      %v763 = vsel %vm719, %v758, %v762
      %v764 = vshrl.u32 %v501, 16
      %v766 = vrot.slane %v764, 4
      %v767 = vor.u32 %v766, %v762
      %v768 = vrot.slane %v767, 4
      %v770 = vshll.u32 %v502, 16
      %v772 = vrot.slane %v770, 5
      %v773 = vsel %vm719, %v768, %v772
      %v774 = vshrl.u32 %v502, 16
      %v776 = vrot.slane %v774, 4
      %v777 = vor.u32 %v776, %v772
      %v778 = vrot.slane %v777, 4
      %v780 = vshll.u32 %v503, 16
      %v782 = vrot.slane %v780, 5
      %v783 = vsel %vm719, %v778, %v782
      %v784 = vshrl.u32 %v503, 16
      %v786 = vrot.slane %v784, 4
      %v787 = vor.u32 %v786, %v782
      %v788 = vrot.slane %v787, 4
      %v790 = vshll.u32 %v504, 16
      %v792 = vrot.slane %v790, 5
      %v793 = vsel %vm719, %v788, %v792
      %v794 = vshrl.u32 %v504, 16
      %v796 = vrot.slane %v794, 4
      %v797 = vor.u32 %v796, %v792
      %v798 = vrot.slane %v797, 4
      %v800 = vshll.u32 %v505, 16
      %v802 = vrot.slane %v800, 5
      %v803 = vsel %vm719, %v798, %v802
      %v804 = vshrl.u32 %v505, 16
      %v806 = vrot.slane %v804, 4
      %v807 = vor.u32 %v806, %v802
      %v808 = vrot.slane %v807, 4
      %v810 = vshll.u32 %v506, 16
      %v812 = vrot.slane %v810, 5
      %v813 = vsel %vm719, %v808, %v812
      %v814 = vshrl.u32 %v506, 16
      %v816 = vrot.slane %v814, 4
      %v817 = vor.u32 %v816, %v812
      %v818 = vrot.slane %v817, 4
      %v820 = vshll.u32 %v507, 16
      %v822 = vrot.slane %v820, 5
      %v823 = vsel %vm719, %v818, %v822
      %v824 = vshrl.u32 %v507, 16
      %v826 = vrot.slane %v824, 4
      %v827 = vor.u32 %v826, %v822
      %v828 = vrot.slane %v827, 4
      %v830 = vshll.u32 %v508, 16
      %v832 = vrot.slane %v830, 5
      %v833 = vsel %vm719, %v828, %v832
      %v834 = vshrl.u32 %v508, 16
      %v836 = vrot.slane %v834, 4
      %v837 = vor.u32 %v836, %v832
      %v838 = vrot.slane %v837, 4
      %v840 = vshll.u32 %v509, 16
      %v842 = vrot.slane %v840, 5
      %v843 = vsel %vm719, %v838, %v842
      %v844 = vshrl.u32 %v509, 16
      %v846 = vrot.slane %v844, 4
      %v847 = vor.u32 %v846, %v842
      %v848 = vrot.slane %v847, 4
      %v850 = vshll.u32 %v510, 16
      %v852 = vrot.slane %v850, 5
      %v853 = vsel %vm719, %v848, %v852
      %v854 = vshrl.u32 %v510, 16
      %v856 = vrot.slane %v854, 4
      %v857 = vor.u32 %v856, %v852
      %v858 = vrot.slane %v857, 4
      %v860 = vshll.u32 %v511, 16
      %v862 = vrot.slane %v860, 5
      %v863 = vsel %vm719, %v858, %v862
      %v864 = vshrl.u32 %v511, 16
      %v866 = vrot.slane %v864, 4
      %v867 = vor.u32 %v866, %v862
      %v868 = vrot.slane %v867, 4
      %v870 = vshll.u32 %v512, 16
      %v872 = vrot.slane %v870, 5
      %v873 = vsel %vm719, %v868, %v872
      %v874 = vshrl.u32 %v512, 16
      %v876 = vrot.slane %v874, 4
      %v877 = vor.u32 %v876, %v872
      %v878 = vrot.slane %v877, 4
      %v880 = vshll.u32 %v513, 16
      %v882 = vrot.slane %v880, 5
      %v883 = vsel %vm719, %v878, %v882
      %v884 = vshrl.u32 %v513, 16
      %v886 = vrot.slane %v884, 4
      %v887 = vor.u32 %v886, %v882
      %v888 = vrot.slane %v887, 4
      %v890 = vshll.u32 %v514, 16
      %v892 = vrot.slane %v890, 5
      %v893 = vsel %vm719, %v888, %v892
      %v894 = vshrl.u32 %v514, 16
      %v896 = vrot.slane %v894, 4
      %v897 = vor.u32 %v896, %v892
      %v898 = vrot.slane %v897, 4
      %v900 = vshll.u32 %v515, 16
      %v902 = vrot.slane %v900, 5
      %v903 = vsel %vm719, %v898, %v902
      %v904 = vshrl.u32 %v515, 16
      %v906 = vrot.slane %v904, 4
      %v907 = vor.u32 %v906, %v902
      %v908 = vrot.slane %v907, 4
      %v910 = vshll.u32 %v516, 16
      %v912 = vrot.slane %v910, 5
      %v913 = vsel %vm719, %v908, %v912
      %v914 = vshrl.u32 %v516, 16
      %v916 = vrot.slane %v914, 4
      %v917 = vor.u32 %v916, %v912
      %v918 = vrot.slane %v917, 4
      %v920 = vshll.u32 %v517, 16
      %v922 = vrot.slane %v920, 5
      %v923 = vsel %vm719, %v918, %v922
      %v924 = vshrl.u32 %v517, 16
      %v926 = vrot.slane %v924, 4
      %v927 = vor.u32 %v926, %v922
      %v928 = vrot.slane %v927, 4
      %v930 = vshll.u32 %v518, 16
      %v932 = vrot.slane %v930, 5
      %v933 = vsel %vm719, %v928, %v932
      %v934 = vshrl.u32 %v518, 16
      %v936 = vrot.slane %v934, 4
      %v937 = vor.u32 %v936, %v932
      %v938 = vrot.slane %v937, 4
      %v940 = vshll.u32 %v519, 16
      %v942 = vrot.slane %v940, 5
      %v943 = vsel %vm719, %v938, %v942
      %v944 = vshrl.u32 %v519, 16
      %v946 = vrot.slane %v944, 4
      %v947 = vor.u32 %v946, %v942
      %v948 = vrot.slane %v947, 4
      %v950 = vshll.u32 %v520, 16
      %v952 = vrot.slane %v950, 5
      %v953 = vsel %vm719, %v948, %v952
      %v954 = vshrl.u32 %v520, 16
      %v956 = vrot.slane %v954, 4
      %v957 = vor.u32 %v956, %v952
      %v958 = vrot.slane %v957, 4
      %v960 = vshll.u32 %v521, 16
      %v962 = vrot.slane %v960, 5
      %v963 = vsel %vm719, %v958, %v962
      %v964 = vshrl.u32 %v521, 16
      %v966 = vrot.slane %v964, 4
      %v967 = vor.u32 %v966, %v962
      %v968 = vrot.slane %v967, 4
      %v970 = vshll.u32 %v522, 16
      %v972 = vrot.slane %v970, 5
      %v973 = vsel %vm719, %v968, %v972
      %v974 = vshrl.u32 %v522, 16
      %v976 = vrot.slane %v974, 4
      %v977 = vor.u32 %v976, %v972
      %v978 = vrot.slane %v977, 4
      %v980 = vshll.u32 %v523, 16
      %v982 = vrot.slane %v980, 5
      %v983 = vsel %vm719, %v978, %v982
      %v984 = vshrl.u32 %v523, 16
      %v986 = vrot.slane %v984, 4
      %v987 = vor.u32 %v986, %v982
      %v988 = vrot.slane %v987, 4
      %v990 = vshll.u32 %v524, 16
      %v992 = vrot.slane %v990, 5
      %v993 = vsel %vm719, %v988, %v992
      %v994 = vshrl.u32 %v524, 16
      %v996 = vrot.slane %v994, 4
      %v997 = vor.u32 %v996, %v992
      %v998 = vrot.slane %v997, 4
      %v1000 = vshll.u32 %v525, 16
      %v1002 = vrot.slane %v1000, 5
      %v1003 = vsel %vm719, %v998, %v1002
      %v1004 = vshrl.u32 %v525, 16
      %v1006 = vrot.slane %v1004, 4
      %v1007 = vor.u32 %v1006, %v1002
      %v1008 = vrot.slane %v1007, 4
      %v1010 = vshll.u32 %v526, 16
      %v1012 = vrot.slane %v1010, 5
      %v1013 = vsel %vm719, %v1008, %v1012
      %v1014 = vshrl.u32 %v526, 16
      %v1016 = vrot.slane %v1014, 4
      %v1017 = vor.u32 %v1016, %v1012
      %v1018 = vrot.slane %v1017, 4
      %v1020 = vshll.u32 %v527, 16
      %v1022 = vrot.slane %v1020, 5
      %v1023 = vsel %vm719, %v1018, %v1022
      %v1024 = vshrl.u32 %v527, 16
      %v1026 = vrot.slane %v1024, 4
      %v1027 = vor.u32 %v1026, %v1022
      %v1028 = vrot.slane %v1027, 4
      %v1030 = vshll.u32 %v528, 16
      %v1032 = vrot.slane %v1030, 5
      %v1033 = vsel %vm719, %v1028, %v1032
      %v1034 = vshrl.u32 %v528, 16
      %v1036 = vrot.slane %v1034, 4
      %v1037 = vor.u32 %v1036, %v1032
      %v1038 = vrot.slane %v1037, 4
      %v1040 = vshll.u32 %v529, 16
      %v1042 = vrot.slane %v1040, 5
      %v1043 = vsel %vm719, %v1038, %v1042
      %v1044 = vshrl.u32 %v529, 16
      %v1046 = vrot.slane %v1044, 4
      %v1047 = vor.u32 %v1046, %v1042
      %v1048 = vrot.slane %v1047, 4
      %v1050 = vshll.u32 %v530, 16
      %v1052 = vrot.slane %v1050, 5
      %v1053 = vsel %vm719, %v1048, %v1052
      %v1054 = vshrl.u32 %v530, 16
      %v1056 = vrot.slane %v1054, 4
      %v1057 = vor.u32 %v1056, %v1052
      %v1058 = vrot.slane %v1057, 4
      %v1060 = vshll.u32 %v531, 16
      %v1062 = vrot.slane %v1060, 5
      %v1063 = vsel %vm719, %v1058, %v1062
      %v1064 = vshrl.u32 %v531, 16
      %v1066 = vrot.slane %v1064, 4
      %v1067 = vor.u32 %v1066, %v1062
      %v1068 = vrot.slane %v1067, 4
      %v1070 = vshll.u32 %v532, 16
      %v1072 = vrot.slane %v1070, 5
      %v1073 = vsel %vm719, %v1068, %v1072
      %v1074 = vshrl.u32 %v532, 16
      %v1076 = vrot.slane %v1074, 4
      %v1077 = vor.u32 %v1076, %v1072
      %v1078 = vrot.slane %v1077, 4
      %v1080 = vshll.u32 %v533, 16
      %v1082 = vrot.slane %v1080, 5
      %v1083 = vsel %vm719, %v1078, %v1082
      %v1084 = vshrl.u32 %v533, 16
      %v1086 = vrot.slane %v1084, 4
      %v1087 = vor.u32 %v1086, %v1082
      %v1088 = vrot.slane %v1087, 4
      %v1090 = vshll.u32 %v534, 16
      %v1092 = vrot.slane %v1090, 5
      %v1093 = vsel %vm719, %v1088, %v1092
      %v1094 = vshrl.u32 %v534, 16
      %v1096 = vrot.slane %v1094, 4
      %v1097 = vor.u32 %v1096, %v1092
      %v1098 = vrot.slane %v1097, 4
      %v1100 = vshll.u32 %v535, 16
      %v1102 = vrot.slane %v1100, 5
      %v1103 = vsel %vm719, %v1098, %v1102
      %v1104 = vshrl.u32 %v535, 16
      %v1106 = vrot.slane %v1104, 4
      %v1107 = vor.u32 %v1106, %v1102
      %v1108 = vrot.slane %v1107, 4
      %v1110 = vshll.u32 %v536, 16
      %v1112 = vrot.slane %v1110, 5
      %v1113 = vsel %vm719, %v1108, %v1112
      %v1114 = vshrl.u32 %v536, 16
      %v1116 = vrot.slane %v1114, 4
      %v1117 = vor.u32 %v1116, %v1112
      %v1118 = vrot.slane %v1117, 4
      %v1120 = vshll.u32 %v537, 16
      %v1122 = vrot.slane %v1120, 5
      %v1123 = vsel %vm719, %v1118, %v1122
      %v1124 = vshrl.u32 %v537, 16
      %v1126 = vrot.slane %v1124, 4
      %v1127 = vor.u32 %v1126, %v1122
      %v1128 = vrot.slane %v1127, 4
      %v1130 = vshll.u32 %v538, 16
      %v1132 = vrot.slane %v1130, 5
      %v1133 = vsel %vm719, %v1128, %v1132
      %v1134 = vshrl.u32 %v538, 16
      %v1136 = vrot.slane %v1134, 4
      %v1137 = vor.u32 %v1136, %v1132
      %v1138 = vrot.slane %v1137, 4
      %v1140 = vshll.u32 %v539, 16
      %v1142 = vrot.slane %v1140, 5
      %v1143 = vsel %vm719, %v1138, %v1142
      %v1144 = vshrl.u32 %v539, 16
      %v1146 = vrot.slane %v1144, 4
      %v1147 = vor.u32 %v1146, %v1142
      %v1148 = vrot.slane %v1147, 4
      %v1150 = vshll.u32 %v540, 16
      %v1152 = vrot.slane %v1150, 5
      %v1153 = vsel %vm719, %v1148, %v1152
      %v1154 = vshrl.u32 %v540, 16
      %v1156 = vrot.slane %v1154, 4
      %v1157 = vor.u32 %v1156, %v1152
      %v1158 = vrot.slane %v1157, 4
      %v1160 = vshll.u32 %v541, 16
      %v1162 = vrot.slane %v1160, 5
      %v1163 = vsel %vm719, %v1158, %v1162
      %v1164 = vshrl.u32 %v541, 16
      %v1166 = vrot.slane %v1164, 4
      %v1167 = vor.u32 %v1166, %v1162
      %v1168 = vrot.slane %v1167, 4
      %v1170 = vshll.u32 %v542, 16
      %v1172 = vrot.slane %v1170, 5
      %v1173 = vsel %vm719, %v1168, %v1172
      %v1174 = vshrl.u32 %v542, 16
      %v1176 = vrot.slane %v1174, 4
      %v1177 = vor.u32 %v1176, %v1172
      %v1178 = vrot.slane %v1177, 4
      %v1180 = vshll.u32 %v543, 16
      %v1182 = vrot.slane %v1180, 5
      %v1183 = vsel %vm719, %v1178, %v1182
      %v1184 = vshrl.u32 %v543, 16
      %v1186 = vrot.slane %v1184, 4
      %v1187 = vor.u32 %v1186, %v1182
      %v1188 = vrot.slane %v1187, 4
      %v1190 = vshll.u32 %v544, 16
      %v1192 = vrot.slane %v1190, 5
      %v1193 = vsel %vm719, %v1188, %v1192
      %v1194 = vshrl.u32 %v544, 16
      %v1196 = vrot.slane %v1194, 4
      %v1197 = vor.u32 %v1196, %v1192
      %v1198 = vrot.slane %v1197, 4
      %v1200 = vshll.u32 %v545, 16
      %v1202 = vrot.slane %v1200, 5
      %v1203 = vsel %vm719, %v1198, %v1202
      %v1204 = vshrl.u32 %v545, 16
      %v1206 = vrot.slane %v1204, 4
      %v1207 = vor.u32 %v1206, %v1202
      %v1208 = vrot.slane %v1207, 4
      %v1210 = vshll.u32 %v546, 16
      %v1212 = vrot.slane %v1210, 5
      %v1213 = vsel %vm719, %v1208, %v1212
      %v1214 = vshrl.u32 %v546, 16
      %v1216 = vrot.slane %v1214, 4
      %v1217 = vor.u32 %v1216, %v1212
      %v1218 = vrot.slane %v1217, 4
      %v1220 = vshll.u32 %v547, 16
      %v1222 = vrot.slane %v1220, 5
      %v1223 = vsel %vm719, %v1218, %v1222
      %v1224 = vshrl.u32 %v547, 16
      %v1226 = vrot.slane %v1224, 4
      %v1227 = vor.u32 %v1226, %v1222
      %v1228 = vrot.slane %v1227, 4
      %v1230 = vshll.u32 %v548, 16
      %v1232 = vrot.slane %v1230, 5
      %v1233 = vsel %vm719, %v1228, %v1232
      %v1234 = vshrl.u32 %v548, 16
      %v1236 = vrot.slane %v1234, 4
      %v1237 = vor.u32 %v1236, %v1232
      %v1238 = vrot.slane %v1237, 4
      %v1240 = vshll.u32 %v549, 16
      %v1242 = vrot.slane %v1240, 5
      %v1243 = vsel %vm719, %v1238, %v1242
      %v1244 = vshrl.u32 %v549, 16
      %v1246 = vrot.slane %v1244, 4
      %v1247 = vor.u32 %v1246, %v1242
      %v1248 = vrot.slane %v1247, 4
      %v1250 = vshll.u32 %v550, 16
      %v1252 = vrot.slane %v1250, 5
      %v1253 = vsel %vm719, %v1248, %v1252
      %v1254 = vshrl.u32 %v550, 16
      %v1256 = vrot.slane %v1254, 4
      %v1257 = vor.u32 %v1256, %v1252
      %v1258 = vrot.slane %v1257, 4
      %v1260 = vshll.u32 %v551, 16
      %v1262 = vrot.slane %v1260, 5
      %v1263 = vsel %vm719, %v1258, %v1262
      %v1264 = vshrl.u32 %v551, 16
      %v1266 = vrot.slane %v1264, 4
      %v1267 = vor.u32 %v1266, %v1262
      %v1268 = vrot.slane %v1267, 4
      %v1270 = vshll.u32 %v552, 16
      %v1272 = vrot.slane %v1270, 5
      %v1273 = vsel %vm719, %v1268, %v1272
      %v1274 = vshrl.u32 %v552, 16
      %v1276 = vrot.slane %v1274, 4
      %v1277 = vor.u32 %v1276, %v1272
      %v1278 = vrot.slane %v1277, 4
      %v1280 = vshll.u32 %v553, 16
      %v1282 = vrot.slane %v1280, 5
      %v1283 = vsel %vm719, %v1278, %v1282
      %v1284 = vshrl.u32 %v553, 16
      %v1286 = vrot.slane %v1284, 4
      %v1287 = vor.u32 %v1286, %v1282
      %v1288 = vrot.slane %v1287, 4
      %v1290 = vshll.u32 %v554, 16
      %v1292 = vrot.slane %v1290, 5
      %v1293 = vsel %vm719, %v1288, %v1292
      %v1294 = vshrl.u32 %v554, 16
      %v1296 = vrot.slane %v1294, 4
      %v1297 = vor.u32 %v1296, %v1292
      %v1298 = vrot.slane %v1297, 4
      %v1300 = vshll.u32 %v555, 16
      %v1302 = vrot.slane %v1300, 5
      %v1303 = vsel %vm719, %v1298, %v1302
      %v1304 = vshrl.u32 %v555, 16
      %v1306 = vrot.slane %v1304, 4
      %v1307 = vor.u32 %v1306, %v1302
      %v1308 = vrot.slane %v1307, 4
      %v1310 = vshll.u32 %v556, 16
      %v1312 = vrot.slane %v1310, 5
      %v1313 = vsel %vm719, %v1308, %v1312
      %v1314 = vshrl.u32 %v556, 16
      %v1316 = vrot.slane %v1314, 4
      %v1317 = vor.u32 %v1316, %v1312
      %v1318 = vrot.slane %v1317, 4
      %v1320 = vshll.u32 %v557, 16
      %v1322 = vrot.slane %v1320, 5
      %v1323 = vsel %vm719, %v1318, %v1322
      %v1324 = vshrl.u32 %v557, 16
      %v1326 = vrot.slane %v1324, 4
      %v1327 = vor.u32 %v1326, %v1322
      %v1328 = vrot.slane %v1327, 4
      %v1330 = vshll.u32 %v558, 16
      %v1332 = vrot.slane %v1330, 5
      %v1333 = vsel %vm719, %v1328, %v1332
      %v1334 = vshrl.u32 %v558, 16
      %v1336 = vrot.slane %v1334, 4
      %v1337 = vor.u32 %v1336, %v1332
      %v1338 = vrot.slane %v1337, 4
      %v1340 = vshll.u32 %v559, 16
      %v1342 = vrot.slane %v1340, 5
      %v1343 = vsel %vm719, %v1338, %v1342
      %v1344 = vshrl.u32 %v559, 16
      %v1346 = vrot.slane %v1344, 4
      %v1347 = vor.u32 %v1346, %v1342
      %v1348 = vrot.slane %v1347, 4
      %v1350 = vshll.u32 %v560, 16
      %v1352 = vrot.slane %v1350, 5
      %v1353 = vsel %vm719, %v1348, %v1352
      %v1354 = vshrl.u32 %v560, 16
      %v1356 = vrot.slane %v1354, 4
      %v1357 = vor.u32 %v1356, %v1352
      %v1358 = vrot.slane %v1357, 4
      %v1360 = vshll.u32 %v561, 16
      %v1362 = vrot.slane %v1360, 5
      %v1363 = vsel %vm719, %v1358, %v1362
      %v1364 = vshrl.u32 %v561, 16
      %v1366 = vrot.slane %v1364, 4
      %v1367 = vor.u32 %v1366, %v1362
      %v1368 = vrot.slane %v1367, 4
      %v1370 = vshll.u32 %v562, 16
      %v1372 = vrot.slane %v1370, 5
      %v1373 = vsel %vm719, %v1368, %v1372
      %v1374 = vshrl.u32 %v562, 16
      %v1376 = vrot.slane %v1374, 4
      %v1377 = vor.u32 %v1376, %v1372
      %v1378 = vrot.slane %v1377, 4
      %v1380 = vshll.u32 %v563, 16
      %v1382 = vrot.slane %v1380, 5
      %v1383 = vsel %vm719, %v1378, %v1382
      %v1384 = vshrl.u32 %v563, 16
      %v1386 = vrot.slane %v1384, 4
      %v1387 = vor.u32 %v1386, %v1382
      %v1388 = vrot.slane %v1387, 4
      %v1390 = vshll.u32 %v564, 16
      %v1392 = vrot.slane %v1390, 5
      %v1393 = vsel %vm719, %v1388, %v1392
      %v1394 = vshrl.u32 %v564, 16
      %v1396 = vrot.slane %v1394, 4
      %v1397 = vor.u32 %v1396, %v1392
      %v1398 = vrot.slane %v1397, 4
      %v1400 = vshll.u32 %v565, 16
      %v1402 = vrot.slane %v1400, 5
      %v1403 = vsel %vm719, %v1398, %v1402
      %v1404 = vshrl.u32 %v565, 16
      %v1406 = vrot.slane %v1404, 4
      %v1407 = vor.u32 %v1406, %v1402
      %v1408 = vrot.slane %v1407, 4
      %v1410 = vshll.u32 %v566, 16
      %v1412 = vrot.slane %v1410, 5
      %v1413 = vsel %vm719, %v1408, %v1412
      %v1414 = vshrl.u32 %v566, 16
      %v1416 = vrot.slane %v1414, 4
      %v1417 = vor.u32 %v1416, %v1412
      %v1418 = vrot.slane %v1417, 4
      %v1420 = vshll.u32 %v567, 16
      %v1422 = vrot.slane %v1420, 5
      %v1423 = vsel %vm719, %v1418, %v1422
      %v1424 = vshrl.u32 %v567, 16
      %v1426 = vrot.slane %v1424, 4
      %v1427 = vor.u32 %v1426, %v1422
      %v1428 = vrot.slane %v1427, 4
      %v1430 = vshll.u32 %v568, 16
      %v1432 = vrot.slane %v1430, 5
      %v1433 = vsel %vm719, %v1428, %v1432
      %v1434 = vshrl.u32 %v568, 16
      %v1436 = vrot.slane %v1434, 4
      %v1437 = vor.u32 %v1436, %v1432
      %v1438 = vrot.slane %v1437, 4
      %v1440 = vshll.u32 %v716, 16
      %v1442 = vrot.slane %v1440, 5
      %v1443 = vsel %vm719, %v1438, %v1442
      %1444 = vrot.lane.b32.xlu0 %v733, 64
      %v1445 = vpop.permute.xlu0 %1444
      %1446 = vrot.lane.b32.xlu0 %v743, 64
      %v1447 = vpop.permute.xlu0 %1446
      %1448 = vrot.lane.b32.xlu0 %v753, 64
      %v1449 = vpop.permute.xlu0 %1448
      %1450 = vrot.lane.b32.xlu0 %v763, 64
      %v1451 = vpop.permute.xlu0 %1450
      %1452 = vrot.lane.b32.xlu0 %v773, 64
      %v1453 = vpop.permute.xlu0 %1452
      %1454 = vrot.lane.b32.xlu0 %v783, 64
      %v1455 = vpop.permute.xlu0 %1454
      %1456 = vrot.lane.b32.xlu0 %v793, 64
      %v1457 = vpop.permute.xlu0 %1456
      %1458 = vrot.lane.b32.xlu0 %v803, 64
      %v1459 = vpop.permute.xlu0 %1458
      %1460 = vrot.lane.b32.xlu0 %v813, 64
      %v1461 = vpop.permute.xlu0 %1460
      %1462 = vrot.lane.b32.xlu0 %v823, 64
      %v1463 = vpop.permute.xlu0 %1462
      %1464 = vrot.lane.b32.xlu0 %v833, 64
      %v1465 = vpop.permute.xlu0 %1464
      %1466 = vrot.lane.b32.xlu0 %v843, 64
      %v1467 = vpop.permute.xlu0 %1466
      %1468 = vrot.lane.b32.xlu0 %v853, 64
      %v1469 = vpop.permute.xlu0 %1468
      %1470 = vrot.lane.b32.xlu0 %v863, 64
      %v1471 = vpop.permute.xlu0 %1470
      %1472 = vrot.lane.b32.xlu0 %v873, 64
      %v1473 = vpop.permute.xlu0 %1472
      %1474 = vrot.lane.b32.xlu0 %v883, 64
      %v1475 = vpop.permute.xlu0 %1474
      %1476 = vrot.lane.b32.xlu0 %v893, 64
      %v1477 = vpop.permute.xlu0 %1476
      %1478 = vrot.lane.b32.xlu0 %v903, 64
      %v1479 = vpop.permute.xlu0 %1478
      %1480 = vrot.lane.b32.xlu0 %v913, 64
      %v1481 = vpop.permute.xlu0 %1480
      %1482 = vrot.lane.b32.xlu0 %v923, 64
      %v1483 = vpop.permute.xlu0 %1482
      %1484 = vrot.lane.b32.xlu0 %v933, 64
      %v1485 = vpop.permute.xlu0 %1484
      %1486 = vrot.lane.b32.xlu0 %v943, 64
      %v1487 = vpop.permute.xlu0 %1486
      %1488 = vrot.lane.b32.xlu0 %v953, 64
      %v1489 = vpop.permute.xlu0 %1488
      %1490 = vrot.lane.b32.xlu0 %v963, 64
      %v1491 = vpop.permute.xlu0 %1490
      %1492 = vrot.lane.b32.xlu0 %v973, 64
      %v1493 = vpop.permute.xlu0 %1492
      %1494 = vrot.lane.b32.xlu0 %v983, 64
      %v1495 = vpop.permute.xlu0 %1494
      %1496 = vrot.lane.b32.xlu0 %v993, 64
      %v1497 = vpop.permute.xlu0 %1496
      %1498 = vrot.lane.b32.xlu0 %v1003, 64
      %v1499 = vpop.permute.xlu0 %1498
      %1500 = vrot.lane.b32.xlu0 %v1013, 64
      %v1501 = vpop.permute.xlu0 %1500
      %1502 = vrot.lane.b32.xlu0 %v1023, 64
      %v1503 = vpop.permute.xlu0 %1502
      %1504 = vrot.lane.b32.xlu0 %v1033, 64
      %v1505 = vpop.permute.xlu0 %1504
      %1506 = vrot.lane.b32.xlu0 %v1043, 64
      %v1507 = vpop.permute.xlu0 %1506
      %1508 = vrot.lane.b32.xlu0 %v1053, 64
      %v1509 = vpop.permute.xlu0 %1508
      %1510 = vrot.lane.b32.xlu0 %v1063, 64
      %v1511 = vpop.permute.xlu0 %1510
      %1512 = vrot.lane.b32.xlu0 %v1073, 64
      %v1513 = vpop.permute.xlu0 %1512
      %1514 = vrot.lane.b32.xlu0 %v1083, 64
      %v1515 = vpop.permute.xlu0 %1514
      %1516 = vrot.lane.b32.xlu0 %v1093, 64
      %v1517 = vpop.permute.xlu0 %1516
      %1518 = vrot.lane.b32.xlu0 %v1103, 64
      %v1519 = vpop.permute.xlu0 %1518
      %1520 = vrot.lane.b32.xlu0 %v1113, 64
      %v1521 = vpop.permute.xlu0 %1520
      %1522 = vrot.lane.b32.xlu0 %v1123, 64
      %v1523 = vpop.permute.xlu0 %1522
      %1524 = vrot.lane.b32.xlu0 %v1133, 64
      %v1525 = vpop.permute.xlu0 %1524
      %1526 = vrot.lane.b32.xlu0 %v1143, 64
      %v1527 = vpop.permute.xlu0 %1526
      %1528 = vrot.lane.b32.xlu0 %v1153, 64
      %v1529 = vpop.permute.xlu0 %1528
      %1530 = vrot.lane.b32.xlu0 %v1163, 64
      %v1531 = vpop.permute.xlu0 %1530
      %1532 = vrot.lane.b32.xlu0 %v1173, 64
      %v1533 = vpop.permute.xlu0 %1532
      %1534 = vrot.lane.b32.xlu0 %v1183, 64
      %v1535 = vpop.permute.xlu0 %1534
      %1536 = vrot.lane.b32.xlu0 %v1193, 64
      %v1537 = vpop.permute.xlu0 %1536
      %1538 = vrot.lane.b32.xlu0 %v1203, 64
      %v1539 = vpop.permute.xlu0 %1538
      %1540 = vrot.lane.b32.xlu0 %v1213, 64
      %v1541 = vpop.permute.xlu0 %1540
      %1542 = vrot.lane.b32.xlu0 %v1223, 64
      %v1543 = vpop.permute.xlu0 %1542
      %1544 = vrot.lane.b32.xlu0 %v1233, 64
      %v1545 = vpop.permute.xlu0 %1544
      %1546 = vrot.lane.b32.xlu0 %v1243, 64
      %v1547 = vpop.permute.xlu0 %1546
      %1548 = vrot.lane.b32.xlu0 %v1253, 64
      %v1549 = vpop.permute.xlu0 %1548
      %1550 = vrot.lane.b32.xlu0 %v1263, 64
      %v1551 = vpop.permute.xlu0 %1550
      %1552 = vrot.lane.b32.xlu0 %v1273, 64
      %v1553 = vpop.permute.xlu0 %1552
      %1554 = vrot.lane.b32.xlu0 %v1283, 64
      %v1555 = vpop.permute.xlu0 %1554
      %1556 = vrot.lane.b32.xlu0 %v1293, 64
      %v1557 = vpop.permute.xlu0 %1556
      %1558 = vrot.lane.b32.xlu0 %v1303, 64
      %v1559 = vpop.permute.xlu0 %1558
      %1560 = vrot.lane.b32.xlu0 %v1313, 64
      %v1561 = vpop.permute.xlu0 %1560
      %1562 = vrot.lane.b32.xlu0 %v1323, 64
      %v1563 = vpop.permute.xlu0 %1562
      %1564 = vrot.lane.b32.xlu0 %v1333, 64
      %v1565 = vpop.permute.xlu0 %1564
      %1566 = vrot.lane.b32.xlu0 %v1343, 64
      %v1567 = vpop.permute.xlu0 %1566
      %1568 = vrot.lane.b32.xlu0 %v1353, 64
      %v1569 = vpop.permute.xlu0 %1568
      %1570 = vrot.lane.b32.xlu0 %v1363, 64
      %v1571 = vpop.permute.xlu0 %1570
      %1572 = vrot.lane.b32.xlu0 %v1373, 64
      %v1573 = vpop.permute.xlu0 %1572
      %1574 = vrot.lane.b32.xlu0 %v1383, 64
      %v1575 = vpop.permute.xlu0 %1574
      %1576 = vrot.lane.b32.xlu0 %v1393, 64
      %v1577 = vpop.permute.xlu0 %1576
      %1578 = vrot.lane.b32.xlu0 %v1403, 64
      %v1579 = vpop.permute.xlu0 %1578
      %1580 = vrot.lane.b32.xlu0 %v1413, 64
      %v1581 = vpop.permute.xlu0 %1580
      %1582 = vrot.lane.b32.xlu0 %v1423, 64
      %v1583 = vpop.permute.xlu0 %1582
      %1584 = vrot.lane.b32.xlu0 %v1433, 64
      %v1585 = vpop.permute.xlu0 %1584
      %1586 = vrot.lane.b32.xlu0 %v1443, 64
      %v1587 = vpop.permute.xlu0 %1586
      %vm1660 = vcmask 1043968
      %1661 = vst.msk [vmem:[#allocation2] sm:$0xf] %vm1660, %v1445
      %1662 = vst.msk [vmem:[#allocation2 + $0x8] sm:$0xf] %vm1660, %v1447
      %1663 = vst.msk [vmem:[#allocation2 + $0x10] sm:$0xf] %vm1660, %v1449
      %1664 = vst.msk [vmem:[#allocation2 + $0x18] sm:$0xf] %vm1660, %v1451
      %1665 = vst.msk [vmem:[#allocation2 + $0x20] sm:$0xf] %vm1660, %v1453
      %1666 = vst.msk [vmem:[#allocation2 + $0x28] sm:$0xf] %vm1660, %v1455
      %1667 = vst.msk [vmem:[#allocation2 + $0x30] sm:$0xf] %vm1660, %v1457
      %1668 = vst.msk [vmem:[#allocation2 + $0x38] sm:$0xf] %vm1660, %v1459
      %1669 = vst.msk [vmem:[#allocation2 + $0x40] sm:$0xf] %vm1660, %v1461
      %1670 = vst.msk [vmem:[#allocation2 + $0x48] sm:$0xf] %vm1660, %v1463
      %1671 = vst.msk [vmem:[#allocation2 + $0x50] sm:$0xf] %vm1660, %v1465
      %1672 = vst.msk [vmem:[#allocation2 + $0x58] sm:$0xf] %vm1660, %v1467
      %1673 = vst.msk [vmem:[#allocation2 + $0x60] sm:$0xf] %vm1660, %v1469
      %1674 = vst.msk [vmem:[#allocation2 + $0x68] sm:$0xf] %vm1660, %v1471
      %1675 = vst.msk [vmem:[#allocation2 + $0x70] sm:$0xf] %vm1660, %v1473
      %1676 = vst.msk [vmem:[#allocation2 + $0x78] sm:$0xf] %vm1660, %v1475
      %1677 = vst.msk [vmem:[#allocation2 + $0x80] sm:$0xf] %vm1660, %v1477
      %1678 = vst.msk [vmem:[#allocation2 + $0x88] sm:$0xf] %vm1660, %v1479
      %1679 = vst.msk [vmem:[#allocation2 + $0x90] sm:$0xf] %vm1660, %v1481
      %1680 = vst.msk [vmem:[#allocation2 + $0x98] sm:$0xf] %vm1660, %v1483
      %1681 = vst.msk [vmem:[#allocation2 + $0xa0] sm:$0xf] %vm1660, %v1485
      %1682 = vst.msk [vmem:[#allocation2 + $0xa8] sm:$0xf] %vm1660, %v1487
      %1683 = vst.msk [vmem:[#allocation2 + $0xb0] sm:$0xf] %vm1660, %v1489
      %1684 = vst.msk [vmem:[#allocation2 + $0xb8] sm:$0xf] %vm1660, %v1491
      %1685 = vst.msk [vmem:[#allocation2 + $0xc0] sm:$0xf] %vm1660, %v1493
      %1686 = vst.msk [vmem:[#allocation2 + $0xc8] sm:$0xf] %vm1660, %v1495
      %1687 = vst.msk [vmem:[#allocation2 + $0xd0] sm:$0xf] %vm1660, %v1497
      %1688 = vst.msk [vmem:[#allocation2 + $0xd8] sm:$0xf] %vm1660, %v1499
      %1689 = vst.msk [vmem:[#allocation2 + $0xe0] sm:$0xf] %vm1660, %v1501
      %1690 = vst.msk [vmem:[#allocation2 + $0xe8] sm:$0xf] %vm1660, %v1503
      %1691 = vst.msk [vmem:[#allocation2 + $0xf0] sm:$0xf] %vm1660, %v1505
      %1692 = vst.msk [vmem:[#allocation2 + $0xf8] sm:$0xf] %vm1660, %v1507
      %1693 = vst.msk [vmem:[#allocation2 + $0x100] sm:$0xf] %vm1660, %v1509
      %1694 = vst.msk [vmem:[#allocation2 + $0x108] sm:$0xf] %vm1660, %v1511
      %1695 = vst.msk [vmem:[#allocation2 + $0x110] sm:$0xf] %vm1660, %v1513
      %1696 = vst.msk [vmem:[#allocation2 + $0x118] sm:$0xf] %vm1660, %v1515
      %1697 = vst.msk [vmem:[#allocation2 + $0x120] sm:$0xf] %vm1660, %v1517
      %1698 = vst.msk [vmem:[#allocation2 + $0x128] sm:$0xf] %vm1660, %v1519
      %1699 = vst.msk [vmem:[#allocation2 + $0x130] sm:$0xf] %vm1660, %v1521
      %1700 = vst.msk [vmem:[#allocation2 + $0x138] sm:$0xf] %vm1660, %v1523
      %1701 = vst.msk [vmem:[#allocation2 + $0x140] sm:$0xf] %vm1660, %v1525
      %1702 = vst.msk [vmem:[#allocation2 + $0x148] sm:$0xf] %vm1660, %v1527
      %1703 = vst.msk [vmem:[#allocation2 + $0x150] sm:$0xf] %vm1660, %v1529
      %1704 = vst.msk [vmem:[#allocation2 + $0x158] sm:$0xf] %vm1660, %v1531
      %1705 = vst.msk [vmem:[#allocation2 + $0x160] sm:$0xf] %vm1660, %v1533
      %1706 = vst.msk [vmem:[#allocation2 + $0x168] sm:$0xf] %vm1660, %v1535
      %1707 = vst.msk [vmem:[#allocation2 + $0x170] sm:$0xf] %vm1660, %v1537
      %1708 = vst.msk [vmem:[#allocation2 + $0x178] sm:$0xf] %vm1660, %v1539
      %1709 = vst.msk [vmem:[#allocation2 + $0x180] sm:$0xf] %vm1660, %v1541
      %1710 = vst.msk [vmem:[#allocation2 + $0x188] sm:$0xf] %vm1660, %v1543
      %1711 = vst.msk [vmem:[#allocation2 + $0x190] sm:$0xf] %vm1660, %v1545
      %1712 = vst.msk [vmem:[#allocation2 + $0x198] sm:$0xf] %vm1660, %v1547
      %1713 = vst.msk [vmem:[#allocation2 + $0x1a0] sm:$0xf] %vm1660, %v1549
      %1714 = vst.msk [vmem:[#allocation2 + $0x1a8] sm:$0xf] %vm1660, %v1551
      %1715 = vst.msk [vmem:[#allocation2 + $0x1b0] sm:$0xf] %vm1660, %v1553
      %1716 = vst.msk [vmem:[#allocation2 + $0x1b8] sm:$0xf] %vm1660, %v1555
      %1717 = vst.msk [vmem:[#allocation2 + $0x1c0] sm:$0xf] %vm1660, %v1557
      %1718 = vst.msk [vmem:[#allocation2 + $0x1c8] sm:$0xf] %vm1660, %v1559
      %1719 = vst.msk [vmem:[#allocation2 + $0x1d0] sm:$0xf] %vm1660, %v1561
      %1720 = vst.msk [vmem:[#allocation2 + $0x1d8] sm:$0xf] %vm1660, %v1563
      %1721 = vst.msk [vmem:[#allocation2 + $0x1e0] sm:$0xf] %vm1660, %v1565
      %1722 = vst.msk [vmem:[#allocation2 + $0x1e8] sm:$0xf] %vm1660, %v1567
      %1723 = vst.msk [vmem:[#allocation2 + $0x1f0] sm:$0xf] %vm1660, %v1569
      %1724 = vst.msk [vmem:[#allocation2 + $0x1f8] sm:$0xf] %vm1660, %v1571
      %1725 = vst.msk [vmem:[#allocation2 + $0x200] sm:$0xf] %vm1660, %v1573
      %1726 = vst.msk [vmem:[#allocation2 + $0x208] sm:$0xf] %vm1660, %v1575
      %1727 = vst.msk [vmem:[#allocation2 + $0x210] sm:$0xf] %vm1660, %v1577
      %1728 = vst.msk [vmem:[#allocation2 + $0x218] sm:$0xf] %vm1660, %v1579
      %1729 = vst.msk [vmem:[#allocation2 + $0x220] sm:$0xf] %vm1660, %v1581
      %1730 = vst.msk [vmem:[#allocation2 + $0x228] sm:$0xf] %vm1660, %v1583
      %1731 = vst.msk [vmem:[#allocation2 + $0x230] sm:$0xf] %vm1660, %v1585
      %1732 = vst.msk [vmem:[#allocation2 + $0x238] sm:$0xf] %vm1660, %v1587
      %vm1733 = vcmask 1042432
      %vm1734 = vcmask 1046532
      %vm1735 = vmor %vm1733, %vm1734
      %v1736 = vrot.slane %v497, 5
      %v1737 = vrot.slane %v1736, 4
      %v1738 = vrot.slane %v498, 5
      %v1739 = vsel %vm1735, %v1737, %v1738
      %v1740 = vrot.slane %v1738, 4
      %v1741 = vrot.slane %v499, 5
      %v1742 = vsel %vm1735, %v1740, %v1741
      %v1743 = vrot.slane %v1741, 4
      %v1744 = vrot.slane %v500, 5
      %v1745 = vsel %vm1735, %v1743, %v1744
      %v1746 = vrot.slane %v1744, 4
      %v1747 = vrot.slane %v501, 5
      %v1748 = vsel %vm1735, %v1746, %v1747
      %v1749 = vrot.slane %v1747, 4
      %v1750 = vrot.slane %v502, 5
      %v1751 = vsel %vm1735, %v1749, %v1750
      %v1752 = vrot.slane %v1750, 4
      %v1753 = vrot.slane %v503, 5
      %v1754 = vsel %vm1735, %v1752, %v1753
      %v1755 = vrot.slane %v1753, 4
      %v1756 = vrot.slane %v504, 5
      %v1757 = vsel %vm1735, %v1755, %v1756
      %v1758 = vrot.slane %v1756, 4
      %v1759 = vrot.slane %v505, 5
      %v1760 = vsel %vm1735, %v1758, %v1759
      %v1761 = vrot.slane %v1759, 4
      %v1762 = vrot.slane %v506, 5
      %v1763 = vsel %vm1735, %v1761, %v1762
      %v1764 = vrot.slane %v1762, 4
      %v1765 = vrot.slane %v507, 5
      %v1766 = vsel %vm1735, %v1764, %v1765
      %v1767 = vrot.slane %v1765, 4
      %v1768 = vrot.slane %v508, 5
      %v1769 = vsel %vm1735, %v1767, %v1768
      %v1770 = vrot.slane %v1768, 4
      %v1771 = vrot.slane %v509, 5
      %v1772 = vsel %vm1735, %v1770, %v1771
      %v1773 = vrot.slane %v1771, 4
      %v1774 = vrot.slane %v510, 5
      %v1775 = vsel %vm1735, %v1773, %v1774
      %v1776 = vrot.slane %v1774, 4
      %v1777 = vrot.slane %v511, 5
      %v1778 = vsel %vm1735, %v1776, %v1777
      %v1779 = vrot.slane %v1777, 4
      %v1780 = vrot.slane %v512, 5
      %v1781 = vsel %vm1735, %v1779, %v1780
      %v1782 = vrot.slane %v1780, 4
      %v1783 = vrot.slane %v513, 5
      %v1784 = vsel %vm1735, %v1782, %v1783
      %v1785 = vrot.slane %v1783, 4
      %v1786 = vrot.slane %v514, 5
      %v1787 = vsel %vm1735, %v1785, %v1786
      %v1788 = vrot.slane %v1786, 4
      %v1789 = vrot.slane %v515, 5
      %v1790 = vsel %vm1735, %v1788, %v1789
      %v1791 = vrot.slane %v1789, 4
      %v1792 = vrot.slane %v516, 5
      %v1793 = vsel %vm1735, %v1791, %v1792
      %v1794 = vrot.slane %v1792, 4
      %v1795 = vrot.slane %v517, 5
      %v1796 = vsel %vm1735, %v1794, %v1795
      %v1797 = vrot.slane %v1795, 4
      %v1798 = vrot.slane %v518, 5
      %v1799 = vsel %vm1735, %v1797, %v1798
      %v1800 = vrot.slane %v1798, 4
      %v1801 = vrot.slane %v519, 5
      %v1802 = vsel %vm1735, %v1800, %v1801
      %v1803 = vrot.slane %v1801, 4
      %v1804 = vrot.slane %v520, 5
      %v1805 = vsel %vm1735, %v1803, %v1804
      %v1806 = vrot.slane %v1804, 4
      %v1807 = vrot.slane %v521, 5
      %v1808 = vsel %vm1735, %v1806, %v1807
      %v1809 = vrot.slane %v1807, 4
      %v1810 = vrot.slane %v522, 5
      %v1811 = vsel %vm1735, %v1809, %v1810
      %v1812 = vrot.slane %v1810, 4
      %v1813 = vrot.slane %v523, 5
      %v1814 = vsel %vm1735, %v1812, %v1813
      %v1815 = vrot.slane %v1813, 4
      %v1816 = vrot.slane %v524, 5
      %v1817 = vsel %vm1735, %v1815, %v1816
      %v1818 = vrot.slane %v1816, 4
      %v1819 = vrot.slane %v525, 5
      %v1820 = vsel %vm1735, %v1818, %v1819
      %v1821 = vrot.slane %v1819, 4
      %v1822 = vrot.slane %v526, 5
      %v1823 = vsel %vm1735, %v1821, %v1822
      %v1824 = vrot.slane %v1822, 4
      %v1825 = vrot.slane %v527, 5
      %v1826 = vsel %vm1735, %v1824, %v1825
      %v1827 = vrot.slane %v1825, 4
      %v1828 = vrot.slane %v528, 5
      %v1829 = vsel %vm1735, %v1827, %v1828
      %v1830 = vrot.slane %v1828, 4
      %v1831 = vrot.slane %v529, 5
      %v1832 = vsel %vm1735, %v1830, %v1831
      %v1833 = vrot.slane %v1831, 4
      %v1834 = vrot.slane %v530, 5
      %v1835 = vsel %vm1735, %v1833, %v1834
      %v1836 = vrot.slane %v1834, 4
      %v1837 = vrot.slane %v531, 5
      %v1838 = vsel %vm1735, %v1836, %v1837
      %v1839 = vrot.slane %v1837, 4
      %v1840 = vrot.slane %v532, 5
      %v1841 = vsel %vm1735, %v1839, %v1840
      %v1842 = vrot.slane %v1840, 4
      %v1843 = vrot.slane %v533, 5
      %v1844 = vsel %vm1735, %v1842, %v1843
      %v1845 = vrot.slane %v1843, 4
      %v1846 = vrot.slane %v534, 5
      %v1847 = vsel %vm1735, %v1845, %v1846
      %v1848 = vrot.slane %v1846, 4
      %v1849 = vrot.slane %v535, 5
      %v1850 = vsel %vm1735, %v1848, %v1849
      %v1851 = vrot.slane %v1849, 4
      %v1852 = vrot.slane %v536, 5
      %v1853 = vsel %vm1735, %v1851, %v1852
      %v1854 = vrot.slane %v1852, 4
      %v1855 = vrot.slane %v537, 5
      %v1856 = vsel %vm1735, %v1854, %v1855
      %v1857 = vrot.slane %v1855, 4
      %v1858 = vrot.slane %v538, 5
      %v1859 = vsel %vm1735, %v1857, %v1858
      %v1860 = vrot.slane %v1858, 4
      %v1861 = vrot.slane %v539, 5
      %v1862 = vsel %vm1735, %v1860, %v1861
      %v1863 = vrot.slane %v1861, 4
      %v1864 = vrot.slane %v540, 5
      %v1865 = vsel %vm1735, %v1863, %v1864
      %v1866 = vrot.slane %v1864, 4
      %v1867 = vrot.slane %v541, 5
      %v1868 = vsel %vm1735, %v1866, %v1867
      %v1869 = vrot.slane %v1867, 4
      %v1870 = vrot.slane %v542, 5
      %v1871 = vsel %vm1735, %v1869, %v1870
      %v1872 = vrot.slane %v1870, 4
      %v1873 = vrot.slane %v543, 5
      %v1874 = vsel %vm1735, %v1872, %v1873
      %v1875 = vrot.slane %v1873, 4
      %v1876 = vrot.slane %v544, 5
      %v1877 = vsel %vm1735, %v1875, %v1876
      %v1878 = vrot.slane %v1876, 4
      %v1879 = vrot.slane %v545, 5
      %v1880 = vsel %vm1735, %v1878, %v1879
      %v1881 = vrot.slane %v1879, 4
      %v1882 = vrot.slane %v546, 5
      %v1883 = vsel %vm1735, %v1881, %v1882
      %v1884 = vrot.slane %v1882, 4
      %v1885 = vrot.slane %v547, 5
      %v1886 = vsel %vm1735, %v1884, %v1885
      %v1887 = vrot.slane %v1885, 4
      %v1888 = vrot.slane %v548, 5
      %v1889 = vsel %vm1735, %v1887, %v1888
      %v1890 = vrot.slane %v1888, 4
      %v1891 = vrot.slane %v549, 5
      %v1892 = vsel %vm1735, %v1890, %v1891
      %v1893 = vrot.slane %v1891, 4
      %v1894 = vrot.slane %v550, 5
      %v1895 = vsel %vm1735, %v1893, %v1894
      %v1896 = vrot.slane %v1894, 4
      %v1897 = vrot.slane %v551, 5
      %v1898 = vsel %vm1735, %v1896, %v1897
      %v1899 = vrot.slane %v1897, 4
      %v1900 = vrot.slane %v552, 5
      %v1901 = vsel %vm1735, %v1899, %v1900
      %v1902 = vrot.slane %v1900, 4
      %v1903 = vrot.slane %v553, 5
      %v1904 = vsel %vm1735, %v1902, %v1903
      %v1905 = vrot.slane %v1903, 4
      %v1906 = vrot.slane %v554, 5
      %v1907 = vsel %vm1735, %v1905, %v1906
      %v1908 = vrot.slane %v1906, 4
      %v1909 = vrot.slane %v555, 5
      %v1910 = vsel %vm1735, %v1908, %v1909
      %v1911 = vrot.slane %v1909, 4
      %v1912 = vrot.slane %v556, 5
      %v1913 = vsel %vm1735, %v1911, %v1912
      %v1914 = vrot.slane %v1912, 4
      %v1915 = vrot.slane %v557, 5
      %v1916 = vsel %vm1735, %v1914, %v1915
      %v1917 = vrot.slane %v1915, 4
      %v1918 = vrot.slane %v558, 5
      %v1919 = vsel %vm1735, %v1917, %v1918
      %v1920 = vrot.slane %v1918, 4
      %v1921 = vrot.slane %v559, 5
      %v1922 = vsel %vm1735, %v1920, %v1921
      %v1923 = vrot.slane %v1921, 4
      %v1924 = vrot.slane %v560, 5
      %v1925 = vsel %vm1735, %v1923, %v1924
      %v1926 = vrot.slane %v1924, 4
      %v1927 = vrot.slane %v561, 5
      %v1928 = vsel %vm1735, %v1926, %v1927
      %v1929 = vrot.slane %v1927, 4
      %v1930 = vrot.slane %v562, 5
      %v1931 = vsel %vm1735, %v1929, %v1930
      %v1932 = vrot.slane %v1930, 4
      %v1933 = vrot.slane %v563, 5
      %v1934 = vsel %vm1735, %v1932, %v1933
      %v1935 = vrot.slane %v1933, 4
      %v1936 = vrot.slane %v564, 5
      %v1937 = vsel %vm1735, %v1935, %v1936
      %v1938 = vrot.slane %v1936, 4
      %v1939 = vrot.slane %v565, 5
      %v1940 = vsel %vm1735, %v1938, %v1939
      %v1941 = vrot.slane %v1939, 4
      %v1942 = vrot.slane %v566, 5
      %v1943 = vsel %vm1735, %v1941, %v1942
      %v1944 = vrot.slane %v1942, 4
      %v1945 = vrot.slane %v567, 5
      %v1946 = vsel %vm1735, %v1944, %v1945
      %v1947 = vrot.slane %v1945, 4
      %v1948 = vrot.slane %v568, 5
      %v1949 = vsel %vm1735, %v1947, %v1948
      %v1950 = vrot.slane %v1948, 4
      %v1951 = vrot.slane %v716, 5
      %v1952 = vsel %vm1735, %v1950, %v1951
      %2025 = vst.msk [vmem:[#allocation2 + $0x4] sm:$0xf] %vm641, %v1739
      %2026 = vst.msk [vmem:[#allocation2 + $0xc] sm:$0xf] %vm641, %v1742
      %2027 = vst.msk [vmem:[#allocation2 + $0x14] sm:$0xf] %vm641, %v1745
      %2028 = vst.msk [vmem:[#allocation2 + $0x1c] sm:$0xf] %vm641, %v1748
      %2029 = vst.msk [vmem:[#allocation2 + $0x24] sm:$0xf] %vm641, %v1751
      %2030 = vst.msk [vmem:[#allocation2 + $0x2c] sm:$0xf] %vm641, %v1754
      %2031 = vst.msk [vmem:[#allocation2 + $0x34] sm:$0xf] %vm641, %v1757
      %2032 = vst.msk [vmem:[#allocation2 + $0x3c] sm:$0xf] %vm641, %v1760
      %2033 = vst.msk [vmem:[#allocation2 + $0x44] sm:$0xf] %vm641, %v1763
      %2034 = vst.msk [vmem:[#allocation2 + $0x4c] sm:$0xf] %vm641, %v1766
      %2035 = vst.msk [vmem:[#allocation2 + $0x54] sm:$0xf] %vm641, %v1769
      %2036 = vst.msk [vmem:[#allocation2 + $0x5c] sm:$0xf] %vm641, %v1772
      %2037 = vst.msk [vmem:[#allocation2 + $0x64] sm:$0xf] %vm641, %v1775
      %2038 = vst.msk [vmem:[#allocation2 + $0x6c] sm:$0xf] %vm641, %v1778
      %2039 = vst.msk [vmem:[#allocation2 + $0x74] sm:$0xf] %vm641, %v1781
      %2040 = vst.msk [vmem:[#allocation2 + $0x7c] sm:$0xf] %vm641, %v1784
      %2041 = vst.msk [vmem:[#allocation2 + $0x84] sm:$0xf] %vm641, %v1787
      %2042 = vst.msk [vmem:[#allocation2 + $0x8c] sm:$0xf] %vm641, %v1790
      %2043 = vst.msk [vmem:[#allocation2 + $0x94] sm:$0xf] %vm641, %v1793
      %2044 = vst.msk [vmem:[#allocation2 + $0x9c] sm:$0xf] %vm641, %v1796
      %2045 = vst.msk [vmem:[#allocation2 + $0xa4] sm:$0xf] %vm641, %v1799
      %2046 = vst.msk [vmem:[#allocation2 + $0xac] sm:$0xf] %vm641, %v1802
      %2047 = vst.msk [vmem:[#allocation2 + $0xb4] sm:$0xf] %vm641, %v1805
      %2048 = vst.msk [vmem:[#allocation2 + $0xbc] sm:$0xf] %vm641, %v1808
      %2049 = vst.msk [vmem:[#allocation2 + $0xc4] sm:$0xf] %vm641, %v1811
      %2050 = vst.msk [vmem:[#allocation2 + $0xcc] sm:$0xf] %vm641, %v1814
      %2051 = vst.msk [vmem:[#allocation2 + $0xd4] sm:$0xf] %vm641, %v1817
      %2052 = vst.msk [vmem:[#allocation2 + $0xdc] sm:$0xf] %vm641, %v1820
      %2053 = vst.msk [vmem:[#allocation2 + $0xe4] sm:$0xf] %vm641, %v1823
      %2054 = vst.msk [vmem:[#allocation2 + $0xec] sm:$0xf] %vm641, %v1826
      %2055 = vst.msk [vmem:[#allocation2 + $0xf4] sm:$0xf] %vm641, %v1829
      %2056 = vst.msk [vmem:[#allocation2 + $0xfc] sm:$0xf] %vm641, %v1832
      %2057 = vst.msk [vmem:[#allocation2 + $0x104] sm:$0xf] %vm641, %v1835
      %2058 = vst.msk [vmem:[#allocation2 + $0x10c] sm:$0xf] %vm641, %v1838
      %2059 = vst.msk [vmem:[#allocation2 + $0x114] sm:$0xf] %vm641, %v1841
      %2060 = vst.msk [vmem:[#allocation2 + $0x11c] sm:$0xf] %vm641, %v1844
      %2061 = vst.msk [vmem:[#allocation2 + $0x124] sm:$0xf] %vm641, %v1847
      %2062 = vst.msk [vmem:[#allocation2 + $0x12c] sm:$0xf] %vm641, %v1850
      %2063 = vst.msk [vmem:[#allocation2 + $0x134] sm:$0xf] %vm641, %v1853
      %2064 = vst.msk [vmem:[#allocation2 + $0x13c] sm:$0xf] %vm641, %v1856
      %2065 = vst.msk [vmem:[#allocation2 + $0x144] sm:$0xf] %vm641, %v1859
      %2066 = vst.msk [vmem:[#allocation2 + $0x14c] sm:$0xf] %vm641, %v1862
      %2067 = vst.msk [vmem:[#allocation2 + $0x154] sm:$0xf] %vm641, %v1865
      %2068 = vst.msk [vmem:[#allocation2 + $0x15c] sm:$0xf] %vm641, %v1868
      %2069 = vst.msk [vmem:[#allocation2 + $0x164] sm:$0xf] %vm641, %v1871
      %2070 = vst.msk [vmem:[#allocation2 + $0x16c] sm:$0xf] %vm641, %v1874
      %2071 = vst.msk [vmem:[#allocation2 + $0x174] sm:$0xf] %vm641, %v1877
      %2072 = vst.msk [vmem:[#allocation2 + $0x17c] sm:$0xf] %vm641, %v1880
      %2073 = vst.msk [vmem:[#allocation2 + $0x184] sm:$0xf] %vm641, %v1883
      %2074 = vst.msk [vmem:[#allocation2 + $0x18c] sm:$0xf] %vm641, %v1886
      %2075 = vst.msk [vmem:[#allocation2 + $0x194] sm:$0xf] %vm641, %v1889
      %2076 = vst.msk [vmem:[#allocation2 + $0x19c] sm:$0xf] %vm641, %v1892
      %2077 = vst.msk [vmem:[#allocation2 + $0x1a4] sm:$0xf] %vm641, %v1895
      %2078 = vst.msk [vmem:[#allocation2 + $0x1ac] sm:$0xf] %vm641, %v1898
      %2079 = vst.msk [vmem:[#allocation2 + $0x1b4] sm:$0xf] %vm641, %v1901
      %2080 = vst.msk [vmem:[#allocation2 + $0x1bc] sm:$0xf] %vm641, %v1904
      %2081 = vst.msk [vmem:[#allocation2 + $0x1c4] sm:$0xf] %vm641, %v1907
      %2082 = vst.msk [vmem:[#allocation2 + $0x1cc] sm:$0xf] %vm641, %v1910
      %2083 = vst.msk [vmem:[#allocation2 + $0x1d4] sm:$0xf] %vm641, %v1913
      %2084 = vst.msk [vmem:[#allocation2 + $0x1dc] sm:$0xf] %vm641, %v1916
      %2085 = vst.msk [vmem:[#allocation2 + $0x1e4] sm:$0xf] %vm641, %v1919
      %2086 = vst.msk [vmem:[#allocation2 + $0x1ec] sm:$0xf] %vm641, %v1922
      %2087 = vst.msk [vmem:[#allocation2 + $0x1f4] sm:$0xf] %vm641, %v1925
      %2088 = vst.msk [vmem:[#allocation2 + $0x1fc] sm:$0xf] %vm641, %v1928
      %2089 = vst.msk [vmem:[#allocation2 + $0x204] sm:$0xf] %vm641, %v1931
      %2090 = vst.msk [vmem:[#allocation2 + $0x20c] sm:$0xf] %vm641, %v1934
      %2091 = vst.msk [vmem:[#allocation2 + $0x214] sm:$0xf] %vm641, %v1937
      %2092 = vst.msk [vmem:[#allocation2 + $0x21c] sm:$0xf] %vm641, %v1940
      %2093 = vst.msk [vmem:[#allocation2 + $0x224] sm:$0xf] %vm641, %v1943
      %2094 = vst.msk [vmem:[#allocation2 + $0x22c] sm:$0xf] %vm641, %v1946
      %2095 = vst.msk [vmem:[#allocation2 + $0x234] sm:$0xf] %vm641, %v1949
      %2096 = vst.msk [vmem:[#allocation2 + $0x23c] sm:$0xf] %vm641, %v1952
      %v2097 = vld [vmem:[#allocation2] sm:$0xff]
      %v2098 = vld [vmem:[#allocation2 + $0x8] sm:$0xff]
      %v2099 = vld [vmem:[#allocation2 + $0x10] sm:$0xff]
      %v2100 = vld [vmem:[#allocation2 + $0x18] sm:$0xff]
      %v2101 = vld [vmem:[#allocation2 + $0x20] sm:$0xff]
      %v2102 = vld [vmem:[#allocation2 + $0x28] sm:$0xff]
      %v2103 = vld [vmem:[#allocation2 + $0x30] sm:$0xff]
      %v2104 = vld [vmem:[#allocation2 + $0x38] sm:$0xff]
      %v2105 = vld [vmem:[#allocation2 + $0x40] sm:$0xff]
      %v2106 = vld [vmem:[#allocation2 + $0x48] sm:$0xff]
      %v2107 = vld [vmem:[#allocation2 + $0x50] sm:$0xff]
      %v2108 = vld [vmem:[#allocation2 + $0x58] sm:$0xff]
      %v2109 = vld [vmem:[#allocation2 + $0x60] sm:$0xff]
      %v2110 = vld [vmem:[#allocation2 + $0x68] sm:$0xff]
      %v2111 = vld [vmem:[#allocation2 + $0x70] sm:$0xff]
      %v2112 = vld [vmem:[#allocation2 + $0x78] sm:$0xff]
      %v2113 = vld [vmem:[#allocation2 + $0x80] sm:$0xff]
      %v2114 = vld [vmem:[#allocation2 + $0x88] sm:$0xff]
      %v2115 = vld [vmem:[#allocation2 + $0x90] sm:$0xff]
      %v2116 = vld [vmem:[#allocation2 + $0x98] sm:$0xff]
      %v2117 = vld [vmem:[#allocation2 + $0xa0] sm:$0xff]
      %v2118 = vld [vmem:[#allocation2 + $0xa8] sm:$0xff]
      %v2119 = vld [vmem:[#allocation2 + $0xb0] sm:$0xff]
      %v2120 = vld [vmem:[#allocation2 + $0xb8] sm:$0xff]
      %v2121 = vld [vmem:[#allocation2 + $0xc0] sm:$0xff]
      %v2122 = vld [vmem:[#allocation2 + $0xc8] sm:$0xff]
      %v2123 = vld [vmem:[#allocation2 + $0xd0] sm:$0xff]
      %v2124 = vld [vmem:[#allocation2 + $0xd8] sm:$0xff]
      %v2125 = vld [vmem:[#allocation2 + $0xe0] sm:$0xff]
      %v2126 = vld [vmem:[#allocation2 + $0xe8] sm:$0xff]
      %v2127 = vld [vmem:[#allocation2 + $0xf0] sm:$0xff]
      %v2128 = vld [vmem:[#allocation2 + $0xf8] sm:$0xff]
      %v2129 = vld [vmem:[#allocation2 + $0x100] sm:$0xff]
      %v2130 = vld [vmem:[#allocation2 + $0x108] sm:$0xff]
      %v2131 = vld [vmem:[#allocation2 + $0x110] sm:$0xff]
      %v2132 = vld [vmem:[#allocation2 + $0x118] sm:$0xff]
      %v2133 = vld [vmem:[#allocation2 + $0x120] sm:$0xff]
      %v2134 = vld [vmem:[#allocation2 + $0x128] sm:$0xff]
      %v2135 = vld [vmem:[#allocation2 + $0x130] sm:$0xff]
      %v2136 = vld [vmem:[#allocation2 + $0x138] sm:$0xff]
      %v2137 = vld [vmem:[#allocation2 + $0x140] sm:$0xff]
      %v2138 = vld [vmem:[#allocation2 + $0x148] sm:$0xff]
      %v2139 = vld [vmem:[#allocation2 + $0x150] sm:$0xff]
      %v2140 = vld [vmem:[#allocation2 + $0x158] sm:$0xff]
      %v2141 = vld [vmem:[#allocation2 + $0x160] sm:$0xff]
      %v2142 = vld [vmem:[#allocation2 + $0x168] sm:$0xff]
      %v2143 = vld [vmem:[#allocation2 + $0x170] sm:$0xff]
      %v2144 = vld [vmem:[#allocation2 + $0x178] sm:$0xff]
      %v2145 = vld [vmem:[#allocation2 + $0x180] sm:$0xff]
      %v2146 = vld [vmem:[#allocation2 + $0x188] sm:$0xff]
      %v2147 = vld [vmem:[#allocation2 + $0x190] sm:$0xff]
      %v2148 = vld [vmem:[#allocation2 + $0x198] sm:$0xff]
      %v2149 = vld [vmem:[#allocation2 + $0x1a0] sm:$0xff]
      %v2150 = vld [vmem:[#allocation2 + $0x1a8] sm:$0xff]
      %v2151 = vld [vmem:[#allocation2 + $0x1b0] sm:$0xff]
      %v2152 = vld [vmem:[#allocation2 + $0x1b8] sm:$0xff]
      %v2153 = vld [vmem:[#allocation2 + $0x1c0] sm:$0xff]
      %v2154 = vld [vmem:[#allocation2 + $0x1c8] sm:$0xff]
      %v2155 = vld [vmem:[#allocation2 + $0x1d0] sm:$0xff]
      %v2156 = vld [vmem:[#allocation2 + $0x1d8] sm:$0xff]
      %v2157 = vld [vmem:[#allocation2 + $0x1e0] sm:$0xff]
      %v2158 = vld [vmem:[#allocation2 + $0x1e8] sm:$0xff]
      %v2159 = vld [vmem:[#allocation2 + $0x1f0] sm:$0xff]
      %v2160 = vld [vmem:[#allocation2 + $0x1f8] sm:$0xff]
      %v2161 = vld [vmem:[#allocation2 + $0x200] sm:$0xff]
      %v2162 = vld [vmem:[#allocation2 + $0x208] sm:$0xff]
      %v2163 = vld [vmem:[#allocation2 + $0x210] sm:$0xff]
      %v2164 = vld [vmem:[#allocation2 + $0x218] sm:$0xff]
      %v2165 = vld [vmem:[#allocation2 + $0x220] sm:$0xff]
      %v2166 = vld [vmem:[#allocation2 + $0x228] sm:$0xff]
      %v2167 = vld [vmem:[#allocation2 + $0x230] sm:$0xff]
      %v2168 = vld [vmem:[#allocation2 + $0x238] sm:$0xff]
      %v2169 = vld [vmem:[%s2] sm:$0xff]
      %v2170 = vld [vmem:[%s2 + $0x8] sm:$0xff]
      %v2171 = vld [vmem:[%s2 + $0x10] sm:$0xff]
      %v2172 = vld [vmem:[%s2 + $0x18] sm:$0xff]
      %v2173 = vld [vmem:[%s2 + $0x20] sm:$0xff]
      %v2174 = vld [vmem:[%s2 + $0x28] sm:$0xff]
      %v2175 = vld [vmem:[%s2 + $0x30] sm:$0xff]
      %v2176 = vld [vmem:[%s2 + $0x38] sm:$0xff]
      %v2177 = vld [vmem:[%s2 + $0x40] sm:$0xff]
      %v2178 = vld [vmem:[%s2 + $0x48] sm:$0xff]
      %v2179 = vld [vmem:[%s2 + $0x50] sm:$0xff]
      %v2180 = vld [vmem:[%s2 + $0x58] sm:$0xff]
      %v2181 = vld [vmem:[%s2 + $0x60] sm:$0xff]
      %v2182 = vld [vmem:[%s2 + $0x68] sm:$0xff]
      %v2183 = vld [vmem:[%s2 + $0x70] sm:$0xff]
      %v2184 = vld [vmem:[%s2 + $0x78] sm:$0xff]
      %v2185 = vld [vmem:[%s2 + $0x80] sm:$0xff]
      %v2186 = vld [vmem:[%s2 + $0x88] sm:$0xff]
      %v2187 = vld [vmem:[%s2 + $0x90] sm:$0xff]
      %v2188 = vld [vmem:[%s2 + $0x98] sm:$0xff]
      %v2189 = vld [vmem:[%s2 + $0xa0] sm:$0xff]
      %v2190 = vld [vmem:[%s2 + $0xa8] sm:$0xff]
      %v2191 = vld [vmem:[%s2 + $0xb0] sm:$0xff]
      %v2192 = vld [vmem:[%s2 + $0xb8] sm:$0xff]
      %v2265 = vunpack.c.l.b16 %v2097
      %v2266 = vunpack.c.h.b16 %v2097
      %v2267 = vunpack.c.l.b16 %v2098
      %v2268 = vunpack.c.h.b16 %v2098
      %v2269 = vunpack.c.l.b16 %v2099
      %v2270 = vunpack.c.h.b16 %v2099
      %v2271 = vunpack.c.l.b16 %v2100
      %v2272 = vunpack.c.h.b16 %v2100
      %v2273 = vunpack.c.l.b16 %v2101
      %v2274 = vunpack.c.h.b16 %v2101
      %v2275 = vunpack.c.l.b16 %v2102
      %v2276 = vunpack.c.h.b16 %v2102
      %v2277 = vunpack.c.l.b16 %v2103
      %v2278 = vunpack.c.h.b16 %v2103
      %v2279 = vunpack.c.l.b16 %v2104
      %v2280 = vunpack.c.h.b16 %v2104
      %v2281 = vunpack.c.l.b16 %v2105
      %v2282 = vunpack.c.h.b16 %v2105
      %v2283 = vunpack.c.l.b16 %v2106
      %v2284 = vunpack.c.h.b16 %v2106
      %v2285 = vunpack.c.l.b16 %v2107
      %v2286 = vunpack.c.h.b16 %v2107
      %v2287 = vunpack.c.l.b16 %v2108
      %v2288 = vunpack.c.h.b16 %v2108
      %v2289 = vunpack.c.l.b16 %v2109
      %v2290 = vunpack.c.h.b16 %v2109
      %v2291 = vunpack.c.l.b16 %v2110
      %v2292 = vunpack.c.h.b16 %v2110
      %v2293 = vunpack.c.l.b16 %v2111
      %v2294 = vunpack.c.h.b16 %v2111
      %v2295 = vunpack.c.l.b16 %v2112
      %v2296 = vunpack.c.h.b16 %v2112
      %v2297 = vunpack.c.l.b16 %v2113
      %v2298 = vunpack.c.h.b16 %v2113
      %v2299 = vunpack.c.l.b16 %v2114
      %v2300 = vunpack.c.h.b16 %v2114
      %v2301 = vunpack.c.l.b16 %v2115
      %v2302 = vunpack.c.h.b16 %v2115
      %v2303 = vunpack.c.l.b16 %v2116
      %v2304 = vunpack.c.h.b16 %v2116
      %v2305 = vunpack.c.l.b16 %v2117
      %v2306 = vunpack.c.h.b16 %v2117
      %v2307 = vunpack.c.l.b16 %v2118
      %v2308 = vunpack.c.h.b16 %v2118
      %v2309 = vunpack.c.l.b16 %v2119
      %v2310 = vunpack.c.h.b16 %v2119
      %v2311 = vunpack.c.l.b16 %v2120
      %v2312 = vunpack.c.h.b16 %v2120
      %v2313 = vunpack.c.l.b16 %v2121
      %v2314 = vunpack.c.h.b16 %v2121
      %v2315 = vunpack.c.l.b16 %v2122
      %v2316 = vunpack.c.h.b16 %v2122
      %v2317 = vunpack.c.l.b16 %v2123
      %v2318 = vunpack.c.h.b16 %v2123
      %v2319 = vunpack.c.l.b16 %v2124
      %v2320 = vunpack.c.h.b16 %v2124
      %v2321 = vunpack.c.l.b16 %v2125
      %v2322 = vunpack.c.h.b16 %v2125
      %v2323 = vunpack.c.l.b16 %v2126
      %v2324 = vunpack.c.h.b16 %v2126
      %v2325 = vunpack.c.l.b16 %v2127
      %v2326 = vunpack.c.h.b16 %v2127
      %v2327 = vunpack.c.l.b16 %v2128
      %v2328 = vunpack.c.h.b16 %v2128
      %v2329 = vunpack.c.l.b16 %v2129
      %v2330 = vunpack.c.h.b16 %v2129
      %v2331 = vunpack.c.l.b16 %v2130
      %v2332 = vunpack.c.h.b16 %v2130
      %v2333 = vunpack.c.l.b16 %v2131
      %v2334 = vunpack.c.h.b16 %v2131
      %v2335 = vunpack.c.l.b16 %v2132
      %v2336 = vunpack.c.h.b16 %v2132
      %v2337 = vunpack.c.l.b16 %v2133
      %v2338 = vunpack.c.h.b16 %v2133
      %v2339 = vunpack.c.l.b16 %v2134
      %v2340 = vunpack.c.h.b16 %v2134
      %v2341 = vunpack.c.l.b16 %v2135
      %v2342 = vunpack.c.h.b16 %v2135
      %v2343 = vunpack.c.l.b16 %v2136
      %v2344 = vunpack.c.h.b16 %v2136
      %v2345 = vunpack.c.l.b16 %v2137
      %v2346 = vunpack.c.h.b16 %v2137
      %v2347 = vunpack.c.l.b16 %v2138
      %v2348 = vunpack.c.h.b16 %v2138
      %v2349 = vunpack.c.l.b16 %v2139
      %v2350 = vunpack.c.h.b16 %v2139
      %v2351 = vunpack.c.l.b16 %v2140
      %v2352 = vunpack.c.h.b16 %v2140
      %v2353 = vunpack.c.l.b16 %v2141
      %v2354 = vunpack.c.h.b16 %v2141
      %v2355 = vunpack.c.l.b16 %v2142
      %v2356 = vunpack.c.h.b16 %v2142
      %v2357 = vunpack.c.l.b16 %v2143
      %v2358 = vunpack.c.h.b16 %v2143
      %v2359 = vunpack.c.l.b16 %v2144
      %v2360 = vunpack.c.h.b16 %v2144
      %v2361 = vunpack.c.l.b16 %v2145
      %v2362 = vunpack.c.h.b16 %v2145
      %v2363 = vunpack.c.l.b16 %v2146
      %v2364 = vunpack.c.h.b16 %v2146
      %v2365 = vunpack.c.l.b16 %v2147
      %v2366 = vunpack.c.h.b16 %v2147
      %v2367 = vunpack.c.l.b16 %v2148
      %v2368 = vunpack.c.h.b16 %v2148
      %v2369 = vunpack.c.l.b16 %v2149
      %v2370 = vunpack.c.h.b16 %v2149
      %v2371 = vunpack.c.l.b16 %v2150
      %v2372 = vunpack.c.h.b16 %v2150
      %v2373 = vunpack.c.l.b16 %v2151
      %v2374 = vunpack.c.h.b16 %v2151
      %v2375 = vunpack.c.l.b16 %v2152
      %v2376 = vunpack.c.h.b16 %v2152
      %v2377 = vunpack.c.l.b16 %v2153
      %v2378 = vunpack.c.h.b16 %v2153
      %v2379 = vunpack.c.l.b16 %v2154
      %v2380 = vunpack.c.h.b16 %v2154
      %v2381 = vunpack.c.l.b16 %v2155
      %v2382 = vunpack.c.h.b16 %v2155
      %v2383 = vunpack.c.l.b16 %v2156
      %v2384 = vunpack.c.h.b16 %v2156
      %v2385 = vunpack.c.l.b16 %v2157
      %v2386 = vunpack.c.h.b16 %v2157
      %v2387 = vunpack.c.l.b16 %v2158
      %v2388 = vunpack.c.h.b16 %v2158
      %v2389 = vunpack.c.l.b16 %v2159
      %v2390 = vunpack.c.h.b16 %v2159
      %v2391 = vunpack.c.l.b16 %v2160
      %v2392 = vunpack.c.h.b16 %v2160
      %v2393 = vunpack.c.l.b16 %v2161
      %v2394 = vunpack.c.h.b16 %v2161
      %v2395 = vunpack.c.l.b16 %v2162
      %v2396 = vunpack.c.h.b16 %v2162
      %v2397 = vunpack.c.l.b16 %v2163
      %v2398 = vunpack.c.h.b16 %v2163
      %v2399 = vunpack.c.l.b16 %v2164
      %v2400 = vunpack.c.h.b16 %v2164
      %v2401 = vunpack.c.l.b16 %v2165
      %v2402 = vunpack.c.h.b16 %v2165
      %v2403 = vunpack.c.l.b16 %v2166
      %v2404 = vunpack.c.h.b16 %v2166
      %v2405 = vunpack.c.l.b16 %v2167
      %v2406 = vunpack.c.h.b16 %v2167
      %v2407 = vunpack.c.l.b16 %v2168
      %v2408 = vunpack.c.h.b16 %v2168
      %v2409 = vpack.c.b16 %v2267, %v2265
      %v2410 = vpack.c.b16 %v2268, %v2266
      %v2411 = vpack.c.b16 %v2271, %v2269
      %v2412 = vpack.c.b16 %v2272, %v2270
      %v2413 = vpack.c.b16 %v2275, %v2273
      %v2414 = vpack.c.b16 %v2276, %v2274
      %v2415 = vpack.c.b16 %v2279, %v2277
      %v2416 = vpack.c.b16 %v2280, %v2278
      %v2417 = vpack.c.b16 %v2283, %v2281
      %v2418 = vpack.c.b16 %v2284, %v2282
      %v2419 = vpack.c.b16 %v2287, %v2285
      %v2420 = vpack.c.b16 %v2288, %v2286
      %v2421 = vpack.c.b16 %v2291, %v2289
      %v2422 = vpack.c.b16 %v2292, %v2290
      %v2423 = vpack.c.b16 %v2295, %v2293
      %v2424 = vpack.c.b16 %v2296, %v2294
      %v2425 = vpack.c.b16 %v2299, %v2297
      %v2426 = vpack.c.b16 %v2300, %v2298
      %v2427 = vpack.c.b16 %v2303, %v2301
      %v2428 = vpack.c.b16 %v2304, %v2302
      %v2429 = vpack.c.b16 %v2307, %v2305
      %v2430 = vpack.c.b16 %v2308, %v2306
      %v2431 = vpack.c.b16 %v2311, %v2309
      %v2432 = vpack.c.b16 %v2312, %v2310
      %v2433 = vpack.c.b16 %v2315, %v2313
      %v2434 = vpack.c.b16 %v2316, %v2314
      %v2435 = vpack.c.b16 %v2319, %v2317
      %v2436 = vpack.c.b16 %v2320, %v2318
      %v2437 = vpack.c.b16 %v2323, %v2321
      %v2438 = vpack.c.b16 %v2324, %v2322
      %v2439 = vpack.c.b16 %v2327, %v2325
      %v2440 = vpack.c.b16 %v2328, %v2326
      %v2441 = vpack.c.b16 %v2331, %v2329
      %v2442 = vpack.c.b16 %v2332, %v2330
      %v2443 = vpack.c.b16 %v2335, %v2333
      %v2444 = vpack.c.b16 %v2336, %v2334
      %v2445 = vpack.c.b16 %v2339, %v2337
      %v2446 = vpack.c.b16 %v2340, %v2338
      %v2447 = vpack.c.b16 %v2343, %v2341
      %v2448 = vpack.c.b16 %v2344, %v2342
      %v2449 = vpack.c.b16 %v2347, %v2345
      %v2450 = vpack.c.b16 %v2348, %v2346
      %v2451 = vpack.c.b16 %v2351, %v2349
      %v2452 = vpack.c.b16 %v2352, %v2350
      %v2453 = vpack.c.b16 %v2355, %v2353
      %v2454 = vpack.c.b16 %v2356, %v2354
      %v2455 = vpack.c.b16 %v2359, %v2357
      %v2456 = vpack.c.b16 %v2360, %v2358
      %v2457 = vpack.c.b16 %v2363, %v2361
      %v2458 = vpack.c.b16 %v2364, %v2362
      %v2459 = vpack.c.b16 %v2367, %v2365
      %v2460 = vpack.c.b16 %v2368, %v2366
      %v2461 = vpack.c.b16 %v2371, %v2369
      %v2462 = vpack.c.b16 %v2372, %v2370
      %v2463 = vpack.c.b16 %v2375, %v2373
      %v2464 = vpack.c.b16 %v2376, %v2374
      %v2465 = vpack.c.b16 %v2379, %v2377
      %v2466 = vpack.c.b16 %v2380, %v2378
      %v2467 = vpack.c.b16 %v2383, %v2381
      %v2468 = vpack.c.b16 %v2384, %v2382
      %v2469 = vpack.c.b16 %v2387, %v2385
      %v2470 = vpack.c.b16 %v2388, %v2386
      %v2471 = vpack.c.b16 %v2391, %v2389
      %v2472 = vpack.c.b16 %v2392, %v2390
      %v2473 = vpack.c.b16 %v2395, %v2393
      %v2474 = vpack.c.b16 %v2396, %v2394
      %v2475 = vpack.c.b16 %v2399, %v2397
      %v2476 = vpack.c.b16 %v2400, %v2398
      %v2477 = vpack.c.b16 %v2403, %v2401
      %v2478 = vpack.c.b16 %v2404, %v2402
      %v2479 = vpack.c.b16 %v2407, %v2405
      %v2480 = vpack.c.b16 %v2408, %v2406
      %v2541 = vunpack.c.l.b16 %v2169
      %v2542 = vunpack.c.h.b16 %v2169
      %v2543 = vunpack.c.l.b16 %v2170
      %v2544 = vunpack.c.h.b16 %v2170
      %v2545 = vunpack.c.l.b16 %v2171
      %v2546 = vunpack.c.h.b16 %v2171
      %v2547 = vunpack.c.l.b16 %v2172
      %v2548 = vunpack.c.h.b16 %v2172
      %v2549 = vunpack.c.l.b16 %v2173
      %v2550 = vunpack.c.h.b16 %v2173
      %v2551 = vunpack.c.l.b16 %v2174
      %v2552 = vunpack.c.h.b16 %v2174
      %v2553 = vunpack.c.l.b16 %v2175
      %v2554 = vunpack.c.h.b16 %v2175
      %v2555 = vunpack.c.l.b16 %v2176
      %v2556 = vunpack.c.h.b16 %v2176
      %v2557 = vunpack.c.l.b16 %v2177
      %v2558 = vunpack.c.h.b16 %v2177
      %v2559 = vunpack.c.l.b16 %v2178
      %v2560 = vunpack.c.h.b16 %v2178
      %v2561 = vunpack.c.l.b16 %v2179
      %v2562 = vunpack.c.h.b16 %v2179
      %v2563 = vunpack.c.l.b16 %v2180
      %v2564 = vunpack.c.h.b16 %v2180
      %v2565 = vunpack.c.l.b16 %v2181
      %v2566 = vunpack.c.h.b16 %v2181
      %v2567 = vunpack.c.l.b16 %v2182
      %v2568 = vunpack.c.h.b16 %v2182
      %v2569 = vunpack.c.l.b16 %v2183
      %v2570 = vunpack.c.h.b16 %v2183
      %v2571 = vunpack.c.l.b16 %v2184
      %v2572 = vunpack.c.h.b16 %v2184
      %v2573 = vunpack.c.l.b16 %v2185
      %v2574 = vunpack.c.h.b16 %v2185
      %v2575 = vunpack.c.l.b16 %v2186
      %v2576 = vunpack.c.h.b16 %v2186
      %v2577 = vunpack.c.l.b16 %v2187
      %v2578 = vunpack.c.h.b16 %v2187
      %v2579 = vunpack.c.l.b16 %v2188
      %v2580 = vunpack.c.h.b16 %v2188
      %v2581 = vunpack.c.l.b16 %v2189
      %v2582 = vunpack.c.h.b16 %v2189
      %v2583 = vunpack.c.l.b16 %v2190
      %v2584 = vunpack.c.h.b16 %v2190
      %v2585 = vunpack.c.l.b16 %v2191
      %v2586 = vunpack.c.h.b16 %v2191
      %v2587 = vunpack.c.l.b16 %v2192
      %v2588 = vunpack.c.h.b16 %v2192
      %v2589 = vpack.c.b16 %v2543, %v2541
      %v2590 = vpack.c.b16 %v2544, %v2542
      %v2591 = vpack.c.b16 %v2547, %v2545
      %v2592 = vpack.c.b16 %v2548, %v2546
      %v2593 = vpack.c.b16 %v2551, %v2549
      %v2594 = vpack.c.b16 %v2552, %v2550
      %v2595 = vpack.c.b16 %v2555, %v2553
      %v2596 = vpack.c.b16 %v2556, %v2554
      %v2597 = vpack.c.b16 %v2559, %v2557
      %v2598 = vpack.c.b16 %v2560, %v2558
      %v2599 = vpack.c.b16 %v2563, %v2561
      %v2600 = vpack.c.b16 %v2564, %v2562
      %v2601 = vpack.c.b16 %v2567, %v2565
      %v2602 = vpack.c.b16 %v2568, %v2566
      %v2603 = vpack.c.b16 %v2571, %v2569
      %v2604 = vpack.c.b16 %v2572, %v2570
      %v2605 = vpack.c.b16 %v2575, %v2573
      %v2606 = vpack.c.b16 %v2576, %v2574
      %v2607 = vpack.c.b16 %v2579, %v2577
      %v2608 = vpack.c.b16 %v2580, %v2578
      %v2609 = vpack.c.b16 %v2583, %v2581
      %v2610 = vpack.c.b16 %v2584, %v2582
      %v2611 = vpack.c.b16 %v2587, %v2585
      %v2612 = vpack.c.b16 %v2588, %v2586
      %vm2637 = vcmask 523264
      %v2639 = vsel %vm2637, %v2410, 0
      %v2642 = vsel %vm2637, %v2412, 0
      %v2645 = vsel %vm2637, %v2414, 0
      %v2648 = vsel %vm2637, %v2416, 0
      %v2651 = vsel %vm2637, %v2418, 0
      %v2654 = vsel %vm2637, %v2420, 0
      %v2657 = vsel %vm2637, %v2422, 0
      %v2660 = vsel %vm2637, %v2424, 0
      %v2663 = vsel %vm2637, %v2426, 0
      %v2666 = vsel %vm2637, %v2428, 0
      %v2669 = vsel %vm2637, %v2430, 0
      %v2672 = vsel %vm2637, %v2432, 0
      %v2675 = vsel %vm2637, %v2434, 0
      %v2678 = vsel %vm2637, %v2436, 0
      %v2681 = vsel %vm2637, %v2438, 0
      %v2684 = vsel %vm2637, %v2440, 0
      %v2687 = vsel %vm2637, %v2442, 0
      %v2690 = vsel %vm2637, %v2444, 0
      %v2693 = vsel %vm2637, %v2446, 0
      %v2696 = vsel %vm2637, %v2448, 0
      %v2699 = vsel %vm2637, %v2450, 0
      %v2702 = vsel %vm2637, %v2452, 0
      %v2705 = vsel %vm2637, %v2454, 0
      %v2708 = vsel %vm2637, %v2456, 0
      %v2711 = vsel %vm2637, %v2458, 0
      %v2714 = vsel %vm2637, %v2460, 0
      %v2717 = vsel %vm2637, %v2462, 0
      %v2720 = vsel %vm2637, %v2464, 0
      %v2723 = vsel %vm2637, %v2466, 0
      %v2726 = vsel %vm2637, %v2468, 0
      %v2729 = vsel %vm2637, %v2470, 0
      %v2732 = vsel %vm2637, %v2472, 0
      %v2735 = vsel %vm2637, %v2474, 0
      %v2738 = vsel %vm2637, %v2476, 0
      %v2741 = vsel %vm2637, %v2478, 0
      %v2744 = vsel %vm2637, %v2480, 0
      %2746 = vmatprep.subr.bf16.mxu0 %v2604
      %2747 = vmatpush1.bf16.msra.mxu0 %v2603
      %2748 = vmatprep.subr.bf16.mxu0 %v2602
      %2749 = vmatpush1.bf16.msra.mxu0 %v2601
      %2750 = vmatprep.subr.bf16.mxu0 %v2600
      %2751 = vmatpush1.bf16.msra.mxu0 %v2599
      %2752 = vmatprep.subr.bf16.mxu0 %v2598
      %2753 = vmatpush1.bf16.msra.mxu0 %v2597
      %2754 = vmatprep.subr.bf16.mxu0 %v2596
      %2755 = vmatpush1.bf16.msra.mxu0 %v2595
      %2756 = vmatprep.subr.bf16.mxu0 %v2594
      %2757 = vmatpush1.bf16.msra.mxu0 %v2593
      %2758 = vmatprep.subr.bf16.mxu0 %v2592
      %2759 = vmatpush1.bf16.msra.mxu0 %v2591
      %2760 = vmatprep.subr.bf16.mxu0 %v2590
      %2761 = vmatpush1.bf16.msra.mxu0 %v2589
      %2762 = vmatprep.subr.bf16.mxu0 0
      %2763 = vmatpush2.bf16.msra.mxu0 0
      %2764 = vmatprep.subr.bf16.mxu0 0
      %2765 = vmatpush2.bf16.msra.mxu0 0
      %2766 = vmatprep.subr.bf16.mxu0 0
      %2767 = vmatpush2.bf16.msra.mxu0 0
      %2768 = vmatprep.subr.bf16.mxu0 0
      %2769 = vmatpush2.bf16.msra.mxu0 0
      %2770 = vmatprep.subr.bf16.mxu0 %v2612
      %2771 = vmatpush2.bf16.msra.mxu0 %v2611
      %2772 = vmatprep.subr.bf16.mxu0 %v2610
      %2773 = vmatpush2.bf16.msra.mxu0 %v2609
      %2774 = vmatprep.subr.bf16.mxu0 %v2608
      %2775 = vmatpush2.bf16.msra.mxu0 %v2607
      %2776 = vmatprep.subr.bf16.mxu0 %v2606
      %2777 = vmatpush2.bf16.msra.mxu0 %v2605
      %2778 = vmatprep.mubr.bf16.mxu0 %v2639
      %2779 = vmatmul.mubr.bf16.gmra.mxu0 %v2409
      %v2780 = vpop.f32.mrf.mxu0
      %v2781 = vadd.f32 0.0, %v2780
      %v2782 = vpop.f32.mrf.mxu0
      %v2783 = vpop.f32.mrf.mxu0
      %v2784 = vadd.f32 0.0, %v2783
      %v2785 = vpop.f32.mrf.mxu0
      %2786 = vmatprep.mubr.bf16.mxu0 %v2642
      %2787 = vmatmul.mubr.bf16.gmra.mxu0 %v2411
      %v2788 = vpop.f32.mrf.mxu0
      %v2789 = vadd.f32 0.0, %v2788
      %v2790 = vpop.f32.mrf.mxu0
      %v2791 = vpop.f32.mrf.mxu0
      %v2792 = vadd.f32 0.0, %v2791
      %v2793 = vpop.f32.mrf.mxu0
      %2794 = vmatprep.mubr.bf16.mxu0 %v2645
      %2795 = vmatmul.mubr.bf16.gmra.mxu0 %v2413
      %v2796 = vpop.f32.mrf.mxu0
      %v2797 = vadd.f32 0.0, %v2796
      %v2798 = vpop.f32.mrf.mxu0
      %v2799 = vpop.f32.mrf.mxu0
      %v2800 = vadd.f32 0.0, %v2799
      %v2801 = vpop.f32.mrf.mxu0
      %2802 = vmatprep.mubr.bf16.mxu0 %v2648
      %2803 = vmatmul.mubr.bf16.gmra.mxu0 %v2415
      %v2804 = vpop.f32.mrf.mxu0
      %v2805 = vadd.f32 0.0, %v2804
      %v2806 = vpop.f32.mrf.mxu0
      %v2807 = vpop.f32.mrf.mxu0
      %v2808 = vadd.f32 0.0, %v2807
      %v2809 = vpop.f32.mrf.mxu0
      %2810 = vmatprep.mubr.bf16.mxu0 %v2651
      %2811 = vmatmul.mubr.bf16.gmra.mxu0 %v2417
      %v2812 = vpop.f32.mrf.mxu0
      %v2813 = vadd.f32 0.0, %v2812
      %v2814 = vpop.f32.mrf.mxu0
      %v2815 = vadd.f32 0.0, %v2814
      %v2816 = vpop.f32.mrf.mxu0
      %v2817 = vadd.f32 0.0, %v2816
      %v2818 = vpop.f32.mrf.mxu0
      %v2819 = vadd.f32 0.0, %v2818
      %2820 = vmatprep.mubr.bf16.mxu0 %v2654
      %2821 = vmatmul.mubr.bf16.gmra.mxu0 %v2419
      %v2822 = vpop.f32.mrf.mxu0
      %v2823 = vadd.f32 0.0, %v2822
      %v2824 = vpop.f32.mrf.mxu0
      %v2825 = vadd.f32 0.0, %v2824
      %v2826 = vpop.f32.mrf.mxu0
      %v2827 = vadd.f32 0.0, %v2826
      %v2828 = vpop.f32.mrf.mxu0
      %v2829 = vadd.f32 0.0, %v2828
      %2830 = vmatprep.mubr.bf16.mxu0 %v2657
      %2831 = vmatmul.mubr.bf16.gmra.mxu0 %v2421
      %v2832 = vpop.f32.mrf.mxu0
      %v2833 = vadd.f32 0.0, %v2832
      %v2834 = vpop.f32.mrf.mxu0
      %v2835 = vadd.f32 0.0, %v2834
      %v2836 = vpop.f32.mrf.mxu0
      %v2837 = vadd.f32 0.0, %v2836
      %v2838 = vpop.f32.mrf.mxu0
      %v2839 = vadd.f32 0.0, %v2838
      %2840 = vmatprep.mubr.bf16.mxu0 %v2660
      %2841 = vmatmul.mubr.bf16.gmra.mxu0 %v2423
      %v2842 = vpop.f32.mrf.mxu0
      %v2843 = vadd.f32 0.0, %v2842
      %v2844 = vpop.f32.mrf.mxu0
      %v2845 = vadd.f32 0.0, %v2844
      %v2846 = vpop.f32.mrf.mxu0
      %v2847 = vadd.f32 0.0, %v2846
      %v2848 = vpop.f32.mrf.mxu0
      %v2849 = vadd.f32 0.0, %v2848
      %2850 = vmatprep.mubr.bf16.mxu0 %v2663
      %2851 = vmatmul.mubr.bf16.gmra.mxu0 %v2425
      %v2852 = vpop.f32.mrf.mxu0
      %v2853 = vadd.f32 0.0, %v2852
      %v2854 = vpop.f32.mrf.mxu0
      %v2855 = vadd.f32 0.0, %v2854
      %v2856 = vpop.f32.mrf.mxu0
      %v2857 = vadd.f32 0.0, %v2856
      %v2858 = vpop.f32.mrf.mxu0
      %v2859 = vadd.f32 0.0, %v2858
      %2860 = vmatprep.mubr.bf16.mxu0 %v2666
      %2861 = vmatmul.mubr.bf16.gmra.mxu0 %v2427
      %v2862 = vpop.f32.mrf.mxu0
      %v2863 = vadd.f32 0.0, %v2862
      %v2864 = vpop.f32.mrf.mxu0
      %v2865 = vadd.f32 0.0, %v2864
      %v2866 = vpop.f32.mrf.mxu0
      %v2867 = vadd.f32 0.0, %v2866
      %v2868 = vpop.f32.mrf.mxu0
      %v2869 = vadd.f32 0.0, %v2868
      %2870 = vmatprep.mubr.bf16.mxu0 %v2669
      %2871 = vmatmul.mubr.bf16.gmra.mxu0 %v2429
      %v2872 = vpop.f32.mrf.mxu0
      %v2873 = vadd.f32 0.0, %v2872
      %v2874 = vpop.f32.mrf.mxu0
      %v2875 = vadd.f32 0.0, %v2874
      %v2876 = vpop.f32.mrf.mxu0
      %v2877 = vadd.f32 0.0, %v2876
      %v2878 = vpop.f32.mrf.mxu0
      %v2879 = vadd.f32 0.0, %v2878
      %2880 = vmatprep.mubr.bf16.mxu0 %v2672
      %2881 = vmatmul.mubr.bf16.gmra.mxu0 %v2431
      %v2882 = vpop.f32.mrf.mxu0
      %v2883 = vadd.f32 0.0, %v2882
      %v2884 = vpop.f32.mrf.mxu0
      %v2885 = vadd.f32 0.0, %v2884
      %v2886 = vpop.f32.mrf.mxu0
      %v2887 = vadd.f32 0.0, %v2886
      %v2888 = vpop.f32.mrf.mxu0
      %v2889 = vadd.f32 0.0, %v2888
      %2890 = vmatprep.mubr.bf16.mxu0 %v2675
      %2891 = vmatmul.mubr.bf16.gmra.mxu0 %v2433
      %v2892 = vpop.f32.mrf.mxu0
      %v2893 = vadd.f32 0.0, %v2892
      %v2894 = vpop.f32.mrf.mxu0
      %v2895 = vadd.f32 0.0, %v2894
      %v2896 = vpop.f32.mrf.mxu0
      %v2897 = vadd.f32 0.0, %v2896
      %v2898 = vpop.f32.mrf.mxu0
      %v2899 = vadd.f32 0.0, %v2898
      %2900 = vmatprep.mubr.bf16.mxu0 %v2678
      %2901 = vmatmul.mubr.bf16.gmra.mxu0 %v2435
      %v2902 = vpop.f32.mrf.mxu0
      %v2903 = vadd.f32 0.0, %v2902
      %v2904 = vpop.f32.mrf.mxu0
      %v2905 = vadd.f32 0.0, %v2904
      %v2906 = vpop.f32.mrf.mxu0
      %v2907 = vadd.f32 0.0, %v2906
      %v2908 = vpop.f32.mrf.mxu0
      %v2909 = vadd.f32 0.0, %v2908
      %2910 = vmatprep.mubr.bf16.mxu0 %v2681
      %2911 = vmatmul.mubr.bf16.gmra.mxu0 %v2437
      %v2912 = vpop.f32.mrf.mxu0
      %v2913 = vadd.f32 0.0, %v2912
      %v2914 = vpop.f32.mrf.mxu0
      %v2915 = vadd.f32 0.0, %v2914
      %v2916 = vpop.f32.mrf.mxu0
      %v2917 = vadd.f32 0.0, %v2916
      %v2918 = vpop.f32.mrf.mxu0
      %v2919 = vadd.f32 0.0, %v2918
      %2920 = vmatprep.mubr.bf16.mxu0 %v2684
      %2921 = vmatmul.mubr.bf16.gmra.mxu0 %v2439
      %v2922 = vpop.f32.mrf.mxu0
      %v2923 = vadd.f32 0.0, %v2922
      %v2924 = vpop.f32.mrf.mxu0
      %v2925 = vadd.f32 0.0, %v2924
      %v2926 = vpop.f32.mrf.mxu0
      %v2927 = vadd.f32 0.0, %v2926
      %v2928 = vpop.f32.mrf.mxu0
      %v2929 = vadd.f32 0.0, %v2928
      %2930 = vmatprep.mubr.bf16.mxu0 %v2687
      %2931 = vmatmul.mubr.bf16.gmra.mxu0 %v2441
      %v2932 = vpop.f32.mrf.mxu0
      %v2933 = vadd.f32 0.0, %v2932
      %v2934 = vpop.f32.mrf.mxu0
      %v2935 = vadd.f32 0.0, %v2934
      %v2936 = vpop.f32.mrf.mxu0
      %v2937 = vadd.f32 0.0, %v2936
      %v2938 = vpop.f32.mrf.mxu0
      %v2939 = vadd.f32 0.0, %v2938
      %2940 = vmatprep.mubr.bf16.mxu0 %v2690
      %2941 = vmatmul.mubr.bf16.gmra.mxu0 %v2443
      %v2942 = vpop.f32.mrf.mxu0
      %v2943 = vadd.f32 0.0, %v2942
      %v2944 = vpop.f32.mrf.mxu0
      %v2945 = vadd.f32 0.0, %v2944
      %v2946 = vpop.f32.mrf.mxu0
      %v2947 = vadd.f32 0.0, %v2946
      %v2948 = vpop.f32.mrf.mxu0
      %v2949 = vadd.f32 0.0, %v2948
      %2950 = vmatprep.mubr.bf16.mxu0 %v2693
      %2951 = vmatmul.mubr.bf16.gmra.mxu0 %v2445
      %v2952 = vpop.f32.mrf.mxu0
      %v2953 = vadd.f32 0.0, %v2952
      %v2954 = vpop.f32.mrf.mxu0
      %v2955 = vadd.f32 0.0, %v2954
      %v2956 = vpop.f32.mrf.mxu0
      %v2957 = vadd.f32 0.0, %v2956
      %v2958 = vpop.f32.mrf.mxu0
      %v2959 = vadd.f32 0.0, %v2958
      %2960 = vmatprep.mubr.bf16.mxu0 %v2696
      %2961 = vmatmul.mubr.bf16.gmra.mxu0 %v2447
      %v2962 = vpop.f32.mrf.mxu0
      %v2963 = vadd.f32 0.0, %v2962
      %v2964 = vpop.f32.mrf.mxu0
      %v2965 = vadd.f32 0.0, %v2964
      %v2966 = vpop.f32.mrf.mxu0
      %v2967 = vadd.f32 0.0, %v2966
      %v2968 = vpop.f32.mrf.mxu0
      %v2969 = vadd.f32 0.0, %v2968
      %2970 = vmatprep.mubr.bf16.mxu0 %v2699
      %2971 = vmatmul.mubr.bf16.gmra.mxu0 %v2449
      %v2972 = vpop.f32.mrf.mxu0
      %v2973 = vadd.f32 0.0, %v2972
      %v2974 = vpop.f32.mrf.mxu0
      %v2975 = vadd.f32 0.0, %v2974
      %v2976 = vpop.f32.mrf.mxu0
      %v2977 = vadd.f32 0.0, %v2976
      %v2978 = vpop.f32.mrf.mxu0
      %v2979 = vadd.f32 0.0, %v2978
      %2980 = vmatprep.mubr.bf16.mxu0 %v2702
      %2981 = vmatmul.mubr.bf16.gmra.mxu0 %v2451
      %v2982 = vpop.f32.mrf.mxu0
      %v2983 = vadd.f32 0.0, %v2982
      %v2984 = vpop.f32.mrf.mxu0
      %v2985 = vadd.f32 0.0, %v2984
      %v2986 = vpop.f32.mrf.mxu0
      %v2987 = vadd.f32 0.0, %v2986
      %v2988 = vpop.f32.mrf.mxu0
      %v2989 = vadd.f32 0.0, %v2988
      %2990 = vmatprep.mubr.bf16.mxu0 %v2705
      %2991 = vmatmul.mubr.bf16.gmra.mxu0 %v2453
      %v2992 = vpop.f32.mrf.mxu0
      %v2993 = vadd.f32 0.0, %v2992
      %v2994 = vpop.f32.mrf.mxu0
      %v2995 = vadd.f32 0.0, %v2994
      %v2996 = vpop.f32.mrf.mxu0
      %v2997 = vadd.f32 0.0, %v2996
      %v2998 = vpop.f32.mrf.mxu0
      %v2999 = vadd.f32 0.0, %v2998
      %3000 = vmatprep.mubr.bf16.mxu0 %v2708
      %3001 = vmatmul.mubr.bf16.gmra.mxu0 %v2455
      %v3002 = vpop.f32.mrf.mxu0
      %v3003 = vadd.f32 0.0, %v3002
      %v3004 = vpop.f32.mrf.mxu0
      %v3005 = vadd.f32 0.0, %v3004
      %v3006 = vpop.f32.mrf.mxu0
      %v3007 = vadd.f32 0.0, %v3006
      %v3008 = vpop.f32.mrf.mxu0
      %v3009 = vadd.f32 0.0, %v3008
      %3010 = vmatprep.mubr.bf16.mxu0 %v2711
      %3011 = vmatmul.mubr.bf16.gmra.mxu0 %v2457
      %v3012 = vpop.f32.mrf.mxu0
      %v3013 = vadd.f32 0.0, %v3012
      %v3014 = vpop.f32.mrf.mxu0
      %v3015 = vadd.f32 0.0, %v3014
      %v3016 = vpop.f32.mrf.mxu0
      %v3017 = vadd.f32 0.0, %v3016
      %v3018 = vpop.f32.mrf.mxu0
      %v3019 = vadd.f32 0.0, %v3018
      %3020 = vmatprep.mubr.bf16.mxu0 %v2714
      %3021 = vmatmul.mubr.bf16.gmra.mxu0 %v2459
      %v3022 = vpop.f32.mrf.mxu0
      %v3023 = vadd.f32 0.0, %v3022
      %v3024 = vpop.f32.mrf.mxu0
      %v3025 = vadd.f32 0.0, %v3024
      %v3026 = vpop.f32.mrf.mxu0
      %v3027 = vadd.f32 0.0, %v3026
      %v3028 = vpop.f32.mrf.mxu0
      %v3029 = vadd.f32 0.0, %v3028
      %3030 = vmatprep.mubr.bf16.mxu0 %v2717
      %3031 = vmatmul.mubr.bf16.gmra.mxu0 %v2461
      %v3032 = vpop.f32.mrf.mxu0
      %v3033 = vadd.f32 0.0, %v3032
      %v3034 = vpop.f32.mrf.mxu0
      %v3035 = vadd.f32 0.0, %v3034
      %v3036 = vpop.f32.mrf.mxu0
      %v3037 = vadd.f32 0.0, %v3036
      %v3038 = vpop.f32.mrf.mxu0
      %v3039 = vadd.f32 0.0, %v3038
      %3040 = vmatprep.mubr.bf16.mxu0 %v2720
      %3041 = vmatmul.mubr.bf16.gmra.mxu0 %v2463
      %v3042 = vpop.f32.mrf.mxu0
      %v3043 = vadd.f32 0.0, %v3042
      %v3044 = vpop.f32.mrf.mxu0
      %v3045 = vadd.f32 0.0, %v3044
      %v3046 = vpop.f32.mrf.mxu0
      %v3047 = vadd.f32 0.0, %v3046
      %v3048 = vpop.f32.mrf.mxu0
      %v3049 = vadd.f32 0.0, %v3048
      %3050 = vmatprep.mubr.bf16.mxu0 %v2723
      %3051 = vmatmul.mubr.bf16.gmra.mxu0 %v2465
      %v3052 = vpop.f32.mrf.mxu0
      %v3053 = vadd.f32 0.0, %v3052
      %v3054 = vpop.f32.mrf.mxu0
      %v3055 = vadd.f32 0.0, %v3054
      %v3056 = vpop.f32.mrf.mxu0
      %v3057 = vadd.f32 0.0, %v3056
      %v3058 = vpop.f32.mrf.mxu0
      %v3059 = vadd.f32 0.0, %v3058
      %3060 = vmatprep.mubr.bf16.mxu0 %v2726
      %3061 = vmatmul.mubr.bf16.gmra.mxu0 %v2467
      %v3062 = vpop.f32.mrf.mxu0
      %v3063 = vadd.f32 0.0, %v3062
      %v3064 = vpop.f32.mrf.mxu0
      %v3065 = vadd.f32 0.0, %v3064
      %v3066 = vpop.f32.mrf.mxu0
      %v3067 = vadd.f32 0.0, %v3066
      %v3068 = vpop.f32.mrf.mxu0
      %v3069 = vadd.f32 0.0, %v3068
      %3070 = vmatprep.mubr.bf16.mxu0 %v2729
      %3071 = vmatmul.mubr.bf16.gmra.mxu0 %v2469
      %v3072 = vpop.f32.mrf.mxu0
      %v3073 = vadd.f32 0.0, %v3072
      %v3074 = vpop.f32.mrf.mxu0
      %v3075 = vadd.f32 0.0, %v3074
      %v3076 = vpop.f32.mrf.mxu0
      %v3077 = vadd.f32 0.0, %v3076
      %v3078 = vpop.f32.mrf.mxu0
      %v3079 = vadd.f32 0.0, %v3078
      %3080 = vmatprep.mubr.bf16.mxu0 %v2732
      %3081 = vmatmul.mubr.bf16.gmra.mxu0 %v2471
      %v3082 = vpop.f32.mrf.mxu0
      %v3083 = vadd.f32 0.0, %v3082
      %v3084 = vpop.f32.mrf.mxu0
      %v3085 = vadd.f32 0.0, %v3084
      %v3086 = vpop.f32.mrf.mxu0
      %v3087 = vadd.f32 0.0, %v3086
      %v3088 = vpop.f32.mrf.mxu0
      %v3089 = vadd.f32 0.0, %v3088
      %3090 = vmatprep.mubr.bf16.mxu0 %v2735
      %3091 = vmatmul.mubr.bf16.gmra.mxu0 %v2473
      %v3092 = vpop.f32.mrf.mxu0
      %v3093 = vadd.f32 0.0, %v3092
      %v3094 = vpop.f32.mrf.mxu0
      %v3095 = vadd.f32 0.0, %v3094
      %v3096 = vpop.f32.mrf.mxu0
      %v3097 = vadd.f32 0.0, %v3096
      %v3098 = vpop.f32.mrf.mxu0
      %v3099 = vadd.f32 0.0, %v3098
      %3100 = vmatprep.mubr.bf16.mxu0 %v2738
      %3101 = vmatmul.mubr.bf16.gmra.mxu0 %v2475
      %v3102 = vpop.f32.mrf.mxu0
      %v3103 = vadd.f32 0.0, %v3102
      %v3104 = vpop.f32.mrf.mxu0
      %v3105 = vadd.f32 0.0, %v3104
      %v3106 = vpop.f32.mrf.mxu0
      %v3107 = vadd.f32 0.0, %v3106
      %v3108 = vpop.f32.mrf.mxu0
      %v3109 = vadd.f32 0.0, %v3108
      %3110 = vmatprep.mubr.bf16.mxu0 %v2741
      %3111 = vmatmul.mubr.bf16.gmra.mxu0 %v2477
      %v3112 = vpop.f32.mrf.mxu0
      %v3113 = vpop.f32.mrf.mxu0
      %v3114 = vadd.f32 0.0, %v3113
      %v3115 = vpop.f32.mrf.mxu0
      %v3116 = vpop.f32.mrf.mxu0
      %v3117 = vadd.f32 0.0, %v3116
      %3118 = vmatprep.mubr.bf16.mxu0 %v2744
      %3119 = vmatmul.mubr.bf16.gmra.mxu0 %v2479
      %v3120 = vpop.f32.mrf.mxu0
      %v3121 = vpop.f32.mrf.mxu0
      %v3122 = vadd.f32 0.0, %v3121
      %v3123 = vpop.f32.mrf.mxu0
      %v3124 = vpop.f32.mrf.mxu0
      %v3125 = vadd.f32 0.0, %v3124
      %3126 = vdwg.mxu0
      %3191 = vrot.lane.b32.xlu0 %v2797, 64
      %v3192 = vpop.permute.xlu0 %3191
      %3193 = vrot.lane.b32.xlu0 %v2800, 64
      %v3194 = vpop.permute.xlu0 %3193
      %3195 = vrot.lane.b32.xlu0 %v2805, 64
      %v3196 = vpop.permute.xlu0 %3195
      %3197 = vrot.lane.b32.xlu0 %v2808, 64
      %v3198 = vpop.permute.xlu0 %3197
      %3199 = vrot.lane.b32.xlu0 %v2813, 64
      %v3200 = vpop.permute.xlu0 %3199
      %3201 = vrot.lane.b32.xlu0 %v2817, 64
      %v3202 = vpop.permute.xlu0 %3201
      %3203 = vrot.lane.b32.xlu0 %v2823, 64
      %v3204 = vpop.permute.xlu0 %3203
      %3205 = vrot.lane.b32.xlu0 %v2827, 64
      %v3206 = vpop.permute.xlu0 %3205
      %3207 = vrot.lane.b32.xlu0 %v2833, 64
      %v3208 = vpop.permute.xlu0 %3207
      %3209 = vrot.lane.b32.xlu0 %v2837, 64
      %v3210 = vpop.permute.xlu0 %3209
      %3211 = vrot.lane.b32.xlu0 %v2843, 64
      %v3212 = vpop.permute.xlu0 %3211
      %3213 = vrot.lane.b32.xlu0 %v2847, 64
      %v3214 = vpop.permute.xlu0 %3213
      %3215 = vrot.lane.b32.xlu0 %v2853, 64
      %v3216 = vpop.permute.xlu0 %3215
      %3217 = vrot.lane.b32.xlu0 %v2857, 64
      %v3218 = vpop.permute.xlu0 %3217
      %3219 = vrot.lane.b32.xlu0 %v2863, 64
      %v3220 = vpop.permute.xlu0 %3219
      %3221 = vrot.lane.b32.xlu0 %v2867, 64
      %v3222 = vpop.permute.xlu0 %3221
      %3223 = vrot.lane.b32.xlu0 %v2873, 64
      %v3224 = vpop.permute.xlu0 %3223
      %3225 = vrot.lane.b32.xlu0 %v2877, 64
      %v3226 = vpop.permute.xlu0 %3225
      %3227 = vrot.lane.b32.xlu0 %v2883, 64
      %v3228 = vpop.permute.xlu0 %3227
      %3229 = vrot.lane.b32.xlu0 %v2887, 64
      %v3230 = vpop.permute.xlu0 %3229
      %3231 = vrot.lane.b32.xlu0 %v2893, 64
      %v3232 = vpop.permute.xlu0 %3231
      %3233 = vrot.lane.b32.xlu0 %v2897, 64
      %v3234 = vpop.permute.xlu0 %3233
      %3235 = vrot.lane.b32.xlu0 %v2903, 64
      %v3236 = vpop.permute.xlu0 %3235
      %3237 = vrot.lane.b32.xlu0 %v2907, 64
      %v3238 = vpop.permute.xlu0 %3237
      %3239 = vrot.lane.b32.xlu0 %v2913, 64
      %v3240 = vpop.permute.xlu0 %3239
      %3241 = vrot.lane.b32.xlu0 %v2917, 64
      %v3242 = vpop.permute.xlu0 %3241
      %3243 = vrot.lane.b32.xlu0 %v2923, 64
      %v3244 = vpop.permute.xlu0 %3243
      %3245 = vrot.lane.b32.xlu0 %v2927, 64
      %v3246 = vpop.permute.xlu0 %3245
      %3247 = vrot.lane.b32.xlu0 %v2933, 64
      %v3248 = vpop.permute.xlu0 %3247
      %3249 = vrot.lane.b32.xlu0 %v2937, 64
      %v3250 = vpop.permute.xlu0 %3249
      %3251 = vrot.lane.b32.xlu0 %v2943, 64
      %v3252 = vpop.permute.xlu0 %3251
      %3253 = vrot.lane.b32.xlu0 %v2947, 64
      %v3254 = vpop.permute.xlu0 %3253
      %3255 = vrot.lane.b32.xlu0 %v2953, 64
      %v3256 = vpop.permute.xlu0 %3255
      %3257 = vrot.lane.b32.xlu0 %v2957, 64
      %v3258 = vpop.permute.xlu0 %3257
      %3259 = vrot.lane.b32.xlu0 %v2963, 64
      %v3260 = vpop.permute.xlu0 %3259
      %3261 = vrot.lane.b32.xlu0 %v2967, 64
      %v3262 = vpop.permute.xlu0 %3261
      %3263 = vrot.lane.b32.xlu0 %v2973, 64
      %v3264 = vpop.permute.xlu0 %3263
      %3265 = vrot.lane.b32.xlu0 %v2977, 64
      %v3266 = vpop.permute.xlu0 %3265
      %3267 = vrot.lane.b32.xlu0 %v2983, 64
      %v3268 = vpop.permute.xlu0 %3267
      %3269 = vrot.lane.b32.xlu0 %v2987, 64
      %v3270 = vpop.permute.xlu0 %3269
      %3271 = vrot.lane.b32.xlu0 %v2993, 64
      %v3272 = vpop.permute.xlu0 %3271
      %3273 = vrot.lane.b32.xlu0 %v2997, 64
      %v3274 = vpop.permute.xlu0 %3273
      %3275 = vrot.lane.b32.xlu0 %v3003, 64
      %v3276 = vpop.permute.xlu0 %3275
      %3277 = vrot.lane.b32.xlu0 %v3007, 64
      %v3278 = vpop.permute.xlu0 %3277
      %3279 = vrot.lane.b32.xlu0 %v3013, 64
      %v3280 = vpop.permute.xlu0 %3279
      %3281 = vrot.lane.b32.xlu0 %v3017, 64
      %v3282 = vpop.permute.xlu0 %3281
      %3283 = vrot.lane.b32.xlu0 %v3023, 64
      %v3284 = vpop.permute.xlu0 %3283
      %3285 = vrot.lane.b32.xlu0 %v3027, 64
      %v3286 = vpop.permute.xlu0 %3285
      %3287 = vrot.lane.b32.xlu0 %v3033, 64
      %v3288 = vpop.permute.xlu0 %3287
      %3289 = vrot.lane.b32.xlu0 %v3037, 64
      %v3290 = vpop.permute.xlu0 %3289
      %3291 = vrot.lane.b32.xlu0 %v3043, 64
      %v3292 = vpop.permute.xlu0 %3291
      %3293 = vrot.lane.b32.xlu0 %v3047, 64
      %v3294 = vpop.permute.xlu0 %3293
      %3295 = vrot.lane.b32.xlu0 %v3053, 64
      %v3296 = vpop.permute.xlu0 %3295
      %3297 = vrot.lane.b32.xlu0 %v3057, 64
      %v3298 = vpop.permute.xlu0 %3297
      %3299 = vrot.lane.b32.xlu0 %v3063, 64
      %v3300 = vpop.permute.xlu0 %3299
      %3301 = vrot.lane.b32.xlu0 %v3067, 64
      %v3302 = vpop.permute.xlu0 %3301
      %3303 = vrot.lane.b32.xlu0 %v3073, 64
      %v3304 = vpop.permute.xlu0 %3303
      %3305 = vrot.lane.b32.xlu0 %v3077, 64
      %v3306 = vpop.permute.xlu0 %3305
      %3307 = vrot.lane.b32.xlu0 %v3083, 64
      %v3308 = vpop.permute.xlu0 %3307
      %3309 = vrot.lane.b32.xlu0 %v3087, 64
      %v3310 = vpop.permute.xlu0 %3309
      %3311 = vrot.lane.b32.xlu0 %v3093, 64
      %v3312 = vpop.permute.xlu0 %3311
      %3313 = vrot.lane.b32.xlu0 %v3097, 64
      %v3314 = vpop.permute.xlu0 %3313
      %3315 = vrot.lane.b32.xlu0 %v3103, 64
      %v3316 = vpop.permute.xlu0 %3315
      %3317 = vrot.lane.b32.xlu0 %v3107, 64
      %v3318 = vpop.permute.xlu0 %3317
      %v3383 = vadd.f32 %v2781, %v3192
      %v3384 = vadd.f32 %v2784, %v3194
      %v3385 = vadd.f32 %v2789, %v3196
      %v3386 = vadd.f32 %v2792, %v3198
      %v3387 = vadd.f32 %v2797, %v3200
      %v3388 = vadd.f32 %v2800, %v3202
      %v3389 = vadd.f32 %v2805, %v3204
      %v3390 = vadd.f32 %v2808, %v3206
      %v3391 = vadd.f32 %v2813, %v3208
      %v3392 = vadd.f32 %v2817, %v3210
      %v3393 = vadd.f32 %v2823, %v3212
      %v3394 = vadd.f32 %v2827, %v3214
      %v3395 = vadd.f32 %v2833, %v3216
      %v3396 = vadd.f32 %v2837, %v3218
      %v3397 = vadd.f32 %v2843, %v3220
      %v3398 = vadd.f32 %v2847, %v3222
      %v3399 = vadd.f32 %v2853, %v3224
      %v3400 = vadd.f32 %v2857, %v3226
      %v3401 = vadd.f32 %v2863, %v3228
      %v3402 = vadd.f32 %v2867, %v3230
      %v3403 = vadd.f32 %v2873, %v3232
      %v3404 = vadd.f32 %v2877, %v3234
      %v3405 = vadd.f32 %v2883, %v3236
      %v3406 = vadd.f32 %v2887, %v3238
      %v3407 = vadd.f32 %v2893, %v3240
      %v3408 = vadd.f32 %v2897, %v3242
      %v3409 = vadd.f32 %v2903, %v3244
      %v3410 = vadd.f32 %v2907, %v3246
      %v3411 = vadd.f32 %v2913, %v3248
      %v3412 = vadd.f32 %v2917, %v3250
      %v3413 = vadd.f32 %v2923, %v3252
      %v3414 = vadd.f32 %v2927, %v3254
      %v3415 = vadd.f32 %v2933, %v3256
      %v3416 = vadd.f32 %v2937, %v3258
      %v3417 = vadd.f32 %v2943, %v3260
      %v3418 = vadd.f32 %v2947, %v3262
      %v3419 = vadd.f32 %v2953, %v3264
      %v3420 = vadd.f32 %v2957, %v3266
      %v3421 = vadd.f32 %v2963, %v3268
      %v3422 = vadd.f32 %v2967, %v3270
      %v3423 = vadd.f32 %v2973, %v3272
      %v3424 = vadd.f32 %v2977, %v3274
      %v3425 = vadd.f32 %v2983, %v3276
      %v3426 = vadd.f32 %v2987, %v3278
      %v3427 = vadd.f32 %v2993, %v3280
      %v3428 = vadd.f32 %v2997, %v3282
      %v3429 = vadd.f32 %v3003, %v3284
      %v3430 = vadd.f32 %v3007, %v3286
      %v3431 = vadd.f32 %v3013, %v3288
      %v3432 = vadd.f32 %v3017, %v3290
      %v3433 = vadd.f32 %v3023, %v3292
      %v3434 = vadd.f32 %v3027, %v3294
      %v3435 = vadd.f32 %v3033, %v3296
      %v3436 = vadd.f32 %v3037, %v3298
      %v3437 = vadd.f32 %v3043, %v3300
      %v3438 = vadd.f32 %v3047, %v3302
      %v3439 = vadd.f32 %v3053, %v3304
      %v3440 = vadd.f32 %v3057, %v3306
      %v3441 = vadd.f32 %v3063, %v3308
      %v3442 = vadd.f32 %v3067, %v3310
      %v3443 = vadd.f32 %v3073, %v3312
      %v3444 = vadd.f32 %v3077, %v3314
      %v3445 = vadd.f32 %v3083, %v3316
      %v3446 = vadd.f32 %v3087, %v3318
      %v3447 = vadd.f32 %v3383, %v2815
      %v3448 = vadd.f32 %v3384, %v2819
      %v3449 = vadd.f32 %v3385, %v2825
      %v3450 = vadd.f32 %v3386, %v2829
      %v3451 = vadd.f32 %v3387, %v2835
      %v3452 = vadd.f32 %v3388, %v2839
      %v3453 = vadd.f32 %v3389, %v2845
      %v3454 = vadd.f32 %v3390, %v2849
      %v3455 = vadd.f32 %v3391, %v2855
      %v3456 = vadd.f32 %v3392, %v2859
      %v3457 = vadd.f32 %v3393, %v2865
      %v3458 = vadd.f32 %v3394, %v2869
      %v3459 = vadd.f32 %v3395, %v2875
      %v3460 = vadd.f32 %v3396, %v2879
      %v3461 = vadd.f32 %v3397, %v2885
      %v3462 = vadd.f32 %v3398, %v2889
      %v3463 = vadd.f32 %v3399, %v2895
      %v3464 = vadd.f32 %v3400, %v2899
      %v3465 = vadd.f32 %v3401, %v2905
      %v3466 = vadd.f32 %v3402, %v2909
      %v3467 = vadd.f32 %v3403, %v2915
      %v3468 = vadd.f32 %v3404, %v2919
      %v3469 = vadd.f32 %v3405, %v2925
      %v3470 = vadd.f32 %v3406, %v2929
      %v3471 = vadd.f32 %v3407, %v2935
      %v3472 = vadd.f32 %v3408, %v2939
      %v3473 = vadd.f32 %v3409, %v2945
      %v3474 = vadd.f32 %v3410, %v2949
      %v3475 = vadd.f32 %v3411, %v2955
      %v3476 = vadd.f32 %v3412, %v2959
      %v3477 = vadd.f32 %v3413, %v2965
      %v3478 = vadd.f32 %v3414, %v2969
      %v3479 = vadd.f32 %v3415, %v2975
      %v3480 = vadd.f32 %v3416, %v2979
      %v3481 = vadd.f32 %v3417, %v2985
      %v3482 = vadd.f32 %v3418, %v2989
      %v3483 = vadd.f32 %v3419, %v2995
      %v3484 = vadd.f32 %v3420, %v2999
      %v3485 = vadd.f32 %v3421, %v3005
      %v3486 = vadd.f32 %v3422, %v3009
      %v3487 = vadd.f32 %v3423, %v3015
      %v3488 = vadd.f32 %v3424, %v3019
      %v3489 = vadd.f32 %v3425, %v3025
      %v3490 = vadd.f32 %v3426, %v3029
      %v3491 = vadd.f32 %v3427, %v3035
      %v3492 = vadd.f32 %v3428, %v3039
      %v3493 = vadd.f32 %v3429, %v3045
      %v3494 = vadd.f32 %v3430, %v3049
      %v3495 = vadd.f32 %v3431, %v3055
      %v3496 = vadd.f32 %v3432, %v3059
      %v3497 = vadd.f32 %v3433, %v3065
      %v3498 = vadd.f32 %v3434, %v3069
      %v3499 = vadd.f32 %v3435, %v3075
      %v3500 = vadd.f32 %v3436, %v3079
      %v3501 = vadd.f32 %v3437, %v3085
      %v3502 = vadd.f32 %v3438, %v3089
      %v3503 = vadd.f32 %v3439, %v3095
      %v3504 = vadd.f32 %v3440, %v3099
      %v3505 = vadd.f32 %v3441, %v3105
      %v3506 = vadd.f32 %v3442, %v3109
      %v3507 = vadd.f32 %v3443, %v3114
      %v3508 = vadd.f32 %v3444, %v3117
      %v3509 = vadd.f32 %v3445, %v3122
      %v3510 = vadd.f32 %v3446, %v3125
      %v3511 = vmax.f32 %v3447, 0.0
      %v3512 = vmax.f32 %v3448, 0.0
      %v3513 = vmax.f32 %v3449, 0.0
      %v3514 = vmax.f32 %v3450, 0.0
      %v3515 = vmax.f32 %v3451, 0.0
      %v3516 = vmax.f32 %v3452, 0.0
      %v3517 = vmax.f32 %v3453, 0.0
      %v3518 = vmax.f32 %v3454, 0.0
      %v3519 = vmax.f32 %v3455, 0.0
      %v3520 = vmax.f32 %v3456, 0.0
      %v3521 = vmax.f32 %v3457, 0.0
      %v3522 = vmax.f32 %v3458, 0.0
      %v3523 = vmax.f32 %v3459, 0.0
      %v3524 = vmax.f32 %v3460, 0.0
      %v3525 = vmax.f32 %v3461, 0.0
      %v3526 = vmax.f32 %v3462, 0.0
      %v3527 = vmax.f32 %v3463, 0.0
      %v3528 = vmax.f32 %v3464, 0.0
      %v3529 = vmax.f32 %v3465, 0.0
      %v3530 = vmax.f32 %v3466, 0.0
      %v3531 = vmax.f32 %v3467, 0.0
      %v3532 = vmax.f32 %v3468, 0.0
      %v3533 = vmax.f32 %v3469, 0.0
      %v3534 = vmax.f32 %v3470, 0.0
      %v3535 = vmax.f32 %v3471, 0.0
      %v3536 = vmax.f32 %v3472, 0.0
      %v3537 = vmax.f32 %v3473, 0.0
      %v3538 = vmax.f32 %v3474, 0.0
      %v3539 = vmax.f32 %v3475, 0.0
      %v3540 = vmax.f32 %v3476, 0.0
      %v3541 = vmax.f32 %v3477, 0.0
      %v3542 = vmax.f32 %v3478, 0.0
      %v3543 = vmax.f32 %v3479, 0.0
      %v3544 = vmax.f32 %v3480, 0.0
      %v3545 = vmax.f32 %v3481, 0.0
      %v3546 = vmax.f32 %v3482, 0.0
      %v3547 = vmax.f32 %v3483, 0.0
      %v3548 = vmax.f32 %v3484, 0.0
      %v3549 = vmax.f32 %v3485, 0.0
      %v3550 = vmax.f32 %v3486, 0.0
      %v3551 = vmax.f32 %v3487, 0.0
      %v3552 = vmax.f32 %v3488, 0.0
      %v3553 = vmax.f32 %v3489, 0.0
      %v3554 = vmax.f32 %v3490, 0.0
      %v3555 = vmax.f32 %v3491, 0.0
      %v3556 = vmax.f32 %v3492, 0.0
      %v3557 = vmax.f32 %v3493, 0.0
      %v3558 = vmax.f32 %v3494, 0.0
      %v3559 = vmax.f32 %v3495, 0.0
      %v3560 = vmax.f32 %v3496, 0.0
      %v3561 = vmax.f32 %v3497, 0.0
      %v3562 = vmax.f32 %v3498, 0.0
      %v3563 = vmax.f32 %v3499, 0.0
      %v3564 = vmax.f32 %v3500, 0.0
      %v3565 = vmax.f32 %v3501, 0.0
      %v3566 = vmax.f32 %v3502, 0.0
      %v3567 = vmax.f32 %v3503, 0.0
      %v3568 = vmax.f32 %v3504, 0.0
      %v3569 = vmax.f32 %v3505, 0.0
      %v3570 = vmax.f32 %v3506, 0.0
      %v3571 = vmax.f32 %v3507, 0.0
      %v3572 = vmax.f32 %v3508, 0.0
      %v3573 = vmax.f32 %v3509, 0.0
      %v3574 = vmax.f32 %v3510, 0.0
      %v3575 = vpack.c.bf16 %v3512, %v3511
      %v3576 = vpack.c.bf16 %v3514, %v3513
      %v3577 = vpack.c.bf16 %v3516, %v3515
      %v3578 = vpack.c.bf16 %v3518, %v3517
      %v3579 = vpack.c.bf16 %v3520, %v3519
      %v3580 = vpack.c.bf16 %v3522, %v3521
      %v3581 = vpack.c.bf16 %v3524, %v3523
      %v3582 = vpack.c.bf16 %v3526, %v3525
      %v3583 = vpack.c.bf16 %v3528, %v3527
      %v3584 = vpack.c.bf16 %v3530, %v3529
      %v3585 = vpack.c.bf16 %v3532, %v3531
      %v3586 = vpack.c.bf16 %v3534, %v3533
      %v3587 = vpack.c.bf16 %v3536, %v3535
      %v3588 = vpack.c.bf16 %v3538, %v3537
      %v3589 = vpack.c.bf16 %v3540, %v3539
      %v3590 = vpack.c.bf16 %v3542, %v3541
      %v3591 = vpack.c.bf16 %v3544, %v3543
      %v3592 = vpack.c.bf16 %v3546, %v3545
      %v3593 = vpack.c.bf16 %v3548, %v3547
      %v3594 = vpack.c.bf16 %v3550, %v3549
      %v3595 = vpack.c.bf16 %v3552, %v3551
      %v3596 = vpack.c.bf16 %v3554, %v3553
      %v3597 = vpack.c.bf16 %v3556, %v3555
      %v3598 = vpack.c.bf16 %v3558, %v3557
      %v3599 = vpack.c.bf16 %v3560, %v3559
      %v3600 = vpack.c.bf16 %v3562, %v3561
      %v3601 = vpack.c.bf16 %v3564, %v3563
      %v3602 = vpack.c.bf16 %v3566, %v3565
      %v3603 = vpack.c.bf16 %v3568, %v3567
      %v3604 = vpack.c.bf16 %v3570, %v3569
      %v3605 = vpack.c.bf16 %v3572, %v3571
      %v3606 = vpack.c.bf16 %v3574, %v3573
      %v3639 = vunpack.c.l.b16 %v3575
      %v3640 = vunpack.c.h.b16 %v3575
      %v3641 = vunpack.c.l.b16 %v3576
      %v3642 = vunpack.c.h.b16 %v3576
      %v3643 = vunpack.c.l.b16 %v3577
      %v3644 = vunpack.c.h.b16 %v3577
      %v3645 = vunpack.c.l.b16 %v3578
      %v3646 = vunpack.c.h.b16 %v3578
      %v3647 = vunpack.c.l.b16 %v3579
      %v3648 = vunpack.c.h.b16 %v3579
      %v3649 = vunpack.c.l.b16 %v3580
      %v3650 = vunpack.c.h.b16 %v3580
      %v3651 = vunpack.c.l.b16 %v3581
      %v3652 = vunpack.c.h.b16 %v3581
      %v3653 = vunpack.c.l.b16 %v3582
      %v3654 = vunpack.c.h.b16 %v3582
      %v3655 = vunpack.c.l.b16 %v3583
      %v3656 = vunpack.c.h.b16 %v3583
      %v3657 = vunpack.c.l.b16 %v3584
      %v3658 = vunpack.c.h.b16 %v3584
      %v3659 = vunpack.c.l.b16 %v3585
      %v3660 = vunpack.c.h.b16 %v3585
      %v3661 = vunpack.c.l.b16 %v3586
      %v3662 = vunpack.c.h.b16 %v3586
      %v3663 = vunpack.c.l.b16 %v3587
      %v3664 = vunpack.c.h.b16 %v3587
      %v3665 = vunpack.c.l.b16 %v3588
      %v3666 = vunpack.c.h.b16 %v3588
      %v3667 = vunpack.c.l.b16 %v3589
      %v3668 = vunpack.c.h.b16 %v3589
      %v3669 = vunpack.c.l.b16 %v3590
      %v3670 = vunpack.c.h.b16 %v3590
      %v3671 = vunpack.c.l.b16 %v3591
      %v3672 = vunpack.c.h.b16 %v3591
      %v3673 = vunpack.c.l.b16 %v3592
      %v3674 = vunpack.c.h.b16 %v3592
      %v3675 = vunpack.c.l.b16 %v3593
      %v3676 = vunpack.c.h.b16 %v3593
      %v3677 = vunpack.c.l.b16 %v3594
      %v3678 = vunpack.c.h.b16 %v3594
      %v3679 = vunpack.c.l.b16 %v3595
      %v3680 = vunpack.c.h.b16 %v3595
      %v3681 = vunpack.c.l.b16 %v3596
      %v3682 = vunpack.c.h.b16 %v3596
      %v3683 = vunpack.c.l.b16 %v3597
      %v3684 = vunpack.c.h.b16 %v3597
      %v3685 = vunpack.c.l.b16 %v3598
      %v3686 = vunpack.c.h.b16 %v3598
      %v3687 = vunpack.c.l.b16 %v3599
      %v3688 = vunpack.c.h.b16 %v3599
      %v3689 = vunpack.c.l.b16 %v3600
      %v3690 = vunpack.c.h.b16 %v3600
      %v3691 = vunpack.c.l.b16 %v3601
      %v3692 = vunpack.c.h.b16 %v3601
      %v3693 = vunpack.c.l.b16 %v3602
      %v3694 = vunpack.c.h.b16 %v3602
      %v3695 = vunpack.c.l.b16 %v3603
      %v3696 = vunpack.c.h.b16 %v3603
      %v3697 = vunpack.c.l.b16 %v3604
      %v3698 = vunpack.c.h.b16 %v3604
      %v3699 = vunpack.c.l.b16 %v3605
      %v3700 = vunpack.c.h.b16 %v3605
      %v3701 = vunpack.c.l.b16 %v3606
      %v3702 = vunpack.c.h.b16 %v3606
      %v3703 = vpack.c.b16 %v3639, %v3639
      %v3704 = vpack.c.b16 %v3640, %v3640
      %v3705 = vpack.c.b16 %v3641, %v3641
      %v3706 = vpack.c.b16 %v3642, %v3642
      %v3707 = vpack.c.b16 %v3643, %v3643
      %v3708 = vpack.c.b16 %v3644, %v3644
      %v3709 = vpack.c.b16 %v3645, %v3645
      %v3710 = vpack.c.b16 %v3646, %v3646
      %v3711 = vpack.c.b16 %v3647, %v3647
      %v3712 = vpack.c.b16 %v3648, %v3648
      %v3713 = vpack.c.b16 %v3649, %v3649
      %v3714 = vpack.c.b16 %v3650, %v3650
      %v3715 = vpack.c.b16 %v3651, %v3651
      %v3716 = vpack.c.b16 %v3652, %v3652
      %v3717 = vpack.c.b16 %v3653, %v3653
      %v3718 = vpack.c.b16 %v3654, %v3654
      %v3719 = vpack.c.b16 %v3655, %v3655
      %v3720 = vpack.c.b16 %v3656, %v3656
      %v3721 = vpack.c.b16 %v3657, %v3657
      %v3722 = vpack.c.b16 %v3658, %v3658
      %v3723 = vpack.c.b16 %v3659, %v3659
      %v3724 = vpack.c.b16 %v3660, %v3660
      %v3725 = vpack.c.b16 %v3661, %v3661
      %v3726 = vpack.c.b16 %v3662, %v3662
      %v3727 = vpack.c.b16 %v3663, %v3663
      %v3728 = vpack.c.b16 %v3664, %v3664
      %v3729 = vpack.c.b16 %v3665, %v3665
      %v3730 = vpack.c.b16 %v3666, %v3666
      %v3731 = vpack.c.b16 %v3667, %v3667
      %v3732 = vpack.c.b16 %v3668, %v3668
      %v3733 = vpack.c.b16 %v3669, %v3669
      %v3734 = vpack.c.b16 %v3670, %v3670
      %v3735 = vpack.c.b16 %v3671, %v3671
      %v3736 = vpack.c.b16 %v3672, %v3672
      %v3737 = vpack.c.b16 %v3673, %v3673
      %v3738 = vpack.c.b16 %v3674, %v3674
      %v3739 = vpack.c.b16 %v3675, %v3675
      %v3740 = vpack.c.b16 %v3676, %v3676
      %v3741 = vpack.c.b16 %v3677, %v3677
      %v3742 = vpack.c.b16 %v3678, %v3678
      %v3743 = vpack.c.b16 %v3679, %v3679
      %v3744 = vpack.c.b16 %v3680, %v3680
      %v3745 = vpack.c.b16 %v3681, %v3681
      %v3746 = vpack.c.b16 %v3682, %v3682
      %v3747 = vpack.c.b16 %v3683, %v3683
      %v3748 = vpack.c.b16 %v3684, %v3684
      %v3749 = vpack.c.b16 %v3685, %v3685
      %v3750 = vpack.c.b16 %v3686, %v3686
      %v3751 = vpack.c.b16 %v3687, %v3687
      %v3752 = vpack.c.b16 %v3688, %v3688
      %v3753 = vpack.c.b16 %v3689, %v3689
      %v3754 = vpack.c.b16 %v3690, %v3690
      %v3755 = vpack.c.b16 %v3691, %v3691
      %v3756 = vpack.c.b16 %v3692, %v3692
      %v3757 = vpack.c.b16 %v3693, %v3693
      %v3758 = vpack.c.b16 %v3694, %v3694
      %v3759 = vpack.c.b16 %v3695, %v3695
      %v3760 = vpack.c.b16 %v3696, %v3696
      %v3761 = vpack.c.b16 %v3697, %v3697
      %v3762 = vpack.c.b16 %v3698, %v3698
      %v3763 = vpack.c.b16 %v3699, %v3699
      %v3764 = vpack.c.b16 %v3700, %v3700
      %v3765 = vpack.c.b16 %v3701, %v3701
      %v3766 = vpack.c.b16 %v3702, %v3702
      %3831 = vst.msk [vmem:[%s278] sm:$0xf] %vm641, %v3703
      %3832 = vst.msk [vmem:[%s278 + $0x4] sm:$0xf] %vm641, %v3704
      %3833 = vst.msk [vmem:[%s278 + $0x8] sm:$0xf] %vm641, %v3705
      %3834 = vst.msk [vmem:[%s278 + $0xc] sm:$0xf] %vm641, %v3706
      %3835 = vst.msk [vmem:[%s278 + $0x10] sm:$0xf] %vm641, %v3707
      %3836 = vst.msk [vmem:[%s278 + $0x14] sm:$0xf] %vm641, %v3708
      %3837 = vst.msk [vmem:[%s278 + $0x18] sm:$0xf] %vm641, %v3709
      %3838 = vst.msk [vmem:[%s278 + $0x1c] sm:$0xf] %vm641, %v3710
      %3839 = vst.msk [vmem:[%s278 + $0x20] sm:$0xf] %vm641, %v3711
      %3840 = vst.msk [vmem:[%s278 + $0x24] sm:$0xf] %vm641, %v3712
      %3841 = vst.msk [vmem:[%s278 + $0x28] sm:$0xf] %vm641, %v3713
      %3842 = vst.msk [vmem:[%s278 + $0x2c] sm:$0xf] %vm641, %v3714
      %3843 = vst.msk [vmem:[%s278 + $0x30] sm:$0xf] %vm641, %v3715
      %3844 = vst.msk [vmem:[%s278 + $0x34] sm:$0xf] %vm641, %v3716
      %3845 = vst.msk [vmem:[%s278 + $0x38] sm:$0xf] %vm641, %v3717
      %3846 = vst.msk [vmem:[%s278 + $0x3c] sm:$0xf] %vm641, %v3718
      %3847 = vst.msk [vmem:[%s278 + $0x40] sm:$0xf] %vm641, %v3719
      %3848 = vst.msk [vmem:[%s278 + $0x44] sm:$0xf] %vm641, %v3720
      %3849 = vst.msk [vmem:[%s278 + $0x48] sm:$0xf] %vm641, %v3721
      %3850 = vst.msk [vmem:[%s278 + $0x4c] sm:$0xf] %vm641, %v3722
      %3851 = vst.msk [vmem:[%s278 + $0x50] sm:$0xf] %vm641, %v3723
      %3852 = vst.msk [vmem:[%s278 + $0x54] sm:$0xf] %vm641, %v3724
      %3853 = vst.msk [vmem:[%s278 + $0x58] sm:$0xf] %vm641, %v3725
      %3854 = vst.msk [vmem:[%s278 + $0x5c] sm:$0xf] %vm641, %v3726
      %3855 = vst.msk [vmem:[%s278 + $0x60] sm:$0xf] %vm641, %v3727
      %3856 = vst.msk [vmem:[%s278 + $0x64] sm:$0xf] %vm641, %v3728
      %3857 = vst.msk [vmem:[%s278 + $0x68] sm:$0xf] %vm641, %v3729
      %3858 = vst.msk [vmem:[%s278 + $0x6c] sm:$0xf] %vm641, %v3730
      %3859 = vst.msk [vmem:[%s278 + $0x70] sm:$0xf] %vm641, %v3731
      %3860 = vst.msk [vmem:[%s278 + $0x74] sm:$0xf] %vm641, %v3732
      %3861 = vst.msk [vmem:[%s278 + $0x78] sm:$0xf] %vm641, %v3733
      %3862 = vst.msk [vmem:[%s278 + $0x7c] sm:$0xf] %vm641, %v3734
      %3863 = vst.msk [vmem:[%s278 + $0x80] sm:$0xf] %vm641, %v3735
      %3864 = vst.msk [vmem:[%s278 + $0x84] sm:$0xf] %vm641, %v3736
      %3865 = vst.msk [vmem:[%s278 + $0x88] sm:$0xf] %vm641, %v3737
      %3866 = vst.msk [vmem:[%s278 + $0x8c] sm:$0xf] %vm641, %v3738
      %3867 = vst.msk [vmem:[%s278 + $0x90] sm:$0xf] %vm641, %v3739
      %3868 = vst.msk [vmem:[%s278 + $0x94] sm:$0xf] %vm641, %v3740
      %3869 = vst.msk [vmem:[%s278 + $0x98] sm:$0xf] %vm641, %v3741
      %3870 = vst.msk [vmem:[%s278 + $0x9c] sm:$0xf] %vm641, %v3742
      %3871 = vst.msk [vmem:[%s278 + $0xa0] sm:$0xf] %vm641, %v3743
      %3872 = vst.msk [vmem:[%s278 + $0xa4] sm:$0xf] %vm641, %v3744
      %3873 = vst.msk [vmem:[%s278 + $0xa8] sm:$0xf] %vm641, %v3745
      %3874 = vst.msk [vmem:[%s278 + $0xac] sm:$0xf] %vm641, %v3746
      %3875 = vst.msk [vmem:[%s278 + $0xb0] sm:$0xf] %vm641, %v3747
      %3876 = vst.msk [vmem:[%s278 + $0xb4] sm:$0xf] %vm641, %v3748
      %3877 = vst.msk [vmem:[%s278 + $0xb8] sm:$0xf] %vm641, %v3749
      %3878 = vst.msk [vmem:[%s278 + $0xbc] sm:$0xf] %vm641, %v3750
      %3879 = vst.msk [vmem:[%s278 + $0xc0] sm:$0xf] %vm641, %v3751
      %3880 = vst.msk [vmem:[%s278 + $0xc4] sm:$0xf] %vm641, %v3752
      %3881 = vst.msk [vmem:[%s278 + $0xc8] sm:$0xf] %vm641, %v3753
      %3882 = vst.msk [vmem:[%s278 + $0xcc] sm:$0xf] %vm641, %v3754
      %3883 = vst.msk [vmem:[%s278 + $0xd0] sm:$0xf] %vm641, %v3755
      %3884 = vst.msk [vmem:[%s278 + $0xd4] sm:$0xf] %vm641, %v3756
      %3885 = vst.msk [vmem:[%s278 + $0xd8] sm:$0xf] %vm641, %v3757
      %3886 = vst.msk [vmem:[%s278 + $0xdc] sm:$0xf] %vm641, %v3758
      %3887 = vst.msk [vmem:[%s278 + $0xe0] sm:$0xf] %vm641, %v3759
      %3888 = vst.msk [vmem:[%s278 + $0xe4] sm:$0xf] %vm641, %v3760
      %3889 = vst.msk [vmem:[%s278 + $0xe8] sm:$0xf] %vm641, %v3761
      %3890 = vst.msk [vmem:[%s278 + $0xec] sm:$0xf] %vm641, %v3762
      %3891 = vst.msk [vmem:[%s278 + $0xf0] sm:$0xf] %vm641, %v3763
      %3892 = vst.msk [vmem:[%s278 + $0xf4] sm:$0xf] %vm641, %v3764
      %3893 = vst.msk [vmem:[%s278 + $0xf8] sm:$0xf] %vm641, %v3765
      %3894 = vst.msk [vmem:[%s278 + $0xfc] sm:$0xf] %vm641, %v3766
      %s3895 = smul.u32 64, %s19
      %p3896 = scmp.lt.s32.totalorder %s18, 1
      %s3897 = scalar_select %p3896, %s18, 1
      %p3898 = scmp.lt.s32.totalorder %s3895, 63
      %s3899 = scalar_select %p3898, %s3895, 63
      %s3900 = smul.addr %s3897, 64
      %s3901 = sadd.s32 %s3899, %s3900
      %s3902 = smul.addr %s3901, 4
      %s3903 = scalar_lea.vmem %s3, %s3902
      // Predicated region
      $region33: #{tpu_custom_call.1} parent=31 // pred_check
        %p3904 = pneg %p127
      $region34: #{tpu_custom_call.1} parent=31 // pred_check_branch
        %3906 = sbr.rel (%p3904) target = $region36
      $region35: #{tpu_custom_call.1} parent=31 // pred_region
        %s3907 = smul.u32 64, %s19
      $region36: #{tpu_custom_call.1} parent=31 // pred_fallthru
        _
    $region32: #{tpu_custom_call.1} parent=5 // pred_fallthru
      _
    %p3908 = scmp.le.s32.totalorder 2, %s9
    // Predicated region
    $region37: #{tpu_custom_call.1} parent=5 // pred_check
      %p3909 = pneg %p3908
    $region38: #{tpu_custom_call.1} parent=5 // pred_check_branch
      %3911 = sbr.rel (%p3909) target = $region40
    $region39: #{tpu_custom_call.1} parent=5 // pred_region
      %s3912 = ssub.s32 %s9, 2
      // Predicated region
      $region41: #{tpu_custom_call.1} parent=39 // pred_check
        %p3913 = pneg %p133
      $region42: #{tpu_custom_call.1} parent=39 // pred_check_branch
        %3915 = sbr.rel (%p3913) target = $region44
      $region43: #{tpu_custom_call.1} parent=39 // pred_region
        %s3916 = smul.u32 64, %s21
        %p3917 = scmp.lt.s32.totalorder %s20, 1
        %s3918 = scalar_select %p3917, %s20, 1
        %p3919 = scmp.lt.s32.totalorder %s3916, 63
        %s3920 = scalar_select %p3919, %s3916, 63
        %s3921 = smul.addr %s3918, 64
        %s3922 = sadd.s32 %s3920, %s3921
        %s3923 = smul.addr %s3922, 4
        %s3924 = scalar_lea.vmem %s3, %s3923
      $region44: #{tpu_custom_call.1} parent=39 // pred_fallthru
        _
    $region40: #{tpu_custom_call.1} parent=5 // pred_fallthru
      _
  $region6: #{tpu_custom_call.1} parent=0 // loop_footer
    %s13 = sadd.s32 1, %s9
  $region7: #{tpu_custom_call.1} parent=0 // loop_footer_branch
    %8 = sbr.rel target = $region3
  $region8: #{tpu_custom_call.1} parent=0 // loop_exit
    _

</llo_original>
